<compile_context>
chip_gen: v7x
topology: tpu7x:2x2x1
jax: 0.10.0
libtpu: 0.0.40
codegen_flags: <defaults>
</compile_context>

<pallas_src>
import functools

import jax
import jax.numpy as jnp
from jax.experimental import pallas as pl
from jax.experimental.pallas import tpu as pltpu


# ----------------------------------------------------------------------------
# Fused kernel: whole network forward, whole batch, one invocation
# ----------------------------------------------------------------------------
def _tcn_fused_kernel(x_ref, theta_ref, o_ref, *, N, L, blocks,
                      r_dc1, r_dc2, c0, c_tcn, co_dc1):
    """x_ref: (N, c0, L); theta_ref: packed parameter slab; o_ref: (1, N*4L)."""
    f32 = jnp.float32
    theta = theta_ref[...]                                   # (R, 128), resident

    def shift_r(a, s):
        # Causal right-shift by s along lanes, zero-fill on the left.
        if s == 0:
            return a
        return jnp.concatenate(
            [jnp.zeros((a.shape[0], s), f32), a[:, :a.shape[1] - s]], axis=1)

    def causal_conv(x, r0, K, d, ci, co):
        # Conv1d(padding=(K-1)*d) + Chomp == causal conv.  Collapsed to ONE
        # MXU contraction against a sublane-stacked shifted input.
        w = theta[r0:r0 + co, :K * ci]                       # (co, K*ci)
        b = theta[r0:r0 + co, K * ci:K * ci + 1]             # (co, 1)
        xs = jnp.concatenate([shift_r(x, (K - 1 - k) * d) for k in range(K)],
                             axis=0)                         # (K*ci, L)
        return jnp.dot(w, xs, preferred_element_type=f32) + b

    # ---- packed deconv weights (see wrapper for layout) ---------------------
    ci1 = c_tcn + c0                 # deconv1 in-channels (torch.cat fused)
    co1 = co_dc1                     # deconv1 out-channels (= deconv2 in-chan)
    W_even = theta[r_dc1:r_dc1 + co1, 0:3 * ci1]             # [W0 | W2 | W4]
    W_odd = theta[r_dc1:r_dc1 + co1, 3 * ci1:5 * ci1]        # [W1 | W3]
    b_dc1 = theta[r_dc1:r_dc1 + co1, 5 * ci1:5 * ci1 + 1]
    V_odd = theta[r_dc2:r_dc2 + 1, 0:3 * co1]                # [V1 | V3 | V5]
    V_even = theta[r_dc2:r_dc2 + 1, 3 * co1:6 * co1]         # [V0 | V2 | V4]
    b_dc2 = theta[r_dc2:r_dc2 + 1, 6 * co1:6 * co1 + 1]

    # Final interleave selectors (built ONCE): S[phi][v, 4v+phi] = 1.
    rr = jax.lax.broadcasted_iota(jnp.int32, (L, 4 * L), 0)
    cc = jax.lax.broadcasted_iota(jnp.int32, (L, 4 * L), 1)
    S = [(cc == 4 * rr + phi).astype(f32) for phi in range(4)]

    outs = []
    for n in range(N):                                       # static unroll
        x_n = x_ref[n].astype(f32)                           # (c0, L)

        # ---- TemporalConvNet -------------------------------------------------
        y = x_n
        for (d, K, ci, co, r1, r2, rd, down) in blocks:
            h = jnp.maximum(causal_conv(y, r1, K, d, ci, co), 0.0)
            h = jnp.maximum(causal_conv(h, r2, K, d, co, co), 0.0)
            if down:
                wd = theta[rd:rd + co, :ci]
                bd = theta[rd:rd + co, ci:ci + 1]
                res = jnp.dot(wd, y, preferred_element_type=f32) + bd
            else:
                res = y
            y = jnp.maximum(h + res, 0.0)

        # ---- deconv1 (K=5, stride=2, pad=2) + ReLU, polyphase ----------------
        # out1[2u]   = W0@c[u+1] + W2@c[u] + W4@c[u-1]   (even phase, length L)
        # out1[2u+1] = W1@c[u+1] + W3@c[u]               (odd  phase, length L-1)
        c = jnp.concatenate([y, x_n], axis=0)                # fused cat: (7, L)
        zc = jnp.zeros((ci1, 1), f32)
        c_sL = jnp.concatenate([c[:, 1:], zc], axis=1)       # c[:, u+1]
        c_sR = jnp.concatenate([zc, c[:, :L - 1]], axis=1)   # c[:, u-1]
        zE = jnp.maximum(
            jnp.dot(W_even, jnp.concatenate([c_sL, c, c_sR], axis=0),
                    preferred_element_type=f32) + b_dc1, 0.0)        # (co1, L)
        zO = jnp.maximum(
            jnp.dot(W_odd, jnp.concatenate([c[:, 1:], c[:, :L - 1]], axis=0),
                    preferred_element_type=f32) + b_dc1, 0.0)        # (co1, L-1)

        # ---- deconv2 (K=6, stride=2, pad=1), 4-phase polyphase ---------------
        # z[2v]=zE[v], z[2v+1]=zO[v];  out2[4v+phi] = P_phi[v]:
        #   P0 = V1 zE[v]   + V3 zO[v-1] + V5 zE[v-1]
        #   P1 = V0 zO[v]   + V2 zE[v]   + V4 zO[v-1]
        #   P2 = V1 zO[v]   + V3 zE[v]   + V5 zO[v-1]
        #   P3 = V0 zE[v+1] + V2 zO[v]   + V4 zE[v]
        z1 = jnp.zeros((co1, 1), f32)
        zE_sR = jnp.concatenate([z1, zE[:, :L - 1]], axis=1)   # zE[v-1]
        zE_sL = jnp.concatenate([zE[:, 1:], z1], axis=1)       # zE[v+1]
        zO_pR = jnp.concatenate([zO, z1], axis=1)              # zO[v]  (0 @ v=L-1)
        zO_sR = jnp.concatenate([z1, zO], axis=1)              # zO[v-1]

        P0 = jnp.dot(V_odd, jnp.concatenate([zE, zO_sR, zE_sR], axis=0),
                     preferred_element_type=f32) + b_dc2
        s12 = jnp.concatenate([zO_pR, zE, zO_sR], axis=0)
        P1 = jnp.dot(V_even, s12, preferred_element_type=f32) + b_dc2
        P2 = jnp.dot(V_odd, s12, preferred_element_type=f32) + b_dc2
        P3 = jnp.dot(V_even, jnp.concatenate([zE_sL, zO_pR, zE], axis=0),
                     preferred_element_type=f32) + b_dc2

        out_n = (jnp.dot(P0, S[0], preferred_element_type=f32)
                 + jnp.dot(P1, S[1], preferred_element_type=f32)
                 + jnp.dot(P2, S[2], preferred_element_type=f32)
                 + jnp.dot(P3, S[3], preferred_element_type=f32))    # (1, 4L)
        outs.append(out_n)

    # Single lane-dense store: (1, N*4L).
    o_ref[...] = jnp.concatenate(outs, axis=1).astype(o_ref.dtype)


# ----------------------------------------------------------------------------
# Wrapper: parameter packing + pallas_call
# ----------------------------------------------------------------------------
def tcn_forward(inputs, params):
    """Fused TCN forward: (N, C_in, L) -> (N, 1, 4*L) in ONE pallas_call."""
    N, c0, L = inputs.shape
    f32 = jnp.float32

    row_arrays = []
    row = 0

    def add(arr):
        nonlocal row
        r0 = row
        row_arrays.append(arr.astype(f32))
        row += arr.shape[0]
        return r0

    # --- TemporalBlocks: per conv, pack [w_tap0 | ... | w_tapK-1 | bias] ------
    blocks_meta = []
    in_ch = c0
    for i, blk in enumerate(params["blocks"]):
        co, ci, K = blk["w1"].shape
        w1e = jnp.concatenate([blk["w1"][:, :, k] for k in range(K)]
                              + [blk["b1"][:, None]], axis=1)
        w2e = jnp.concatenate([blk["w2"][:, :, k] for k in range(K)]
                              + [blk["b2"][:, None]], axis=1)
        r1 = add(w1e)
        r2 = add(w2e)
        has_down = blk["wd"] is not None
        rd = -1
        if has_down:
            rd = add(jnp.concatenate([blk["wd"][:, :, 0], blk["bd"][:, None]],
                                     axis=1))
        blocks_meta.append((2 ** i, K, ci, co, r1, r2, rd, has_down))
        in_ch = co

    # --- Deconv head (module hardcodes K1=5,p1=2 / K2=6,p2=1, stride 2) -------
    dw1, db1 = params["deconv1_w"], params["deconv1_b"]
    dw2, db2 = params["deconv2_w"], params["deconv2_b"]
    ci1, co1, K1 = dw1.shape           # ConvTranspose1d weight: (C_in, C_out, K)
    ci2, co2, K2 = dw2.shape
    assert (K1, K2) == (5, 6), "polyphase tap split specialized to K1=5, K2=6"
    assert co2 == 1 and ci2 == co1
    assert ci1 == in_ch + c0, \
        "num_channels[-1] + input_size must equal deconv1 in_channels (7)"
    Wk = [dw1[:, :, k].T for k in range(K1)]                 # each (co1, ci1)
    r_dc1 = add(jnp.concatenate([Wk[0], Wk[2], Wk[4], Wk[1], Wk[3],
                                 db1[:, None]], axis=1))     # (co1, 5*ci1+1)
    Vk = [dw2[:, :, k].T for k in range(K2)]                 # each (1, co1)
    r_dc2 = add(jnp.concatenate([Vk[1], Vk[3], Vk[5], Vk[0], Vk[2], Vk[4],
                                 db2[:, None]], axis=1))     # (1, 6*co1+1)

    # One lane-dense parameter slab.
    width = max(a.shape[1] for a in row_arrays)
    width = ((width + 127) // 128) * 128
    theta = jnp.concatenate(
        [jnp.pad(a, ((0, 0), (0, width - a.shape[1]))) for a in row_arrays],
        axis=0)

    L2 = 4 * L                          # deconv1: L -> 2L-1 ; deconv2: 2L-1 -> 4L
    kernel = functools.partial(
        _tcn_fused_kernel, N=N, L=L, blocks=tuple(blocks_meta),
        r_dc1=r_dc1, r_dc2=r_dc2, c0=c0, c_tcn=in_ch, co_dc1=co1)

    out_flat = pl.pallas_call(
        kernel,
        out_shape=jax.ShapeDtypeStruct((1, N * L2), jnp.float32),
        grid=(1,),                      # fully collapsed: one invocation total
        in_specs=[pl.BlockSpec((N, c0, L), lambda i: (0, 0, 0)),
                  pl.BlockSpec(theta.shape, lambda i: (0, 0))],
        out_specs=pl.BlockSpec((1, N * L2), lambda i: (0, 0)),
        compiler_params=pltpu.CompilerParams(
            dimension_semantics=("arbitrary",)),
    )(inputs, theta)
    return out_flat.reshape(N, 1, L2)


# ----------------------------------------------------------------------------
# Pure-JAX reference (mirrors the PyTorch forward) for correctness checking
# ----------------------------------------------------------------------------
def tcn_reference(inputs, params):
    x = inputs.astype(jnp.float32)

    def causal(x, w, b, d):
        K = w.shape[2]
        L = x.shape[2]
        pad = (K - 1) * d
        xp = jnp.pad(x, ((0, 0), (0, 0), (pad, 0)))
        out = sum(jnp.einsum("oc,ncl->nol", w[:, :, k],
                             xp[:, :, k * d:k * d + L]) for k in range(K))
        return out + b[None, :, None]

    def deconv(x, w, b, stride, padding):
        N, _, L = x.shape
        c_out, K = w.shape[1], w.shape[2]
        L_full = (L - 1) * stride + K
        out = jnp.zeros((N, c_out, L_full), jnp.float32)
        for k in range(K):
            upd = jnp.einsum("co,ncl->nol", w[:, :, k], x)
            out = out.at[:, :, k:k + (L - 1) * stride + 1:stride].add(upd)
        L_out = L_full - 2 * padding
        return out[:, :, padding:padding + L_out] + b[None, :, None]

    y = x
    for i, blk in enumerate(params["blocks"]):
        d = 2 ** i
        h = jax.nn.relu(causal(y, blk["w1"], blk["b1"], d))
        h = jax.nn.relu(causal(h, blk["w2"], blk["b2"], d))
        if blk["wd"] is not None:
            res = jnp.einsum("oc,ncl->nol", blk["wd"][:, :, 0], y) + blk["bd"][None, :, None]
        else:
            res = y
        y = jax.nn.relu(h + res)
    y = jnp.concatenate([y, x], axis=1)
    y = jax.nn.relu(deconv(y, params["deconv1_w"], params["deconv1_b"], 2, 2))
    y = deconv(y, params["deconv2_w"], params["deconv2_b"], 2, 1)
    return y


# ----------------------------------------------------------------------------
# Deterministic parameter initialization (matches the PyTorch module layout)
# ----------------------------------------------------------------------------
def _weight_norm(v, g):
    # PyTorch weight_norm (dim=0): w = g * v / ||v||, norm over non-output dims.
    norm = jnp.sqrt(jnp.sum(v * v, axis=(1, 2), keepdims=True))
    return g.reshape(-1, 1, 1) * v / norm


def init_params(key, input_size, num_channels, kernel_size):
    keys = jax.random.split(key, 64)
    it = iter(keys)

    def nrm(shape, scale=0.01):
        return scale * jax.random.normal(next(it), shape, jnp.float32)

    blocks = []
    in_ch = input_size
    for out_ch in num_channels:
        v1 = nrm((out_ch, in_ch, kernel_size))
        g1 = 1.0 + 0.1 * jnp.abs(nrm((out_ch,), 1.0))
        v2 = nrm((out_ch, out_ch, kernel_size))
        g2 = 1.0 + 0.1 * jnp.abs(nrm((out_ch,), 1.0))
        blk = dict(
            w1=_weight_norm(v1, g1), b1=nrm((out_ch,), 0.1),
            w2=_weight_norm(v2, g2), b2=nrm((out_ch,), 0.1),
        )
        if in_ch != out_ch:
            blk["wd"] = nrm((out_ch, in_ch, 1))
            blk["bd"] = nrm((out_ch,), 0.1)
        else:
            blk["wd"] = None
            blk["bd"] = None
        blocks.append(blk)
        in_ch = out_ch

    params = dict(
        blocks=blocks,
        # ConvTranspose1d weights are (C_in, C_out, K)
        deconv1_w=nrm((7, 5, 5), 0.1), deconv1_b=nrm((5,), 0.1),
        deconv2_w=nrm((5, 1, 6), 0.1), deconv2_b=nrm((1,), 0.1),
    )
    return params


# ----------------------------------------------------------------------------
if __name__ == "__main__":
    # TCN(input_size=3, output_size=2, num_channels=[4, 4], kernel_size=3, dropout=0.2)
    # NOTE: deconv1 has fixed in_channels=7, so num_channels[-1] + input_size == 7.
    input_size = 3
    num_channels = [4, 4]
    kernel_size = 3
    N, L = 2, 16

    key = jax.random.PRNGKey(0)
    kp, kx = jax.random.split(key)
    params = init_params(kp, input_size, num_channels, kernel_size)
    x = jax.random.normal(kx, (N, input_size, L), jnp.float32)

    fwd = jax.jit(tcn_forward)
    y = fwd(x, params)
    jax.block_until_ready(y)

    # deconv1: L -> 2L-1 ; deconv2: 2L-1 -> 4L
    assert y.shape == (N, 1, 4 * L), y.shape
    assert y.dtype == jnp.float32

    # correctness vs. pure-JAX reference of the PyTorch forward
    y_ref = jax.jit(tcn_reference)(x, params)
    assert jnp.allclose(y, y_ref, atol=1e-4, rtol=1e-4), \
        float(jnp.max(jnp.abs(y - y_ref)))

    print("KERNEL_OK")
</pallas_src>

<mosaic_0001>
module attributes {stable_mosaic.version = 11 : i64} {
  func.func @_tcn_fused_kernel(%arg0: i32, %arg1: memref<2x3x16xf32, #tpu.memory_space<vmem>>, %arg2: memref<26x128xf32, #tpu.memory_space<vmem>>, %arg3: memref<1x128xf32, #tpu.memory_space<vmem>>) attributes {dimension_semantics = [#tpu.dimension_semantics<arbitrary>], iteration_bounds = array<i64: 1>, scalar_prefetch = 0 : i64, scratch_operands = 0 : i64, tpu.core_type = #tpu.core_type<tc>, window_params = [{pipeline_mode = #tpu.pipeline_mode<synchronous>, transform_indices = @transform_0, window_bounds = array<i64: 2, 3, 16>}, {pipeline_mode = #tpu.pipeline_mode<synchronous>, transform_indices = @transform_1, window_bounds = array<i64: 26, 128>}, {pipeline_mode = #tpu.pipeline_mode<synchronous>, transform_indices = @transform_2, window_bounds = array<i64: 1, 128>}]} {
    %c0 = arith.constant 0 : index
    %c0_0 = arith.constant 0 : index
    %0 = vector.load %arg2[%c0, %c0_0] : memref<26x128xf32, #tpu.memory_space<vmem>>, vector<26x128xf32>
    %1 = vector.extract_strided_slice %0 {offsets = [20, 0], sizes = [5, 21], strides = [1, 1]} : vector<26x128xf32> to vector<5x21xf32>
    %2 = vector.extract_strided_slice %0 {offsets = [20, 21], sizes = [5, 14], strides = [1, 1]} : vector<26x128xf32> to vector<5x14xf32>
    %3 = vector.extract_strided_slice %0 {offsets = [20, 35], sizes = [5, 1], strides = [1, 1]} : vector<26x128xf32> to vector<5x1xf32>
    %4 = vector.extract_strided_slice %0 {offsets = [25, 0], sizes = [1, 15], strides = [1, 1]} : vector<26x128xf32> to vector<1x15xf32>
    %5 = vector.extract_strided_slice %0 {offsets = [25, 15], sizes = [1, 15], strides = [1, 1]} : vector<26x128xf32> to vector<1x15xf32>
    %6 = vector.extract_strided_slice %0 {offsets = [25, 30], sizes = [1, 1], strides = [1, 1]} : vector<26x128xf32> to vector<1x1xf32>
    %7 = tpu.iota {dimensions = array<i32: 0>} : vector<16x64xi32>
    %8 = tpu.iota {dimensions = array<i32: 1>} : vector<16x64xi32>
    %c4_i32 = arith.constant 4 : i32
    %9 = vector.broadcast %c4_i32 : i32 to vector<16x64xi32>
    %10 = arith.muli %9, %7 : vector<16x64xi32>
    %c0_i32 = arith.constant 0 : i32
    %11 = vector.broadcast %c0_i32 : i32 to vector<16x64xi32>
    %12 = arith.addi %10, %11 : vector<16x64xi32>
    %13 = arith.cmpi eq, %8, %12 : vector<16x64xi32>
    %14 = arith.extui %13 : vector<16x64xi1> to vector<16x64xi32>
    %15 = arith.sitofp %14 : vector<16x64xi32> to vector<16x64xf32>
    %c4_i32_1 = arith.constant 4 : i32
    %16 = vector.broadcast %c4_i32_1 : i32 to vector<16x64xi32>
    %17 = arith.muli %16, %7 : vector<16x64xi32>
    %c1_i32 = arith.constant 1 : i32
    %18 = vector.broadcast %c1_i32 : i32 to vector<16x64xi32>
    %19 = arith.addi %17, %18 : vector<16x64xi32>
    %20 = arith.cmpi eq, %8, %19 : vector<16x64xi32>
    %21 = arith.extui %20 : vector<16x64xi1> to vector<16x64xi32>
    %22 = arith.sitofp %21 : vector<16x64xi32> to vector<16x64xf32>
    %c4_i32_2 = arith.constant 4 : i32
    %23 = vector.broadcast %c4_i32_2 : i32 to vector<16x64xi32>
    %24 = arith.muli %23, %7 : vector<16x64xi32>
    %c2_i32 = arith.constant 2 : i32
    %25 = vector.broadcast %c2_i32 : i32 to vector<16x64xi32>
    %26 = arith.addi %24, %25 : vector<16x64xi32>
    %27 = arith.cmpi eq, %8, %26 : vector<16x64xi32>
    %28 = arith.extui %27 : vector<16x64xi1> to vector<16x64xi32>
    %29 = arith.sitofp %28 : vector<16x64xi32> to vector<16x64xf32>
    %c4_i32_3 = arith.constant 4 : i32
    %30 = vector.broadcast %c4_i32_3 : i32 to vector<16x64xi32>
    %31 = arith.muli %30, %7 : vector<16x64xi32>
    %c3_i32 = arith.constant 3 : i32
    %32 = vector.broadcast %c3_i32 : i32 to vector<16x64xi32>
    %33 = arith.addi %31, %32 : vector<16x64xi32>
    %34 = arith.cmpi eq, %8, %33 : vector<16x64xi32>
    %35 = arith.extui %34 : vector<16x64xi1> to vector<16x64xi32>
    %36 = arith.sitofp %35 : vector<16x64xi32> to vector<16x64xf32>
    %c0_4 = arith.constant 0 : index
    %c0_5 = arith.constant 0 : index
    %c0_6 = arith.constant 0 : index
    %37 = vector.load %arg1[%c0_4, %c0_5, %c0_6] : memref<2x3x16xf32, #tpu.memory_space<vmem>>, vector<1x3x16xf32>
    %38 = vector.shape_cast %37 : vector<1x3x16xf32> to vector<3x16xf32>
    %39 = vector.extract_strided_slice %0 {offsets = [0, 0], sizes = [4, 9], strides = [1, 1]} : vector<26x128xf32> to vector<4x9xf32>
    %40 = vector.extract_strided_slice %0 {offsets = [0, 9], sizes = [4, 1], strides = [1, 1]} : vector<26x128xf32> to vector<4x1xf32>
    %cst = arith.constant 0.000000e+00 : f32
    %41 = vector.broadcast %cst : f32 to vector<3x2xf32>
    %42 = vector.extract_strided_slice %38 {offsets = [0, 0], sizes = [3, 14], strides = [1, 1]} : vector<3x16xf32> to vector<3x14xf32>
    %43 = tpu.concatenate %41, %42 in 1 : vector<3x2xf32>, vector<3x14xf32> -> vector<3x16xf32>
    %cst_7 = arith.constant 0.000000e+00 : f32
    %44 = vector.broadcast %cst_7 : f32 to vector<3x1xf32>
    %45 = vector.extract_strided_slice %38 {offsets = [0, 0], sizes = [3, 15], strides = [1, 1]} : vector<3x16xf32> to vector<3x15xf32>
    %46 = tpu.concatenate %44, %45 in 1 : vector<3x1xf32>, vector<3x15xf32> -> vector<3x16xf32>
    %47 = tpu.concatenate %43, %46, %38 in 0 : vector<3x16xf32>, vector<3x16xf32>, vector<3x16xf32> -> vector<9x16xf32>
    %cst_8 = arith.constant dense<0.000000e+00> : vector<4x16xf32>
    %48 = tpu.matmul %39, %47, %cst_8 {dimension_numbers = #tpu.dot_dimension_numbers<[1], [0], [0], [1], [0, 0, 1, 1], [], []>} : vector<4x9xf32>, vector<9x16xf32>, vector<4x16xf32> -> vector<4x16xf32>
    %49 = vector.broadcast %40 : vector<4x1xf32> to vector<4x16xf32>
    %50 = arith.addf %48, %49 : vector<4x16xf32>
    %cst_9 = arith.constant 0.000000e+00 : f32
    %51 = vector.broadcast %cst_9 : f32 to vector<4x16xf32>
    %52 = arith.maximumf %50, %51 : vector<4x16xf32>
    %53 = vector.extract_strided_slice %0 {offsets = [4, 0], sizes = [4, 12], strides = [1, 1]} : vector<26x128xf32> to vector<4x12xf32>
    %54 = vector.extract_strided_slice %0 {offsets = [4, 12], sizes = [4, 1], strides = [1, 1]} : vector<26x128xf32> to vector<4x1xf32>
    %cst_10 = arith.constant 0.000000e+00 : f32
    %55 = vector.broadcast %cst_10 : f32 to vector<4x2xf32>
    %56 = vector.extract_strided_slice %52 {offsets = [0, 0], sizes = [4, 14], strides = [1, 1]} : vector<4x16xf32> to vector<4x14xf32>
    %57 = tpu.concatenate %55, %56 in 1 : vector<4x2xf32>, vector<4x14xf32> -> vector<4x16xf32>
    %cst_11 = arith.constant 0.000000e+00 : f32
    %58 = vector.broadcast %cst_11 : f32 to vector<4x1xf32>
    %59 = vector.extract_strided_slice %52 {offsets = [0, 0], sizes = [4, 15], strides = [1, 1]} : vector<4x16xf32> to vector<4x15xf32>
    %60 = tpu.concatenate %58, %59 in 1 : vector<4x1xf32>, vector<4x15xf32> -> vector<4x16xf32>
    %61 = tpu.concatenate %57, %60, %52 in 0 : vector<4x16xf32>, vector<4x16xf32>, vector<4x16xf32> -> vector<12x16xf32>
    %cst_12 = arith.constant dense<0.000000e+00> : vector<4x16xf32>
    %62 = tpu.matmul %53, %61, %cst_12 {dimension_numbers = #tpu.dot_dimension_numbers<[1], [0], [0], [1], [0, 0, 1, 1], [], []>} : vector<4x12xf32>, vector<12x16xf32>, vector<4x16xf32> -> vector<4x16xf32>
    %63 = vector.broadcast %54 : vector<4x1xf32> to vector<4x16xf32>
    %64 = arith.addf %62, %63 : vector<4x16xf32>
    %cst_13 = arith.constant 0.000000e+00 : f32
    %65 = vector.broadcast %cst_13 : f32 to vector<4x16xf32>
    %66 = arith.maximumf %64, %65 : vector<4x16xf32>
    %67 = vector.extract_strided_slice %0 {offsets = [8, 0], sizes = [4, 3], strides = [1, 1]} : vector<26x128xf32> to vector<4x3xf32>
    %68 = vector.extract_strided_slice %0 {offsets = [8, 3], sizes = [4, 1], strides = [1, 1]} : vector<26x128xf32> to vector<4x1xf32>
    %cst_14 = arith.constant dense<0.000000e+00> : vector<4x16xf32>
    %69 = tpu.matmul %67, %38, %cst_14 {dimension_numbers = #tpu.dot_dimension_numbers<[1], [0], [0], [1], [0, 0, 1, 1], [], []>} : vector<4x3xf32>, vector<3x16xf32>, vector<4x16xf32> -> vector<4x16xf32>
    %70 = vector.broadcast %68 : vector<4x1xf32> to vector<4x16xf32>
    %71 = arith.addf %69, %70 : vector<4x16xf32>
    %72 = arith.addf %66, %71 : vector<4x16xf32>
    %cst_15 = arith.constant 0.000000e+00 : f32
    %73 = vector.broadcast %cst_15 : f32 to vector<4x16xf32>
    %74 = arith.maximumf %72, %73 : vector<4x16xf32>
    %75 = vector.extract_strided_slice %0 {offsets = [12, 0], sizes = [4, 12], strides = [1, 1]} : vector<26x128xf32> to vector<4x12xf32>
    %76 = vector.extract_strided_slice %0 {offsets = [12, 12], sizes = [4, 1], strides = [1, 1]} : vector<26x128xf32> to vector<4x1xf32>
    %cst_16 = arith.constant 0.000000e+00 : f32
    %77 = vector.broadcast %cst_16 : f32 to vector<4x4xf32>
    %78 = vector.extract_strided_slice %74 {offsets = [0, 0], sizes = [4, 12], strides = [1, 1]} : vector<4x16xf32> to vector<4x12xf32>
    %79 = tpu.concatenate %77, %78 in 1 : vector<4x4xf32>, vector<4x12xf32> -> vector<4x16xf32>
    %cst_17 = arith.constant 0.000000e+00 : f32
    %80 = vector.broadcast %cst_17 : f32 to vector<4x2xf32>
    %81 = vector.extract_strided_slice %74 {offsets = [0, 0], sizes = [4, 14], strides = [1, 1]} : vector<4x16xf32> to vector<4x14xf32>
    %82 = tpu.concatenate %80, %81 in 1 : vector<4x2xf32>, vector<4x14xf32> -> vector<4x16xf32>
    %83 = tpu.concatenate %79, %82, %74 in 0 : vector<4x16xf32>, vector<4x16xf32>, vector<4x16xf32> -> vector<12x16xf32>
    %cst_18 = arith.constant dense<0.000000e+00> : vector<4x16xf32>
    %84 = tpu.matmul %75, %83, %cst_18 {dimension_numbers = #tpu.dot_dimension_numbers<[1], [0], [0], [1], [0, 0, 1, 1], [], []>} : vector<4x12xf32>, vector<12x16xf32>, vector<4x16xf32> -> vector<4x16xf32>
    %85 = vector.broadcast %76 : vector<4x1xf32> to vector<4x16xf32>
    %86 = arith.addf %84, %85 : vector<4x16xf32>
    %cst_19 = arith.constant 0.000000e+00 : f32
    %87 = vector.broadcast %cst_19 : f32 to vector<4x16xf32>
    %88 = arith.maximumf %86, %87 : vector<4x16xf32>
    %89 = vector.extract_strided_slice %0 {offsets = [16, 0], sizes = [4, 12], strides = [1, 1]} : vector<26x128xf32> to vector<4x12xf32>
    %90 = vector.extract_strided_slice %0 {offsets = [16, 12], sizes = [4, 1], strides = [1, 1]} : vector<26x128xf32> to vector<4x1xf32>
    %cst_20 = arith.constant 0.000000e+00 : f32
    %91 = vector.broadcast %cst_20 : f32 to vector<4x4xf32>
    %92 = vector.extract_strided_slice %88 {offsets = [0, 0], sizes = [4, 12], strides = [1, 1]} : vector<4x16xf32> to vector<4x12xf32>
    %93 = tpu.concatenate %91, %92 in 1 : vector<4x4xf32>, vector<4x12xf32> -> vector<4x16xf32>
    %cst_21 = arith.constant 0.000000e+00 : f32
    %94 = vector.broadcast %cst_21 : f32 to vector<4x2xf32>
    %95 = vector.extract_strided_slice %88 {offsets = [0, 0], sizes = [4, 14], strides = [1, 1]} : vector<4x16xf32> to vector<4x14xf32>
    %96 = tpu.concatenate %94, %95 in 1 : vector<4x2xf32>, vector<4x14xf32> -> vector<4x16xf32>
    %97 = tpu.concatenate %93, %96, %88 in 0 : vector<4x16xf32>, vector<4x16xf32>, vector<4x16xf32> -> vector<12x16xf32>
    %cst_22 = arith.constant dense<0.000000e+00> : vector<4x16xf32>
    %98 = tpu.matmul %89, %97, %cst_22 {dimension_numbers = #tpu.dot_dimension_numbers<[1], [0], [0], [1], [0, 0, 1, 1], [], []>} : vector<4x12xf32>, vector<12x16xf32>, vector<4x16xf32> -> vector<4x16xf32>
    %99 = vector.broadcast %90 : vector<4x1xf32> to vector<4x16xf32>
    %100 = arith.addf %98, %99 : vector<4x16xf32>
    %cst_23 = arith.constant 0.000000e+00 : f32
    %101 = vector.broadcast %cst_23 : f32 to vector<4x16xf32>
    %102 = arith.maximumf %100, %101 : vector<4x16xf32>
    %103 = arith.addf %102, %74 : vector<4x16xf32>
    %cst_24 = arith.constant 0.000000e+00 : f32
    %104 = vector.broadcast %cst_24 : f32 to vector<4x16xf32>
    %105 = arith.maximumf %103, %104 : vector<4x16xf32>
    %106 = tpu.concatenate %105, %38 in 0 : vector<4x16xf32>, vector<3x16xf32> -> vector<7x16xf32>
    %cst_25 = arith.constant 0.000000e+00 : f32
    %107 = vector.broadcast %cst_25 : f32 to vector<7x1xf32>
    %108 = vector.extract_strided_slice %106 {offsets = [0, 1], sizes = [7, 15], strides = [1, 1]} : vector<7x16xf32> to vector<7x15xf32>
    %109 = tpu.concatenate %108, %107 in 1 : vector<7x15xf32>, vector<7x1xf32> -> vector<7x16xf32>
    %110 = vector.extract_strided_slice %106 {offsets = [0, 0], sizes = [7, 15], strides = [1, 1]} : vector<7x16xf32> to vector<7x15xf32>
    %111 = tpu.concatenate %107, %110 in 1 : vector<7x1xf32>, vector<7x15xf32> -> vector<7x16xf32>
    %112 = tpu.concatenate %109, %106, %111 in 0 : vector<7x16xf32>, vector<7x16xf32>, vector<7x16xf32> -> vector<21x16xf32>
    %cst_26 = arith.constant dense<0.000000e+00> : vector<5x16xf32>
    %113 = tpu.matmul %1, %112, %cst_26 {dimension_numbers = #tpu.dot_dimension_numbers<[1], [0], [0], [1], [0, 0, 1, 1], [], []>} : vector<5x21xf32>, vector<21x16xf32>, vector<5x16xf32> -> vector<5x16xf32>
    %114 = vector.broadcast %3 : vector<5x1xf32> to vector<5x16xf32>
    %115 = arith.addf %113, %114 : vector<5x16xf32>
    %cst_27 = arith.constant 0.000000e+00 : f32
    %116 = vector.broadcast %cst_27 : f32 to vector<5x16xf32>
    %117 = arith.maximumf %115, %116 : vector<5x16xf32>
    %118 = vector.extract_strided_slice %106 {offsets = [0, 1], sizes = [7, 15], strides = [1, 1]} : vector<7x16xf32> to vector<7x15xf32>
    %119 = vector.extract_strided_slice %106 {offsets = [0, 0], sizes = [7, 15], strides = [1, 1]} : vector<7x16xf32> to vector<7x15xf32>
    %120 = tpu.concatenate %118, %119 in 0 : vector<7x15xf32>, vector<7x15xf32> -> vector<14x15xf32>
    %cst_28 = arith.constant dense<0.000000e+00> : vector<5x15xf32>
    %121 = tpu.matmul %2, %120, %cst_28 {dimension_numbers = #tpu.dot_dimension_numbers<[1], [0], [0], [1], [0, 0, 1, 1], [], []>} : vector<5x14xf32>, vector<14x15xf32>, vector<5x15xf32> -> vector<5x15xf32>
    %122 = vector.broadcast %3 : vector<5x1xf32> to vector<5x15xf32>
    %123 = arith.addf %121, %122 : vector<5x15xf32>
    %cst_29 = arith.constant 0.000000e+00 : f32
    %124 = vector.broadcast %cst_29 : f32 to vector<5x15xf32>
    %125 = arith.maximumf %123, %124 : vector<5x15xf32>
    %cst_30 = arith.constant 0.000000e+00 : f32
    %126 = vector.broadcast %cst_30 : f32 to vector<5x1xf32>
    %127 = vector.extract_strided_slice %117 {offsets = [0, 0], sizes = [5, 15], strides = [1, 1]} : vector<5x16xf32> to vector<5x15xf32>
    %128 = tpu.concatenate %126, %127 in 1 : vector<5x1xf32>, vector<5x15xf32> -> vector<5x16xf32>
    %129 = vector.extract_strided_slice %117 {offsets = [0, 1], sizes = [5, 15], strides = [1, 1]} : vector<5x16xf32> to vector<5x15xf32>
    %130 = tpu.concatenate %129, %126 in 1 : vector<5x15xf32>, vector<5x1xf32> -> vector<5x16xf32>
    %131 = tpu.concatenate %125, %126 in 1 : vector<5x15xf32>, vector<5x1xf32> -> vector<5x16xf32>
    %132 = tpu.concatenate %126, %125 in 1 : vector<5x1xf32>, vector<5x15xf32> -> vector<5x16xf32>
    %133 = tpu.concatenate %117, %132, %128 in 0 : vector<5x16xf32>, vector<5x16xf32>, vector<5x16xf32> -> vector<15x16xf32>
    %cst_31 = arith.constant dense<0.000000e+00> : vector<1x16xf32>
    %134 = tpu.matmul %4, %133, %cst_31 {dimension_numbers = #tpu.dot_dimension_numbers<[1], [0], [0], [1], [0, 0, 1, 1], [], []>} : vector<1x15xf32>, vector<15x16xf32>, vector<1x16xf32> -> vector<1x16xf32>
    %135 = vector.broadcast %6 : vector<1x1xf32> to vector<1x16xf32>
    %136 = arith.addf %134, %135 : vector<1x16xf32>
    %137 = tpu.concatenate %131, %117, %132 in 0 : vector<5x16xf32>, vector<5x16xf32>, vector<5x16xf32> -> vector<15x16xf32>
    %cst_32 = arith.constant dense<0.000000e+00> : vector<1x16xf32>
    %138 = tpu.matmul %5, %137, %cst_32 {dimension_numbers = #tpu.dot_dimension_numbers<[1], [0], [0], [1], [0, 0, 1, 1], [], []>} : vector<1x15xf32>, vector<15x16xf32>, vector<1x16xf32> -> vector<1x16xf32>
    %139 = vector.broadcast %6 : vector<1x1xf32> to vector<1x16xf32>
    %140 = arith.addf %138, %139 : vector<1x16xf32>
    %cst_33 = arith.constant dense<0.000000e+00> : vector<1x16xf32>
    %141 = tpu.matmul %4, %137, %cst_33 {dimension_numbers = #tpu.dot_dimension_numbers<[1], [0], [0], [1], [0, 0, 1, 1], [], []>} : vector<1x15xf32>, vector<15x16xf32>, vector<1x16xf32> -> vector<1x16xf32>
    %142 = vector.broadcast %6 : vector<1x1xf32> to vector<1x16xf32>
    %143 = arith.addf %141, %142 : vector<1x16xf32>
    %144 = tpu.concatenate %130, %131, %117 in 0 : vector<5x16xf32>, vector<5x16xf32>, vector<5x16xf32> -> vector<15x16xf32>
    %cst_34 = arith.constant dense<0.000000e+00> : vector<1x16xf32>
    %145 = tpu.matmul %5, %144, %cst_34 {dimension_numbers = #tpu.dot_dimension_numbers<[1], [0], [0], [1], [0, 0, 1, 1], [], []>} : vector<1x15xf32>, vector<15x16xf32>, vector<1x16xf32> -> vector<1x16xf32>
    %146 = vector.broadcast %6 : vector<1x1xf32> to vector<1x16xf32>
    %147 = arith.addf %145, %146 : vector<1x16xf32>
    %cst_35 = arith.constant dense<0.000000e+00> : vector<1x64xf32>
    %148 = tpu.matmul %136, %15, %cst_35 {dimension_numbers = #tpu.dot_dimension_numbers<[1], [0], [0], [1], [0, 0, 1, 1], [], []>} : vector<1x16xf32>, vector<16x64xf32>, vector<1x64xf32> -> vector<1x64xf32>
    %cst_36 = arith.constant dense<0.000000e+00> : vector<1x64xf32>
    %149 = tpu.matmul %140, %22, %cst_36 {dimension_numbers = #tpu.dot_dimension_numbers<[1], [0], [0], [1], [0, 0, 1, 1], [], []>} : vector<1x16xf32>, vector<16x64xf32>, vector<1x64xf32> -> vector<1x64xf32>
    %150 = arith.addf %148, %149 : vector<1x64xf32>
    %cst_37 = arith.constant dense<0.000000e+00> : vector<1x64xf32>
    %151 = tpu.matmul %143, %29, %cst_37 {dimension_numbers = #tpu.dot_dimension_numbers<[1], [0], [0], [1], [0, 0, 1, 1], [], []>} : vector<1x16xf32>, vector<16x64xf32>, vector<1x64xf32> -> vector<1x64xf32>
    %152 = arith.addf %150, %151 : vector<1x64xf32>
    %cst_38 = arith.constant dense<0.000000e+00> : vector<1x64xf32>
    %153 = tpu.matmul %147, %36, %cst_38 {dimension_numbers = #tpu.dot_dimension_numbers<[1], [0], [0], [1], [0, 0, 1, 1], [], []>} : vector<1x16xf32>, vector<16x64xf32>, vector<1x64xf32> -> vector<1x64xf32>
    %154 = arith.addf %152, %153 : vector<1x64xf32>
    %c1 = arith.constant 1 : index
    %c0_39 = arith.constant 0 : index
    %c0_40 = arith.constant 0 : index
    %155 = vector.load %arg1[%c1, %c0_39, %c0_40] : memref<2x3x16xf32, #tpu.memory_space<vmem>>, vector<1x3x16xf32>
    %156 = vector.shape_cast %155 : vector<1x3x16xf32> to vector<3x16xf32>
    %157 = vector.extract_strided_slice %0 {offsets = [0, 0], sizes = [4, 9], strides = [1, 1]} : vector<26x128xf32> to vector<4x9xf32>
    %158 = vector.extract_strided_slice %0 {offsets = [0, 9], sizes = [4, 1], strides = [1, 1]} : vector<26x128xf32> to vector<4x1xf32>
    %cst_41 = arith.constant 0.000000e+00 : f32
    %159 = vector.broadcast %cst_41 : f32 to vector<3x2xf32>
    %160 = vector.extract_strided_slice %156 {offsets = [0, 0], sizes = [3, 14], strides = [1, 1]} : vector<3x16xf32> to vector<3x14xf32>
    %161 = tpu.concatenate %159, %160 in 1 : vector<3x2xf32>, vector<3x14xf32> -> vector<3x16xf32>
    %cst_42 = arith.constant 0.000000e+00 : f32
    %162 = vector.broadcast %cst_42 : f32 to vector<3x1xf32>
    %163 = vector.extract_strided_slice %156 {offsets = [0, 0], sizes = [3, 15], strides = [1, 1]} : vector<3x16xf32> to vector<3x15xf32>
    %164 = tpu.concatenate %162, %163 in 1 : vector<3x1xf32>, vector<3x15xf32> -> vector<3x16xf32>
    %165 = tpu.concatenate %161, %164, %156 in 0 : vector<3x16xf32>, vector<3x16xf32>, vector<3x16xf32> -> vector<9x16xf32>
    %cst_43 = arith.constant dense<0.000000e+00> : vector<4x16xf32>
    %166 = tpu.matmul %157, %165, %cst_43 {dimension_numbers = #tpu.dot_dimension_numbers<[1], [0], [0], [1], [0, 0, 1, 1], [], []>} : vector<4x9xf32>, vector<9x16xf32>, vector<4x16xf32> -> vector<4x16xf32>
    %167 = vector.broadcast %158 : vector<4x1xf32> to vector<4x16xf32>
    %168 = arith.addf %166, %167 : vector<4x16xf32>
    %cst_44 = arith.constant 0.000000e+00 : f32
    %169 = vector.broadcast %cst_44 : f32 to vector<4x16xf32>
    %170 = arith.maximumf %168, %169 : vector<4x16xf32>
    %171 = vector.extract_strided_slice %0 {offsets = [4, 0], sizes = [4, 12], strides = [1, 1]} : vector<26x128xf32> to vector<4x12xf32>
    %172 = vector.extract_strided_slice %0 {offsets = [4, 12], sizes = [4, 1], strides = [1, 1]} : vector<26x128xf32> to vector<4x1xf32>
    %cst_45 = arith.constant 0.000000e+00 : f32
    %173 = vector.broadcast %cst_45 : f32 to vector<4x2xf32>
    %174 = vector.extract_strided_slice %170 {offsets = [0, 0], sizes = [4, 14], strides = [1, 1]} : vector<4x16xf32> to vector<4x14xf32>
    %175 = tpu.concatenate %173, %174 in 1 : vector<4x2xf32>, vector<4x14xf32> -> vector<4x16xf32>
    %cst_46 = arith.constant 0.000000e+00 : f32
    %176 = vector.broadcast %cst_46 : f32 to vector<4x1xf32>
    %177 = vector.extract_strided_slice %170 {offsets = [0, 0], sizes = [4, 15], strides = [1, 1]} : vector<4x16xf32> to vector<4x15xf32>
    %178 = tpu.concatenate %176, %177 in 1 : vector<4x1xf32>, vector<4x15xf32> -> vector<4x16xf32>
    %179 = tpu.concatenate %175, %178, %170 in 0 : vector<4x16xf32>, vector<4x16xf32>, vector<4x16xf32> -> vector<12x16xf32>
    %cst_47 = arith.constant dense<0.000000e+00> : vector<4x16xf32>
    %180 = tpu.matmul %171, %179, %cst_47 {dimension_numbers = #tpu.dot_dimension_numbers<[1], [0], [0], [1], [0, 0, 1, 1], [], []>} : vector<4x12xf32>, vector<12x16xf32>, vector<4x16xf32> -> vector<4x16xf32>
    %181 = vector.broadcast %172 : vector<4x1xf32> to vector<4x16xf32>
    %182 = arith.addf %180, %181 : vector<4x16xf32>
    %cst_48 = arith.constant 0.000000e+00 : f32
    %183 = vector.broadcast %cst_48 : f32 to vector<4x16xf32>
    %184 = arith.maximumf %182, %183 : vector<4x16xf32>
    %185 = vector.extract_strided_slice %0 {offsets = [8, 0], sizes = [4, 3], strides = [1, 1]} : vector<26x128xf32> to vector<4x3xf32>
    %186 = vector.extract_strided_slice %0 {offsets = [8, 3], sizes = [4, 1], strides = [1, 1]} : vector<26x128xf32> to vector<4x1xf32>
    %cst_49 = arith.constant dense<0.000000e+00> : vector<4x16xf32>
    %187 = tpu.matmul %185, %156, %cst_49 {dimension_numbers = #tpu.dot_dimension_numbers<[1], [0], [0], [1], [0, 0, 1, 1], [], []>} : vector<4x3xf32>, vector<3x16xf32>, vector<4x16xf32> -> vector<4x16xf32>
    %188 = vector.broadcast %186 : vector<4x1xf32> to vector<4x16xf32>
    %189 = arith.addf %187, %188 : vector<4x16xf32>
    %190 = arith.addf %184, %189 : vector<4x16xf32>
    %cst_50 = arith.constant 0.000000e+00 : f32
    %191 = vector.broadcast %cst_50 : f32 to vector<4x16xf32>
    %192 = arith.maximumf %190, %191 : vector<4x16xf32>
    %193 = vector.extract_strided_slice %0 {offsets = [12, 0], sizes = [4, 12], strides = [1, 1]} : vector<26x128xf32> to vector<4x12xf32>
    %194 = vector.extract_strided_slice %0 {offsets = [12, 12], sizes = [4, 1], strides = [1, 1]} : vector<26x128xf32> to vector<4x1xf32>
    %cst_51 = arith.constant 0.000000e+00 : f32
    %195 = vector.broadcast %cst_51 : f32 to vector<4x4xf32>
    %196 = vector.extract_strided_slice %192 {offsets = [0, 0], sizes = [4, 12], strides = [1, 1]} : vector<4x16xf32> to vector<4x12xf32>
    %197 = tpu.concatenate %195, %196 in 1 : vector<4x4xf32>, vector<4x12xf32> -> vector<4x16xf32>
    %cst_52 = arith.constant 0.000000e+00 : f32
    %198 = vector.broadcast %cst_52 : f32 to vector<4x2xf32>
    %199 = vector.extract_strided_slice %192 {offsets = [0, 0], sizes = [4, 14], strides = [1, 1]} : vector<4x16xf32> to vector<4x14xf32>
    %200 = tpu.concatenate %198, %199 in 1 : vector<4x2xf32>, vector<4x14xf32> -> vector<4x16xf32>
    %201 = tpu.concatenate %197, %200, %192 in 0 : vector<4x16xf32>, vector<4x16xf32>, vector<4x16xf32> -> vector<12x16xf32>
    %cst_53 = arith.constant dense<0.000000e+00> : vector<4x16xf32>
    %202 = tpu.matmul %193, %201, %cst_53 {dimension_numbers = #tpu.dot_dimension_numbers<[1], [0], [0], [1], [0, 0, 1, 1], [], []>} : vector<4x12xf32>, vector<12x16xf32>, vector<4x16xf32> -> vector<4x16xf32>
    %203 = vector.broadcast %194 : vector<4x1xf32> to vector<4x16xf32>
    %204 = arith.addf %202, %203 : vector<4x16xf32>
    %cst_54 = arith.constant 0.000000e+00 : f32
    %205 = vector.broadcast %cst_54 : f32 to vector<4x16xf32>
    %206 = arith.maximumf %204, %205 : vector<4x16xf32>
    %207 = vector.extract_strided_slice %0 {offsets = [16, 0], sizes = [4, 12], strides = [1, 1]} : vector<26x128xf32> to vector<4x12xf32>
    %208 = vector.extract_strided_slice %0 {offsets = [16, 12], sizes = [4, 1], strides = [1, 1]} : vector<26x128xf32> to vector<4x1xf32>
    %cst_55 = arith.constant 0.000000e+00 : f32
    %209 = vector.broadcast %cst_55 : f32 to vector<4x4xf32>
    %210 = vector.extract_strided_slice %206 {offsets = [0, 0], sizes = [4, 12], strides = [1, 1]} : vector<4x16xf32> to vector<4x12xf32>
    %211 = tpu.concatenate %209, %210 in 1 : vector<4x4xf32>, vector<4x12xf32> -> vector<4x16xf32>
    %cst_56 = arith.constant 0.000000e+00 : f32
    %212 = vector.broadcast %cst_56 : f32 to vector<4x2xf32>
    %213 = vector.extract_strided_slice %206 {offsets = [0, 0], sizes = [4, 14], strides = [1, 1]} : vector<4x16xf32> to vector<4x14xf32>
    %214 = tpu.concatenate %212, %213 in 1 : vector<4x2xf32>, vector<4x14xf32> -> vector<4x16xf32>
    %215 = tpu.concatenate %211, %214, %206 in 0 : vector<4x16xf32>, vector<4x16xf32>, vector<4x16xf32> -> vector<12x16xf32>
    %cst_57 = arith.constant dense<0.000000e+00> : vector<4x16xf32>
    %216 = tpu.matmul %207, %215, %cst_57 {dimension_numbers = #tpu.dot_dimension_numbers<[1], [0], [0], [1], [0, 0, 1, 1], [], []>} : vector<4x12xf32>, vector<12x16xf32>, vector<4x16xf32> -> vector<4x16xf32>
    %217 = vector.broadcast %208 : vector<4x1xf32> to vector<4x16xf32>
    %218 = arith.addf %216, %217 : vector<4x16xf32>
    %cst_58 = arith.constant 0.000000e+00 : f32
    %219 = vector.broadcast %cst_58 : f32 to vector<4x16xf32>
    %220 = arith.maximumf %218, %219 : vector<4x16xf32>
    %221 = arith.addf %220, %192 : vector<4x16xf32>
    %cst_59 = arith.constant 0.000000e+00 : f32
    %222 = vector.broadcast %cst_59 : f32 to vector<4x16xf32>
    %223 = arith.maximumf %221, %222 : vector<4x16xf32>
    %224 = tpu.concatenate %223, %156 in 0 : vector<4x16xf32>, vector<3x16xf32> -> vector<7x16xf32>
    %cst_60 = arith.constant 0.000000e+00 : f32
    %225 = vector.broadcast %cst_60 : f32 to vector<7x1xf32>
    %226 = vector.extract_strided_slice %224 {offsets = [0, 1], sizes = [7, 15], strides = [1, 1]} : vector<7x16xf32> to vector<7x15xf32>
    %227 = tpu.concatenate %226, %225 in 1 : vector<7x15xf32>, vector<7x1xf32> -> vector<7x16xf32>
    %228 = vector.extract_strided_slice %224 {offsets = [0, 0], sizes = [7, 15], strides = [1, 1]} : vector<7x16xf32> to vector<7x15xf32>
    %229 = tpu.concatenate %225, %228 in 1 : vector<7x1xf32>, vector<7x15xf32> -> vector<7x16xf32>
    %230 = tpu.concatenate %227, %224, %229 in 0 : vector<7x16xf32>, vector<7x16xf32>, vector<7x16xf32> -> vector<21x16xf32>
    %cst_61 = arith.constant dense<0.000000e+00> : vector<5x16xf32>
    %231 = tpu.matmul %1, %230, %cst_61 {dimension_numbers = #tpu.dot_dimension_numbers<[1], [0], [0], [1], [0, 0, 1, 1], [], []>} : vector<5x21xf32>, vector<21x16xf32>, vector<5x16xf32> -> vector<5x16xf32>
    %232 = vector.broadcast %3 : vector<5x1xf32> to vector<5x16xf32>
    %233 = arith.addf %231, %232 : vector<5x16xf32>
    %cst_62 = arith.constant 0.000000e+00 : f32
    %234 = vector.broadcast %cst_62 : f32 to vector<5x16xf32>
    %235 = arith.maximumf %233, %234 : vector<5x16xf32>
    %236 = vector.extract_strided_slice %224 {offsets = [0, 1], sizes = [7, 15], strides = [1, 1]} : vector<7x16xf32> to vector<7x15xf32>
    %237 = vector.extract_strided_slice %224 {offsets = [0, 0], sizes = [7, 15], strides = [1, 1]} : vector<7x16xf32> to vector<7x15xf32>
    %238 = tpu.concatenate %236, %237 in 0 : vector<7x15xf32>, vector<7x15xf32> -> vector<14x15xf32>
    %cst_63 = arith.constant dense<0.000000e+00> : vector<5x15xf32>
    %239 = tpu.matmul %2, %238, %cst_63 {dimension_numbers = #tpu.dot_dimension_numbers<[1], [0], [0], [1], [0, 0, 1, 1], [], []>} : vector<5x14xf32>, vector<14x15xf32>, vector<5x15xf32> -> vector<5x15xf32>
    %240 = vector.broadcast %3 : vector<5x1xf32> to vector<5x15xf32>
    %241 = arith.addf %239, %240 : vector<5x15xf32>
    %cst_64 = arith.constant 0.000000e+00 : f32
    %242 = vector.broadcast %cst_64 : f32 to vector<5x15xf32>
    %243 = arith.maximumf %241, %242 : vector<5x15xf32>
    %cst_65 = arith.constant 0.000000e+00 : f32
    %244 = vector.broadcast %cst_65 : f32 to vector<5x1xf32>
    %245 = vector.extract_strided_slice %235 {offsets = [0, 0], sizes = [5, 15], strides = [1, 1]} : vector<5x16xf32> to vector<5x15xf32>
    %246 = tpu.concatenate %244, %245 in 1 : vector<5x1xf32>, vector<5x15xf32> -> vector<5x16xf32>
    %247 = vector.extract_strided_slice %235 {offsets = [0, 1], sizes = [5, 15], strides = [1, 1]} : vector<5x16xf32> to vector<5x15xf32>
    %248 = tpu.concatenate %247, %244 in 1 : vector<5x15xf32>, vector<5x1xf32> -> vector<5x16xf32>
    %249 = tpu.concatenate %243, %244 in 1 : vector<5x15xf32>, vector<5x1xf32> -> vector<5x16xf32>
    %250 = tpu.concatenate %244, %243 in 1 : vector<5x1xf32>, vector<5x15xf32> -> vector<5x16xf32>
    %251 = tpu.concatenate %235, %250, %246 in 0 : vector<5x16xf32>, vector<5x16xf32>, vector<5x16xf32> -> vector<15x16xf32>
    %cst_66 = arith.constant dense<0.000000e+00> : vector<1x16xf32>
    %252 = tpu.matmul %4, %251, %cst_66 {dimension_numbers = #tpu.dot_dimension_numbers<[1], [0], [0], [1], [0, 0, 1, 1], [], []>} : vector<1x15xf32>, vector<15x16xf32>, vector<1x16xf32> -> vector<1x16xf32>
    %253 = vector.broadcast %6 : vector<1x1xf32> to vector<1x16xf32>
    %254 = arith.addf %252, %253 : vector<1x16xf32>
    %255 = tpu.concatenate %249, %235, %250 in 0 : vector<5x16xf32>, vector<5x16xf32>, vector<5x16xf32> -> vector<15x16xf32>
    %cst_67 = arith.constant dense<0.000000e+00> : vector<1x16xf32>
    %256 = tpu.matmul %5, %255, %cst_67 {dimension_numbers = #tpu.dot_dimension_numbers<[1], [0], [0], [1], [0, 0, 1, 1], [], []>} : vector<1x15xf32>, vector<15x16xf32>, vector<1x16xf32> -> vector<1x16xf32>
    %257 = vector.broadcast %6 : vector<1x1xf32> to vector<1x16xf32>
    %258 = arith.addf %256, %257 : vector<1x16xf32>
    %cst_68 = arith.constant dense<0.000000e+00> : vector<1x16xf32>
    %259 = tpu.matmul %4, %255, %cst_68 {dimension_numbers = #tpu.dot_dimension_numbers<[1], [0], [0], [1], [0, 0, 1, 1], [], []>} : vector<1x15xf32>, vector<15x16xf32>, vector<1x16xf32> -> vector<1x16xf32>
    %260 = vector.broadcast %6 : vector<1x1xf32> to vector<1x16xf32>
    %261 = arith.addf %259, %260 : vector<1x16xf32>
    %262 = tpu.concatenate %248, %249, %235 in 0 : vector<5x16xf32>, vector<5x16xf32>, vector<5x16xf32> -> vector<15x16xf32>
    %cst_69 = arith.constant dense<0.000000e+00> : vector<1x16xf32>
    %263 = tpu.matmul %5, %262, %cst_69 {dimension_numbers = #tpu.dot_dimension_numbers<[1], [0], [0], [1], [0, 0, 1, 1], [], []>} : vector<1x15xf32>, vector<15x16xf32>, vector<1x16xf32> -> vector<1x16xf32>
    %264 = vector.broadcast %6 : vector<1x1xf32> to vector<1x16xf32>
    %265 = arith.addf %263, %264 : vector<1x16xf32>
    %cst_70 = arith.constant dense<0.000000e+00> : vector<1x64xf32>
    %266 = tpu.matmul %254, %15, %cst_70 {dimension_numbers = #tpu.dot_dimension_numbers<[1], [0], [0], [1], [0, 0, 1, 1], [], []>} : vector<1x16xf32>, vector<16x64xf32>, vector<1x64xf32> -> vector<1x64xf32>
    %cst_71 = arith.constant dense<0.000000e+00> : vector<1x64xf32>
    %267 = tpu.matmul %258, %22, %cst_71 {dimension_numbers = #tpu.dot_dimension_numbers<[1], [0], [0], [1], [0, 0, 1, 1], [], []>} : vector<1x16xf32>, vector<16x64xf32>, vector<1x64xf32> -> vector<1x64xf32>
    %268 = arith.addf %266, %267 : vector<1x64xf32>
    %cst_72 = arith.constant dense<0.000000e+00> : vector<1x64xf32>
    %269 = tpu.matmul %261, %29, %cst_72 {dimension_numbers = #tpu.dot_dimension_numbers<[1], [0], [0], [1], [0, 0, 1, 1], [], []>} : vector<1x16xf32>, vector<16x64xf32>, vector<1x64xf32> -> vector<1x64xf32>
    %270 = arith.addf %268, %269 : vector<1x64xf32>
    %cst_73 = arith.constant dense<0.000000e+00> : vector<1x64xf32>
    %271 = tpu.matmul %265, %36, %cst_73 {dimension_numbers = #tpu.dot_dimension_numbers<[1], [0], [0], [1], [0, 0, 1, 1], [], []>} : vector<1x16xf32>, vector<16x64xf32>, vector<1x64xf32> -> vector<1x64xf32>
    %272 = arith.addf %270, %271 : vector<1x64xf32>
    %273 = tpu.concatenate %154, %272 in 1 : vector<1x64xf32>, vector<1x64xf32> -> vector<1x128xf32>
    %c0_74 = arith.constant 0 : index
    %c0_75 = arith.constant 0 : index
    %274 = vector.load %arg3[%c0_74, %c0_75] : memref<1x128xf32, #tpu.memory_space<vmem>>, vector<1x128xf32>
    tpu.vector_store %arg3[%c0_74, %c0_75], %273 {strides = array<i32>} : memref<1x128xf32, #tpu.memory_space<vmem>>, vector<1x128xf32>,
    return
  }
  func.func @transform_0(%arg0: i32) -> (i32, i32, i32) {
    %c0_i32 = arith.constant 0 : i32
    %c0_i32_0 = arith.constant 0 : i32
    %c0_i32_1 = arith.constant 0 : i32
    %c0_i32_2 = arith.constant 0 : i32
    return %c0_i32, %c0_i32_0, %c0_i32_1 : i32, i32, i32
  }
  func.func @transform_1(%arg0: i32) -> (i32, i32) {
    %c0_i32 = arith.constant 0 : i32
    %c0_i32_0 = arith.constant 0 : i32
    %c0_i32_1 = arith.constant 0 : i32
    return %c0_i32, %c0_i32_0 : i32, i32
  }
  func.func @transform_2(%arg0: i32) -> (i32, i32) {
    %c0_i32 = arith.constant 0 : i32
    %c0_i32_0 = arith.constant 0 : i32
    %c0_i32_1 = arith.constant 0 : i32
    return %c0_i32, %c0_i32_0 : i32, i32
  }
}

</mosaic_0001>

<llo_original>
// kernel: tcn_forward.1
$region0: #{tcn_forward.1}
  #allocation0 [shape = 'u32[]', space=smem, size = 0x4, offset = 0x4, fixed_abs, tag = 'smem constant byte address 0x4 - core index']
  #allocation1 [shape = 'u32[144,128]{1,0:T(1,128)}', space=vmem, size = 0x12000, scoped, tag = 'internal scratch']
  %s0 = inlined_call_operand.vmem [shape: f32[2,3,16], index: 0, kind: input, shape index: {}]
  %s1 = inlined_call_operand.vmem [shape: f32[26,128], index: 1, kind: input, shape index: {}]
  %s2 = inlined_call_operand.vmem [shape: f32[1,128], index: 2, kind: output, shape index: {}]
  %s3 = sld [smem:[#allocation0]]
  $region18: #{tcn_forward.1} parent=0
    _
  %s5 = ssub.s32 1, %s3
  %s6 = scalar_select 0, %s5, %s3
  // Predicated region
  $region2: #{tcn_forward.1} parent=0 // pred_check
    _
  $region3: #{tcn_forward.1} parent=0 // pred_check_branch
    %8 = sbr.rel (0) target = $region5
  $region4: #{tcn_forward.1} parent=0 // pred_region
    _
  $region5: #{tcn_forward.1} parent=0 // pred_fallthru
    _
  // Predicated region
  $region6: #{tcn_forward.1} parent=0 // pred_check
    _
  $region7: #{tcn_forward.1} parent=0 // pred_check_branch
    %10 = sbr.rel (0) target = $region9
  $region8: #{tcn_forward.1} parent=0 // pred_region
    _
  $region9: #{tcn_forward.1} parent=0 // pred_fallthru
    _
  %v11 = vld [vmem:[%s1] sm:$0xff]
  %v12 = vld [vmem:[%s1 + $0x8] sm:$0xff]
  %v13 = vld [vmem:[%s1 + $0x10] sm:$0xff]
  %v14 = vld [vmem:[%s1 + $0x18] sm:$0x3]
  %v15 = vlaneseq
  %v16 = vshrl.u32 %v15, 7
  %v17 = vadd.s32 %v16, 8
  %v18 = vlaneseq
  %v19 = vand.u32 %v18, 127
  %v20 = vmul.u32 %v16, 4
  %v21 = vmul.u32 %v17, 4
  %vm22 = vcmp.eq.s32.totalorder %v19, %v20
  %vm23 = vcmp.eq.s32.totalorder %v19, %v21
  %v24 = vsel %vm22, 1, 0
  %v25 = vsel %vm23, 1, 0
  %v26 = vcvt.s32.f32 %v24
  %v27 = vcvt.s32.f32 %v25
  %v28 = vadd.s32 %v20, 1
  %v29 = vadd.s32 %v21, 1
  %vm30 = vcmp.eq.s32.totalorder %v19, %v28
  %vm31 = vcmp.eq.s32.totalorder %v19, %v29
  %v32 = vsel %vm30, 1, 0
  %v33 = vsel %vm31, 1, 0
  %v34 = vcvt.s32.f32 %v32
  %v35 = vcvt.s32.f32 %v33
  %v36 = vadd.s32 %v20, 2
  %v37 = vadd.s32 %v21, 2
  %vm38 = vcmp.eq.s32.totalorder %v19, %v36
  %vm39 = vcmp.eq.s32.totalorder %v19, %v37
  %v40 = vsel %vm38, 1, 0
  %v41 = vsel %vm39, 1, 0
  %v42 = vcvt.s32.f32 %v40
  %v43 = vcvt.s32.f32 %v41
  %v44 = vadd.s32 %v20, 3
  %v45 = vadd.s32 %v21, 3
  %vm46 = vcmp.eq.s32.totalorder %v19, %v44
  %vm47 = vcmp.eq.s32.totalorder %v19, %v45
  %v48 = vsel %vm46, 1, 0
  %v49 = vsel %vm47, 1, 0
  %v50 = vcvt.s32.f32 %v48
  %v51 = vcvt.s32.f32 %v49
  %v52 = vld [vmem:[%s0] sm:$0x7]
  %54 = vrot.lane.b32.xlu0 %v52, 2
  %v55 = vpop.permute.xlu0 %54
  %vm57 = vcmask 15360
  %v58 = vsel %vm57, 0.0, %v55
  %59 = vrot.lane.b32.xlu0 %v52, 1
  %v60 = vpop.permute.xlu0 %59
  %vm62 = vcmask 7168
  %v63 = vsel %vm62, 0.0, %v60
  %v65 = vrot.slane %v63, 5
  %v67 = vrot.slane %v52, 2
  %vm69 = vcmask 1042432
  %v70 = vsel %vm69, %v58, %v65
  %vm71 = vcmask 1045504
  %v72 = vsel %vm71, %v70, %v67
  %74 = vset.pattern.permute.xlu0 9
  %75 = vperm.xlu0 %74, %v11
  %v76 = vpop.permute.xlu0 %75
  %vm78 = vcmask 72704
  %v79 = vsel %vm78, %v11, 0
  %vm81 = vcmask 1040384
  %v82 = vsel %vm81, %v67, 0
  %84 = vmatprep.subr.mxu0 0.0
  %85 = vmatpush1.msra.mxu0 %v72
  %86 = vmatprep.subr.mxu0 0.0
  %87 = vmatpush1.msra.mxu0 %v82
  %88 = vmatprep.subr.mxu0 0.0
  %89 = vmatpush1.msra.mxu0 0.0
  %90 = vmatprep.subr.mxu0 0.0
  %91 = vmatpush1.msra.mxu0 0.0
  %92 = vmatprep.subr.mxu0 0.0
  %93 = vmatpush1.msra.mxu0 0.0
  %94 = vmatprep.subr.mxu0 0.0
  %95 = vmatpush1.msra.mxu0 0.0
  %96 = vmatprep.subr.mxu0 0.0
  %97 = vmatpush1.msra.mxu0 0.0
  %98 = vmatprep.subr.mxu0 0.0
  %99 = vmatpush1.msra.mxu0 0.0
  %100 = vmatprep.subr.mxu0 0.0
  %101 = vmatpush1.msra.mxu0 0.0
  %102 = vmatprep.subr.mxu0 0.0
  %103 = vmatpush1.msra.mxu0 0.0
  %104 = vmatprep.subr.mxu0 0.0
  %105 = vmatpush1.msra.mxu0 0.0
  %106 = vmatprep.subr.mxu0 0.0
  %107 = vmatpush1.msra.mxu0 0.0
  %108 = vmatprep.subr.mxu0 0.0
  %109 = vmatpush1.msra.mxu0 0.0
  %110 = vmatprep.subr.mxu0 0.0
  %111 = vmatpush1.msra.mxu0 0.0
  %112 = vmatprep.subr.mxu0 0.0
  %113 = vmatpush1.msra.mxu0 0.0
  %114 = vmatprep.subr.mxu0 0.0
  %115 = vmatpush1.msra.mxu0 0.0
  %116 = vmatprep.subr.mxu0 0.0
  %117 = vmatpush1.msra.mxu0 0.0
  %118 = vmatprep.subr.mxu0 0.0
  %119 = vmatpush1.msra.mxu0 0.0
  %120 = vmatprep.subr.mxu0 0.0
  %121 = vmatpush1.msra.mxu0 0.0
  %122 = vmatprep.subr.mxu0 0.0
  %123 = vmatpush1.msra.mxu0 0.0
  %124 = vmatprep.subr.mxu0 0.0
  %125 = vmatpush1.msra.mxu0 0.0
  %126 = vmatprep.subr.mxu0 0.0
  %127 = vmatpush1.msra.mxu0 0.0
  %128 = vmatprep.subr.mxu0 0.0
  %129 = vmatpush1.msra.mxu0 0.0
  %130 = vmatprep.subr.mxu0 0.0
  %131 = vmatpush1.msra.mxu0 0.0
  %132 = vmatprep.subr.mxu0 0.0
  %133 = vmatpush1.msra.mxu0 0.0
  %134 = vmatprep.subr.mxu0 0.0
  %135 = vmatpush1.msra.mxu0 0.0
  %136 = vmatprep.subr.mxu0 0.0
  %137 = vmatpush1.msra.mxu0 0.0
  %138 = vmatprep.subr.mxu0 0.0
  %139 = vmatpush1.msra.mxu0 0.0
  %140 = vmatprep.subr.mxu0 0.0
  %141 = vmatpush1.msra.mxu0 0.0
  %142 = vmatprep.subr.mxu0 0.0
  %143 = vmatpush1.msra.mxu0 0.0
  %144 = vmatprep.subr.mxu0 0.0
  %145 = vmatpush1.msra.mxu0 0.0
  %146 = vmatprep.subr.mxu0 0.0
  %147 = vmatpush1.msra.mxu0 0.0
  %148 = vmatprep.mubr.f32.mxu0 0.0
  %149 = vmatmul.mubr.f32.gmra.mrb[0].mxu0 %v79
  %v150 = vpop.f32.mrb[0].mxu0
  %v151 = vadd.f32 %v76, %v150
  %v152 = vpop.f32.mrb[0].mxu0
  %153 = vdwg.mxu0
  %v154 = vmax.f32 %v151, 0.0
  %156 = vrot.lane.b32.xlu0 %v154, 2
  %v157 = vpop.permute.xlu0 %156
  %v159 = vsel %vm57, 0.0, %v157
  %160 = vrot.lane.b32.xlu0 %v154, 1
  %v161 = vpop.permute.xlu0 %160
  %v163 = vsel %vm62, 0.0, %v161
  %v165 = vrot.slane %v163, 4
  %vm167 = vcmask 1043456
  %v168 = vsel %vm167, %v159, %v165
  %169 = vset.pattern.permute.xlu0 12
  %170 = vperm.xlu0 %169, %v11
  %v171 = vpop.permute.xlu0 %170
  %v172 = vrot.slane %v11, 4
  %v173 = vrot.slane %v171, 4
  %vm175 = vcmask 97280
  %v176 = vsel %vm175, %v172, 0
  %v178 = vsel %vm167, %v154, 0
  %180 = vmatprep.subr.mxu0 0.0
  %181 = vmatpush1.msra.mxu0 %v168
  %182 = vmatprep.subr.mxu0 0.0
  %183 = vmatpush1.msra.mxu0 %v178
  %184 = vmatprep.subr.mxu0 0.0
  %185 = vmatpush1.msra.mxu0 0.0
  %186 = vmatprep.subr.mxu0 0.0
  %187 = vmatpush1.msra.mxu0 0.0
  %188 = vmatprep.subr.mxu0 0.0
  %189 = vmatpush1.msra.mxu0 0.0
  %190 = vmatprep.subr.mxu0 0.0
  %191 = vmatpush1.msra.mxu0 0.0
  %192 = vmatprep.subr.mxu0 0.0
  %193 = vmatpush1.msra.mxu0 0.0
  %194 = vmatprep.subr.mxu0 0.0
  %195 = vmatpush1.msra.mxu0 0.0
  %196 = vmatprep.subr.mxu0 0.0
  %197 = vmatpush1.msra.mxu0 0.0
  %198 = vmatprep.subr.mxu0 0.0
  %199 = vmatpush1.msra.mxu0 0.0
  %200 = vmatprep.subr.mxu0 0.0
  %201 = vmatpush1.msra.mxu0 0.0
  %202 = vmatprep.subr.mxu0 0.0
  %203 = vmatpush1.msra.mxu0 0.0
  %204 = vmatprep.subr.mxu0 0.0
  %205 = vmatpush1.msra.mxu0 0.0
  %206 = vmatprep.subr.mxu0 0.0
  %207 = vmatpush1.msra.mxu0 0.0
  %208 = vmatprep.subr.mxu0 0.0
  %209 = vmatpush1.msra.mxu0 0.0
  %210 = vmatprep.subr.mxu0 0.0
  %211 = vmatpush1.msra.mxu0 0.0
  %212 = vmatprep.subr.mxu0 0.0
  %213 = vmatpush1.msra.mxu0 0.0
  %214 = vmatprep.subr.mxu0 0.0
  %215 = vmatpush1.msra.mxu0 0.0
  %216 = vmatprep.subr.mxu0 0.0
  %217 = vmatpush1.msra.mxu0 0.0
  %218 = vmatprep.subr.mxu0 0.0
  %219 = vmatpush1.msra.mxu0 0.0
  %220 = vmatprep.subr.mxu0 0.0
  %221 = vmatpush1.msra.mxu0 0.0
  %222 = vmatprep.subr.mxu0 0.0
  %223 = vmatpush1.msra.mxu0 0.0
  %224 = vmatprep.subr.mxu0 0.0
  %225 = vmatpush1.msra.mxu0 0.0
  %226 = vmatprep.subr.mxu0 0.0
  %227 = vmatpush1.msra.mxu0 0.0
  %228 = vmatprep.subr.mxu0 0.0
  %229 = vmatpush1.msra.mxu0 0.0
  %230 = vmatprep.subr.mxu0 0.0
  %231 = vmatpush1.msra.mxu0 0.0
  %232 = vmatprep.subr.mxu0 0.0
  %233 = vmatpush1.msra.mxu0 0.0
  %234 = vmatprep.subr.mxu0 0.0
  %235 = vmatpush1.msra.mxu0 0.0
  %236 = vmatprep.subr.mxu0 0.0
  %237 = vmatpush1.msra.mxu0 0.0
  %238 = vmatprep.subr.mxu0 0.0
  %239 = vmatpush1.msra.mxu0 0.0
  %240 = vmatprep.subr.mxu0 0.0
  %241 = vmatpush1.msra.mxu0 0.0
  %242 = vmatprep.subr.mxu0 0.0
  %243 = vmatpush1.msra.mxu0 0.0
  %244 = vmatprep.mubr.f32.mxu0 0.0
  %245 = vmatmul.mubr.f32.gmra.mrb[0].mxu0 %v176
  %v246 = vpop.f32.mrb[0].mxu0
  %v247 = vadd.f32 %v173, %v246
  %v248 = vpop.f32.mrb[0].mxu0
  %249 = vdwg.mxu0
  %v250 = vmax.f32 %v247, 0.0
  %252 = vset.pattern.permute.xlu0 3
  %253 = vperm.xlu0 %252, %v12
  %v254 = vpop.permute.xlu0 %253
  %vm256 = vcmask 23552
  %v257 = vsel %vm256, %v12, 0
  %v259 = vsel %vm69, %v52, 0
  %261 = vmatprep.subr.mxu0 0.0
  %262 = vmatpush1.msra.mxu0 %v259
  %263 = vmatprep.subr.mxu0 0.0
  %264 = vmatpush1.msra.mxu0 0.0
  %265 = vmatprep.subr.mxu0 0.0
  %266 = vmatpush1.msra.mxu0 0.0
  %267 = vmatprep.subr.mxu0 0.0
  %268 = vmatpush1.msra.mxu0 0.0
  %269 = vmatprep.subr.mxu0 0.0
  %270 = vmatpush1.msra.mxu0 0.0
  %271 = vmatprep.subr.mxu0 0.0
  %272 = vmatpush1.msra.mxu0 0.0
  %273 = vmatprep.subr.mxu0 0.0
  %274 = vmatpush1.msra.mxu0 0.0
  %275 = vmatprep.subr.mxu0 0.0
  %276 = vmatpush1.msra.mxu0 0.0
  %277 = vmatprep.subr.mxu0 0.0
  %278 = vmatpush1.msra.mxu0 0.0
  %279 = vmatprep.subr.mxu0 0.0
  %280 = vmatpush1.msra.mxu0 0.0
  %281 = vmatprep.subr.mxu0 0.0
  %282 = vmatpush1.msra.mxu0 0.0
  %283 = vmatprep.subr.mxu0 0.0
  %284 = vmatpush1.msra.mxu0 0.0
  %285 = vmatprep.subr.mxu0 0.0
  %286 = vmatpush1.msra.mxu0 0.0
  %287 = vmatprep.subr.mxu0 0.0
  %288 = vmatpush1.msra.mxu0 0.0
  %289 = vmatprep.subr.mxu0 0.0
  %290 = vmatpush1.msra.mxu0 0.0
  %291 = vmatprep.subr.mxu0 0.0
  %292 = vmatpush1.msra.mxu0 0.0
  %293 = vmatprep.subr.mxu0 0.0
  %294 = vmatpush1.msra.mxu0 0.0
  %295 = vmatprep.subr.mxu0 0.0
  %296 = vmatpush1.msra.mxu0 0.0
  %297 = vmatprep.subr.mxu0 0.0
  %298 = vmatpush1.msra.mxu0 0.0
  %299 = vmatprep.subr.mxu0 0.0
  %300 = vmatpush1.msra.mxu0 0.0
  %301 = vmatprep.subr.mxu0 0.0
  %302 = vmatpush1.msra.mxu0 0.0
  %303 = vmatprep.subr.mxu0 0.0
  %304 = vmatpush1.msra.mxu0 0.0
  %305 = vmatprep.subr.mxu0 0.0
  %306 = vmatpush1.msra.mxu0 0.0
  %307 = vmatprep.subr.mxu0 0.0
  %308 = vmatpush1.msra.mxu0 0.0
  %309 = vmatprep.subr.mxu0 0.0
  %310 = vmatpush1.msra.mxu0 0.0
  %311 = vmatprep.subr.mxu0 0.0
  %312 = vmatpush1.msra.mxu0 0.0
  %313 = vmatprep.subr.mxu0 0.0
  %314 = vmatpush1.msra.mxu0 0.0
  %315 = vmatprep.subr.mxu0 0.0
  %316 = vmatpush1.msra.mxu0 0.0
  %317 = vmatprep.subr.mxu0 0.0
  %318 = vmatpush1.msra.mxu0 0.0
  %319 = vmatprep.subr.mxu0 0.0
  %320 = vmatpush1.msra.mxu0 0.0
  %321 = vmatprep.subr.mxu0 0.0
  %322 = vmatpush1.msra.mxu0 0.0
  %323 = vmatprep.subr.mxu0 0.0
  %324 = vmatpush1.msra.mxu0 0.0
  %325 = vmatprep.mubr.f32.mxu0 0.0
  %326 = vmatmul.mubr.f32.gmra.mrb[0].mxu0 %v257
  %v327 = vpop.f32.mrb[0].mxu0
  %v328 = vadd.f32 %v254, %v327
  %v329 = vpop.f32.mrb[0].mxu0
  %330 = vdwg.mxu0
  %v331 = vadd.f32 %v250, %v328
  %v332 = vmax.f32 %v331, 0.0
  %334 = vrot.lane.b32.xlu0 %v332, 4
  %v335 = vpop.permute.xlu0 %334
  %vm337 = vcmask 31744
  %v338 = vsel %vm337, 0.0, %v335
  %339 = vrot.lane.b32.xlu0 %v332, 2
  %v340 = vpop.permute.xlu0 %339
  %v342 = vsel %vm57, 0.0, %v340
  %v344 = vrot.slane %v342, 4
  %v346 = vsel %vm167, %v338, %v344
  %347 = vset.pattern.permute.xlu0 12
  %348 = vperm.xlu0 %347, %v12
  %v349 = vpop.permute.xlu0 %348
  %v350 = vrot.slane %v12, 4
  %v351 = vrot.slane %v349, 4
  %v353 = vsel %vm175, %v350, 0
  %v355 = vsel %vm167, %v332, 0
  %357 = vmatprep.subr.mxu0 0.0
  %358 = vmatpush1.msra.mxu0 %v346
  %359 = vmatprep.subr.mxu0 0.0
  %360 = vmatpush1.msra.mxu0 %v355
  %361 = vmatprep.subr.mxu0 0.0
  %362 = vmatpush1.msra.mxu0 0.0
  %363 = vmatprep.subr.mxu0 0.0
  %364 = vmatpush1.msra.mxu0 0.0
  %365 = vmatprep.subr.mxu0 0.0
  %366 = vmatpush1.msra.mxu0 0.0
  %367 = vmatprep.subr.mxu0 0.0
  %368 = vmatpush1.msra.mxu0 0.0
  %369 = vmatprep.subr.mxu0 0.0
  %370 = vmatpush1.msra.mxu0 0.0
  %371 = vmatprep.subr.mxu0 0.0
  %372 = vmatpush1.msra.mxu0 0.0
  %373 = vmatprep.subr.mxu0 0.0
  %374 = vmatpush1.msra.mxu0 0.0
  %375 = vmatprep.subr.mxu0 0.0
  %376 = vmatpush1.msra.mxu0 0.0
  %377 = vmatprep.subr.mxu0 0.0
  %378 = vmatpush1.msra.mxu0 0.0
  %379 = vmatprep.subr.mxu0 0.0
  %380 = vmatpush1.msra.mxu0 0.0
  %381 = vmatprep.subr.mxu0 0.0
  %382 = vmatpush1.msra.mxu0 0.0
  %383 = vmatprep.subr.mxu0 0.0
  %384 = vmatpush1.msra.mxu0 0.0
  %385 = vmatprep.subr.mxu0 0.0
  %386 = vmatpush1.msra.mxu0 0.0
  %387 = vmatprep.subr.mxu0 0.0
  %388 = vmatpush1.msra.mxu0 0.0
  %389 = vmatprep.subr.mxu0 0.0
  %390 = vmatpush1.msra.mxu0 0.0
  %391 = vmatprep.subr.mxu0 0.0
  %392 = vmatpush1.msra.mxu0 0.0
  %393 = vmatprep.subr.mxu0 0.0
  %394 = vmatpush1.msra.mxu0 0.0
  %395 = vmatprep.subr.mxu0 0.0
  %396 = vmatpush1.msra.mxu0 0.0
  %397 = vmatprep.subr.mxu0 0.0
  %398 = vmatpush1.msra.mxu0 0.0
  %399 = vmatprep.subr.mxu0 0.0
  %400 = vmatpush1.msra.mxu0 0.0
  %401 = vmatprep.subr.mxu0 0.0
  %402 = vmatpush1.msra.mxu0 0.0
  %403 = vmatprep.subr.mxu0 0.0
  %404 = vmatpush1.msra.mxu0 0.0
  %405 = vmatprep.subr.mxu0 0.0
  %406 = vmatpush1.msra.mxu0 0.0
  %407 = vmatprep.subr.mxu0 0.0
  %408 = vmatpush1.msra.mxu0 0.0
  %409 = vmatprep.subr.mxu0 0.0
  %410 = vmatpush1.msra.mxu0 0.0
  %411 = vmatprep.subr.mxu0 0.0
  %412 = vmatpush1.msra.mxu0 0.0
  %413 = vmatprep.subr.mxu0 0.0
  %414 = vmatpush1.msra.mxu0 0.0
  %415 = vmatprep.subr.mxu0 0.0
  %416 = vmatpush1.msra.mxu0 0.0
  %417 = vmatprep.subr.mxu0 0.0
  %418 = vmatpush1.msra.mxu0 0.0
  %419 = vmatprep.subr.mxu0 0.0
  %420 = vmatpush1.msra.mxu0 0.0
  %421 = vmatprep.mubr.f32.mxu0 0.0
  %422 = vmatmul.mubr.f32.gmra.mrb[0].mxu0 %v353
  %v423 = vpop.f32.mrb[0].mxu0
  %v424 = vadd.f32 %v351, %v423
  %v425 = vpop.f32.mrb[0].mxu0
  %426 = vdwg.mxu0
  %v427 = vmax.f32 %v424, 0.0
  %429 = vrot.lane.b32.xlu0 %v427, 4
  %v430 = vpop.permute.xlu0 %429
  %v432 = vsel %vm337, 0.0, %v430
  %433 = vrot.lane.b32.xlu0 %v427, 2
  %v434 = vpop.permute.xlu0 %433
  %v436 = vsel %vm57, 0.0, %v434
  %v438 = vrot.slane %v436, 4
  %v440 = vsel %vm167, %v432, %v438
  %442 = vset.pattern.permute.xlu0 12
  %443 = vperm.xlu0 %442, %v13
  %v444 = vpop.permute.xlu0 %443
  %v446 = vsel %vm175, %v13, 0
  %v448 = vsel %vm167, %v427, 0
  %450 = vmatprep.subr.mxu0 0.0
  %451 = vmatpush1.msra.mxu0 %v440
  %452 = vmatprep.subr.mxu0 0.0
  %453 = vmatpush1.msra.mxu0 %v448
  %454 = vmatprep.subr.mxu0 0.0
  %455 = vmatpush1.msra.mxu0 0.0
  %456 = vmatprep.subr.mxu0 0.0
  %457 = vmatpush1.msra.mxu0 0.0
  %458 = vmatprep.subr.mxu0 0.0
  %459 = vmatpush1.msra.mxu0 0.0
  %460 = vmatprep.subr.mxu0 0.0
  %461 = vmatpush1.msra.mxu0 0.0
  %462 = vmatprep.subr.mxu0 0.0
  %463 = vmatpush1.msra.mxu0 0.0
  %464 = vmatprep.subr.mxu0 0.0
  %465 = vmatpush1.msra.mxu0 0.0
  %466 = vmatprep.subr.mxu0 0.0
  %467 = vmatpush1.msra.mxu0 0.0
  %468 = vmatprep.subr.mxu0 0.0
  %469 = vmatpush1.msra.mxu0 0.0
  %470 = vmatprep.subr.mxu0 0.0
  %471 = vmatpush1.msra.mxu0 0.0
  %472 = vmatprep.subr.mxu0 0.0
  %473 = vmatpush1.msra.mxu0 0.0
  %474 = vmatprep.subr.mxu0 0.0
  %475 = vmatpush1.msra.mxu0 0.0
  %476 = vmatprep.subr.mxu0 0.0
  %477 = vmatpush1.msra.mxu0 0.0
  %478 = vmatprep.subr.mxu0 0.0
  %479 = vmatpush1.msra.mxu0 0.0
  %480 = vmatprep.subr.mxu0 0.0
  %481 = vmatpush1.msra.mxu0 0.0
  %482 = vmatprep.subr.mxu0 0.0
  %483 = vmatpush1.msra.mxu0 0.0
  %484 = vmatprep.subr.mxu0 0.0
  %485 = vmatpush1.msra.mxu0 0.0
  %486 = vmatprep.subr.mxu0 0.0
  %487 = vmatpush1.msra.mxu0 0.0
  %488 = vmatprep.subr.mxu0 0.0
  %489 = vmatpush1.msra.mxu0 0.0
  %490 = vmatprep.subr.mxu0 0.0
  %491 = vmatpush1.msra.mxu0 0.0
  %492 = vmatprep.subr.mxu0 0.0
  %493 = vmatpush1.msra.mxu0 0.0
  %494 = vmatprep.subr.mxu0 0.0
  %495 = vmatpush1.msra.mxu0 0.0
  %496 = vmatprep.subr.mxu0 0.0
  %497 = vmatpush1.msra.mxu0 0.0
  %498 = vmatprep.subr.mxu0 0.0
  %499 = vmatpush1.msra.mxu0 0.0
  %500 = vmatprep.subr.mxu0 0.0
  %501 = vmatpush1.msra.mxu0 0.0
  %502 = vmatprep.subr.mxu0 0.0
  %503 = vmatpush1.msra.mxu0 0.0
  %504 = vmatprep.subr.mxu0 0.0
  %505 = vmatpush1.msra.mxu0 0.0
  %506 = vmatprep.subr.mxu0 0.0
  %507 = vmatpush1.msra.mxu0 0.0
  %508 = vmatprep.subr.mxu0 0.0
  %509 = vmatpush1.msra.mxu0 0.0
  %510 = vmatprep.subr.mxu0 0.0
  %511 = vmatpush1.msra.mxu0 0.0
  %512 = vmatprep.subr.mxu0 0.0
  %513 = vmatpush1.msra.mxu0 0.0
  %514 = vmatprep.mubr.f32.mxu0 0.0
  %515 = vmatmul.mubr.f32.gmra.mrb[0].mxu0 %v446
  %v516 = vpop.f32.mrb[0].mxu0
  %v517 = vadd.f32 %v444, %v516
  %v518 = vpop.f32.mrb[0].mxu0
  %519 = vdwg.mxu0
  %v520 = vmax.f32 %v517, 0.0
  %v521 = vadd.f32 %v520, %v332
  %v522 = vmax.f32 %v521, 0.0
  %v523 = vrot.slane %v52, 4
  %v525 = vsel %vm167, %v522, %v523
  %527 = vrot.lane.b32.xlu0 %v525, 127
  %v528 = vpop.permute.xlu0 %527
  %vm530 = vcmask 121856
  %v531 = vsel %vm530, %v528, 0.0
  %532 = vrot.lane.b32.xlu0 %v525, 1
  %v533 = vpop.permute.xlu0 %532
  %v535 = vsel %vm62, 0.0, %v533
  %v536 = vrot.slane %v525, 1
  %v539 = vrot.slane %v535, 2
  %vm541 = vcmask 1046528
  %v542 = vsel %vm541, %v531, %v536
  %v543 = vsel %vm71, %v536, %v539
  %544 = vset.pattern.permute.xlu0 35
  %545 = vperm.xlu0 %544, %v13
  %v546 = vpop.permute.xlu0 %545
  %548 = vset.pattern.permute.xlu0 35
  %549 = vperm.xlu0 %548, %v14
  %v550 = vpop.permute.xlu0 %549
  %v551 = vrot.slane %v13, 4
  %v552 = vrot.slane %v14, 4
  %v553 = vsel %vm167, %v551, %v552
  %v554 = vrot.slane %v546, 4
  %v555 = vrot.slane %v550, 4
  %v556 = vsel %vm167, %v554, %v555
  %vm558 = vcmask 171008
  %v559 = vsel %vm558, %v553, 0
  %vm561 = vcmask 1044480
  %v562 = vsel %vm561, %v539, 0
  %564 = vmatprep.subr.mxu0 0.0
  %565 = vmatpush1.msra.mxu0 %v542
  %566 = vmatprep.subr.mxu0 0.0
  %567 = vmatpush1.msra.mxu0 %v543
  %568 = vmatprep.subr.mxu0 0.0
  %569 = vmatpush1.msra.mxu0 %v562
  %570 = vmatprep.subr.mxu0 0.0
  %571 = vmatpush1.msra.mxu0 0.0
  %572 = vmatprep.subr.mxu0 0.0
  %573 = vmatpush1.msra.mxu0 0.0
  %574 = vmatprep.subr.mxu0 0.0
  %575 = vmatpush1.msra.mxu0 0.0
  %576 = vmatprep.subr.mxu0 0.0
  %577 = vmatpush1.msra.mxu0 0.0
  %578 = vmatprep.subr.mxu0 0.0
  %579 = vmatpush1.msra.mxu0 0.0
  %580 = vmatprep.subr.mxu0 0.0
  %581 = vmatpush1.msra.mxu0 0.0
  %582 = vmatprep.subr.mxu0 0.0
  %583 = vmatpush1.msra.mxu0 0.0
  %584 = vmatprep.subr.mxu0 0.0
  %585 = vmatpush1.msra.mxu0 0.0
  %586 = vmatprep.subr.mxu0 0.0
  %587 = vmatpush1.msra.mxu0 0.0
  %588 = vmatprep.subr.mxu0 0.0
  %589 = vmatpush1.msra.mxu0 0.0
  %590 = vmatprep.subr.mxu0 0.0
  %591 = vmatpush1.msra.mxu0 0.0
  %592 = vmatprep.subr.mxu0 0.0
  %593 = vmatpush1.msra.mxu0 0.0
  %594 = vmatprep.subr.mxu0 0.0
  %595 = vmatpush1.msra.mxu0 0.0
  %596 = vmatprep.subr.mxu0 0.0
  %597 = vmatpush1.msra.mxu0 0.0
  %598 = vmatprep.subr.mxu0 0.0
  %599 = vmatpush1.msra.mxu0 0.0
  %600 = vmatprep.subr.mxu0 0.0
  %601 = vmatpush1.msra.mxu0 0.0
  %602 = vmatprep.subr.mxu0 0.0
  %603 = vmatpush1.msra.mxu0 0.0
  %604 = vmatprep.subr.mxu0 0.0
  %605 = vmatpush1.msra.mxu0 0.0
  %606 = vmatprep.subr.mxu0 0.0
  %607 = vmatpush1.msra.mxu0 0.0
  %608 = vmatprep.subr.mxu0 0.0
  %609 = vmatpush1.msra.mxu0 0.0
  %610 = vmatprep.subr.mxu0 0.0
  %611 = vmatpush1.msra.mxu0 0.0
  %612 = vmatprep.subr.mxu0 0.0
  %613 = vmatpush1.msra.mxu0 0.0
  %614 = vmatprep.subr.mxu0 0.0
  %615 = vmatpush1.msra.mxu0 0.0
  %616 = vmatprep.subr.mxu0 0.0
  %617 = vmatpush1.msra.mxu0 0.0
  %618 = vmatprep.subr.mxu0 0.0
  %619 = vmatpush1.msra.mxu0 0.0
  %620 = vmatprep.subr.mxu0 0.0
  %621 = vmatpush1.msra.mxu0 0.0
  %622 = vmatprep.subr.mxu0 0.0
  %623 = vmatpush1.msra.mxu0 0.0
  %624 = vmatprep.subr.mxu0 0.0
  %625 = vmatpush1.msra.mxu0 0.0
  %626 = vmatprep.subr.mxu0 0.0
  %627 = vmatpush1.msra.mxu0 0.0
  %628 = vmatprep.mubr.f32.mxu0 0.0
  %629 = vmatmul.mubr.f32.gmra.mrb[0].mxu0 %v559
  %v630 = vpop.f32.mrb[0].mxu0
  %v631 = vadd.f32 %v556, %v630
  %v632 = vpop.f32.mrb[0].mxu0
  %633 = vdwg.mxu0
  %v634 = vmax.f32 %v631, 0.0
  %635 = vrot.lane.b32.xlu0 %v536, 1
  %v636 = vpop.permute.xlu0 %635
  %v638 = vsel %vm541, %v525, %v636
  %639 = vrot.lane.b32.xlu0 %v553, 107
  %v640 = vpop.permute.xlu0 %639
  %642 = vrot.lane.b32.xlu0 %v638, 127
  %v643 = vpop.permute.xlu0 %642
  %644 = vrot.lane.b32.xlu0 %v636, 127
  %v645 = vpop.permute.xlu0 %644
  %vm647 = vcmask 113664
  %v648 = vsel %vm647, %v640, 0
  %v650 = vsel %vm71, %v645, 0
  %652 = vmatprep.subr.mxu0 0.0
  %653 = vmatpush1.msra.mxu0 %v643
  %654 = vmatprep.subr.mxu0 0.0
  %655 = vmatpush1.msra.mxu0 %v650
  %656 = vmatprep.subr.mxu0 0.0
  %657 = vmatpush1.msra.mxu0 0.0
  %658 = vmatprep.subr.mxu0 0.0
  %659 = vmatpush1.msra.mxu0 0.0
  %660 = vmatprep.subr.mxu0 0.0
  %661 = vmatpush1.msra.mxu0 0.0
  %662 = vmatprep.subr.mxu0 0.0
  %663 = vmatpush1.msra.mxu0 0.0
  %664 = vmatprep.subr.mxu0 0.0
  %665 = vmatpush1.msra.mxu0 0.0
  %666 = vmatprep.subr.mxu0 0.0
  %667 = vmatpush1.msra.mxu0 0.0
  %668 = vmatprep.subr.mxu0 0.0
  %669 = vmatpush1.msra.mxu0 0.0
  %670 = vmatprep.subr.mxu0 0.0
  %671 = vmatpush1.msra.mxu0 0.0
  %672 = vmatprep.subr.mxu0 0.0
  %673 = vmatpush1.msra.mxu0 0.0
  %674 = vmatprep.subr.mxu0 0.0
  %675 = vmatpush1.msra.mxu0 0.0
  %676 = vmatprep.subr.mxu0 0.0
  %677 = vmatpush1.msra.mxu0 0.0
  %678 = vmatprep.subr.mxu0 0.0
  %679 = vmatpush1.msra.mxu0 0.0
  %680 = vmatprep.subr.mxu0 0.0
  %681 = vmatpush1.msra.mxu0 0.0
  %682 = vmatprep.subr.mxu0 0.0
  %683 = vmatpush1.msra.mxu0 0.0
  %684 = vmatprep.subr.mxu0 0.0
  %685 = vmatpush1.msra.mxu0 0.0
  %686 = vmatprep.subr.mxu0 0.0
  %687 = vmatpush1.msra.mxu0 0.0
  %688 = vmatprep.subr.mxu0 0.0
  %689 = vmatpush1.msra.mxu0 0.0
  %690 = vmatprep.subr.mxu0 0.0
  %691 = vmatpush1.msra.mxu0 0.0
  %692 = vmatprep.subr.mxu0 0.0
  %693 = vmatpush1.msra.mxu0 0.0
  %694 = vmatprep.subr.mxu0 0.0
  %695 = vmatpush1.msra.mxu0 0.0
  %696 = vmatprep.subr.mxu0 0.0
  %697 = vmatpush1.msra.mxu0 0.0
  %698 = vmatprep.subr.mxu0 0.0
  %699 = vmatpush1.msra.mxu0 0.0
  %700 = vmatprep.subr.mxu0 0.0
  %701 = vmatpush1.msra.mxu0 0.0
  %702 = vmatprep.subr.mxu0 0.0
  %703 = vmatpush1.msra.mxu0 0.0
  %704 = vmatprep.subr.mxu0 0.0
  %705 = vmatpush1.msra.mxu0 0.0
  %706 = vmatprep.subr.mxu0 0.0
  %707 = vmatpush1.msra.mxu0 0.0
  %708 = vmatprep.subr.mxu0 0.0
  %709 = vmatpush1.msra.mxu0 0.0
  %710 = vmatprep.subr.mxu0 0.0
  %711 = vmatpush1.msra.mxu0 0.0
  %712 = vmatprep.subr.mxu0 0.0
  %713 = vmatpush1.msra.mxu0 0.0
  %714 = vmatprep.subr.mxu0 0.0
  %715 = vmatpush1.msra.mxu0 0.0
  %716 = vmatprep.mubr.f32.mxu0 0.0
  %717 = vmatmul.mubr.f32.gmra.mrb[0].mxu0 %v648
  %v718 = vpop.f32.mrb[0].mxu0
  %v719 = vadd.f32 %v556, %v718
  %v720 = vpop.f32.mrb[0].mxu0
  %721 = vdwg.mxu0
  %v722 = vmax.f32 %v719, 0.0
  %724 = vrot.lane.b32.xlu0 %v634, 1
  %v725 = vpop.permute.xlu0 %724
  %v727 = vsel %vm62, 0.0, %v725
  %728 = vrot.lane.b32.xlu0 %v634, 127
  %v729 = vpop.permute.xlu0 %728
  %v731 = vsel %vm530, %v729, 0.0
  %v732 = vsel %vm530, %v722, 0.0
  %734 = vrot.lane.b32.xlu0 %v722, 1
  %v735 = vpop.permute.xlu0 %734
  %v737 = vsel %vm62, 0.0, %v735
  %v739 = vrot.slane %v737, 3
  %v742 = vrot.slane %v727, 6
  %v744 = vsel %vm561, %v634, %v739
  %vm745 = vcmask 1041408
  %v746 = vsel %vm745, %v739, %v742
  %747 = vset.pattern.permute.xlu0 30
  %748 = vperm.xlu0 %747, %v14
  %v749 = vpop.permute.xlu0 %748
  %v750 = vrot.slane %v14, 1
  %v751 = vrot.slane %v749, 1
  %v753 = vsel %vm530, %v750, 0
  %v756 = vsel %vm541, %v746, 0
  %758 = vmatprep.subr.mxu0 0.0
  %759 = vmatpush1.msra.mxu0 %v744
  %760 = vmatprep.subr.mxu0 0.0
  %761 = vmatpush1.msra.mxu0 %v756
  %762 = vmatprep.subr.mxu0 0.0
  %763 = vmatpush1.msra.mxu0 0.0
  %764 = vmatprep.subr.mxu0 0.0
  %765 = vmatpush1.msra.mxu0 0.0
  %766 = vmatprep.subr.mxu0 0.0
  %767 = vmatpush1.msra.mxu0 0.0
  %768 = vmatprep.subr.mxu0 0.0
  %769 = vmatpush1.msra.mxu0 0.0
  %770 = vmatprep.subr.mxu0 0.0
  %771 = vmatpush1.msra.mxu0 0.0
  %772 = vmatprep.subr.mxu0 0.0
  %773 = vmatpush1.msra.mxu0 0.0
  %774 = vmatprep.subr.mxu0 0.0
  %775 = vmatpush1.msra.mxu0 0.0
  %776 = vmatprep.subr.mxu0 0.0
  %777 = vmatpush1.msra.mxu0 0.0
  %778 = vmatprep.subr.mxu0 0.0
  %779 = vmatpush1.msra.mxu0 0.0
  %780 = vmatprep.subr.mxu0 0.0
  %781 = vmatpush1.msra.mxu0 0.0
  %782 = vmatprep.subr.mxu0 0.0
  %783 = vmatpush1.msra.mxu0 0.0
  %784 = vmatprep.subr.mxu0 0.0
  %785 = vmatpush1.msra.mxu0 0.0
  %786 = vmatprep.subr.mxu0 0.0
  %787 = vmatpush1.msra.mxu0 0.0
  %788 = vmatprep.subr.mxu0 0.0
  %789 = vmatpush1.msra.mxu0 0.0
  %790 = vmatprep.subr.mxu0 0.0
  %791 = vmatpush1.msra.mxu0 0.0
  %792 = vmatprep.subr.mxu0 0.0
  %793 = vmatpush1.msra.mxu0 0.0
  %794 = vmatprep.subr.mxu0 0.0
  %795 = vmatpush1.msra.mxu0 0.0
  %796 = vmatprep.subr.mxu0 0.0
  %797 = vmatpush1.msra.mxu0 0.0
  %798 = vmatprep.subr.mxu0 0.0
  %799 = vmatpush1.msra.mxu0 0.0
  %800 = vmatprep.subr.mxu0 0.0
  %801 = vmatpush1.msra.mxu0 0.0
  %802 = vmatprep.subr.mxu0 0.0
  %803 = vmatpush1.msra.mxu0 0.0
  %804 = vmatprep.subr.mxu0 0.0
  %805 = vmatpush1.msra.mxu0 0.0
  %806 = vmatprep.subr.mxu0 0.0
  %807 = vmatpush1.msra.mxu0 0.0
  %808 = vmatprep.subr.mxu0 0.0
  %809 = vmatpush1.msra.mxu0 0.0
  %810 = vmatprep.subr.mxu0 0.0
  %811 = vmatpush1.msra.mxu0 0.0
  %812 = vmatprep.subr.mxu0 0.0
  %813 = vmatpush1.msra.mxu0 0.0
  %814 = vmatprep.subr.mxu0 0.0
  %815 = vmatpush1.msra.mxu0 0.0
  %816 = vmatprep.subr.mxu0 0.0
  %817 = vmatpush1.msra.mxu0 0.0
  %818 = vmatprep.subr.mxu0 0.0
  %819 = vmatpush1.msra.mxu0 0.0
  %820 = vmatprep.subr.mxu0 0.0
  %821 = vmatpush1.msra.mxu0 0.0
  %822 = vmatprep.mubr.f32.mxu0 0.0
  %823 = vmatmul.mubr.f32.gmra.mrb[0].mxu0 %v753
  %v824 = vpop.f32.mrb[0].mxu0
  %v825 = vadd.f32 %v751, %v824
  %v826 = vpop.f32.mrb[0].mxu0
  %827 = vdwg.mxu0
  %v828 = vrot.slane %v634, 3
  %v830 = vrot.slane %v737, 6
  %v832 = vsel %vm561, %v732, %v828
  %v833 = vsel %vm745, %v828, %v830
  %834 = vrot.lane.b32.xlu0 %v750, 113
  %v835 = vpop.permute.xlu0 %834
  %v836 = vsel %vm530, %v835, 0
  %v839 = vsel %vm541, %v833, 0
  %841 = vmatprep.subr.mxu0 0.0
  %842 = vmatpush1.msra.mxu0 %v832
  %843 = vmatprep.subr.mxu0 0.0
  %844 = vmatpush1.msra.mxu0 %v839
  %845 = vmatprep.subr.mxu0 0.0
  %846 = vmatpush1.msra.mxu0 0.0
  %847 = vmatprep.subr.mxu0 0.0
  %848 = vmatpush1.msra.mxu0 0.0
  %849 = vmatprep.subr.mxu0 0.0
  %850 = vmatpush1.msra.mxu0 0.0
  %851 = vmatprep.subr.mxu0 0.0
  %852 = vmatpush1.msra.mxu0 0.0
  %853 = vmatprep.subr.mxu0 0.0
  %854 = vmatpush1.msra.mxu0 0.0
  %855 = vmatprep.subr.mxu0 0.0
  %856 = vmatpush1.msra.mxu0 0.0
  %857 = vmatprep.subr.mxu0 0.0
  %858 = vmatpush1.msra.mxu0 0.0
  %859 = vmatprep.subr.mxu0 0.0
  %860 = vmatpush1.msra.mxu0 0.0
  %861 = vmatprep.subr.mxu0 0.0
  %862 = vmatpush1.msra.mxu0 0.0
  %863 = vmatprep.subr.mxu0 0.0
  %864 = vmatpush1.msra.mxu0 0.0
  %865 = vmatprep.subr.mxu0 0.0
  %866 = vmatpush1.msra.mxu0 0.0
  %867 = vmatprep.subr.mxu0 0.0
  %868 = vmatpush1.msra.mxu0 0.0
  %869 = vmatprep.subr.mxu0 0.0
  %870 = vmatpush1.msra.mxu0 0.0
  %871 = vmatprep.subr.mxu0 0.0
  %872 = vmatpush1.msra.mxu0 0.0
  %873 = vmatprep.subr.mxu0 0.0
  %874 = vmatpush1.msra.mxu0 0.0
  %875 = vmatprep.subr.mxu0 0.0
  %876 = vmatpush1.msra.mxu0 0.0
  %877 = vmatprep.subr.mxu0 0.0
  %878 = vmatpush1.msra.mxu0 0.0
  %879 = vmatprep.subr.mxu0 0.0
  %880 = vmatpush1.msra.mxu0 0.0
  %881 = vmatprep.subr.mxu0 0.0
  %882 = vmatpush1.msra.mxu0 0.0
  %883 = vmatprep.subr.mxu0 0.0
  %884 = vmatpush1.msra.mxu0 0.0
  %885 = vmatprep.subr.mxu0 0.0
  %886 = vmatpush1.msra.mxu0 0.0
  %887 = vmatprep.subr.mxu0 0.0
  %888 = vmatpush1.msra.mxu0 0.0
  %889 = vmatprep.subr.mxu0 0.0
  %890 = vmatpush1.msra.mxu0 0.0
  %891 = vmatprep.subr.mxu0 0.0
  %892 = vmatpush1.msra.mxu0 0.0
  %893 = vmatprep.subr.mxu0 0.0
  %894 = vmatpush1.msra.mxu0 0.0
  %895 = vmatprep.subr.mxu0 0.0
  %896 = vmatpush1.msra.mxu0 0.0
  %897 = vmatprep.subr.mxu0 0.0
  %898 = vmatpush1.msra.mxu0 0.0
  %899 = vmatprep.subr.mxu0 0.0
  %900 = vmatpush1.msra.mxu0 0.0
  %901 = vmatprep.subr.mxu0 0.0
  %902 = vmatpush1.msra.mxu0 0.0
  %903 = vmatprep.subr.mxu0 0.0
  %904 = vmatpush1.msra.mxu0 0.0
  %905 = vmatprep.mubr.f32.mxu0 0.0
  %906 = vmatmul.mubr.f32.gmra.mrb[0].mxu0 %v836
  %v907 = vpop.f32.mrb[0].mxu0
  %v908 = vadd.f32 %v751, %v907
  %v909 = vpop.f32.mrb[0].mxu0
  %910 = vdwg.mxu0
  %911 = vmatprep.subr.mxu0 0.0
  %912 = vmatpush1.msra.mxu0 %v832
  %913 = vmatprep.subr.mxu0 0.0
  %914 = vmatpush1.msra.mxu0 %v839
  %915 = vmatprep.subr.mxu0 0.0
  %916 = vmatpush1.msra.mxu0 0.0
  %917 = vmatprep.subr.mxu0 0.0
  %918 = vmatpush1.msra.mxu0 0.0
  %919 = vmatprep.subr.mxu0 0.0
  %920 = vmatpush1.msra.mxu0 0.0
  %921 = vmatprep.subr.mxu0 0.0
  %922 = vmatpush1.msra.mxu0 0.0
  %923 = vmatprep.subr.mxu0 0.0
  %924 = vmatpush1.msra.mxu0 0.0
  %925 = vmatprep.subr.mxu0 0.0
  %926 = vmatpush1.msra.mxu0 0.0
  %927 = vmatprep.subr.mxu0 0.0
  %928 = vmatpush1.msra.mxu0 0.0
  %929 = vmatprep.subr.mxu0 0.0
  %930 = vmatpush1.msra.mxu0 0.0
  %931 = vmatprep.subr.mxu0 0.0
  %932 = vmatpush1.msra.mxu0 0.0
  %933 = vmatprep.subr.mxu0 0.0
  %934 = vmatpush1.msra.mxu0 0.0
  %935 = vmatprep.subr.mxu0 0.0
  %936 = vmatpush1.msra.mxu0 0.0
  %937 = vmatprep.subr.mxu0 0.0
  %938 = vmatpush1.msra.mxu0 0.0
  %939 = vmatprep.subr.mxu0 0.0
  %940 = vmatpush1.msra.mxu0 0.0
  %941 = vmatprep.subr.mxu0 0.0
  %942 = vmatpush1.msra.mxu0 0.0
  %943 = vmatprep.subr.mxu0 0.0
  %944 = vmatpush1.msra.mxu0 0.0
  %945 = vmatprep.subr.mxu0 0.0
  %946 = vmatpush1.msra.mxu0 0.0
  %947 = vmatprep.subr.mxu0 0.0
  %948 = vmatpush1.msra.mxu0 0.0
  %949 = vmatprep.subr.mxu0 0.0
  %950 = vmatpush1.msra.mxu0 0.0
  %951 = vmatprep.subr.mxu0 0.0
  %952 = vmatpush1.msra.mxu0 0.0
  %953 = vmatprep.subr.mxu0 0.0
  %954 = vmatpush1.msra.mxu0 0.0
  %955 = vmatprep.subr.mxu0 0.0
  %956 = vmatpush1.msra.mxu0 0.0
  %957 = vmatprep.subr.mxu0 0.0
  %958 = vmatpush1.msra.mxu0 0.0
  %959 = vmatprep.subr.mxu0 0.0
  %960 = vmatpush1.msra.mxu0 0.0
  %961 = vmatprep.subr.mxu0 0.0
  %962 = vmatpush1.msra.mxu0 0.0
  %963 = vmatprep.subr.mxu0 0.0
  %964 = vmatpush1.msra.mxu0 0.0
  %965 = vmatprep.subr.mxu0 0.0
  %966 = vmatpush1.msra.mxu0 0.0
  %967 = vmatprep.subr.mxu0 0.0
  %968 = vmatpush1.msra.mxu0 0.0
  %969 = vmatprep.subr.mxu0 0.0
  %970 = vmatpush1.msra.mxu0 0.0
  %971 = vmatprep.subr.mxu0 0.0
  %972 = vmatpush1.msra.mxu0 0.0
  %973 = vmatprep.subr.mxu0 0.0
  %974 = vmatpush1.msra.mxu0 0.0
  %975 = vmatprep.mubr.f32.mxu0 0.0
  %976 = vmatmul.mubr.f32.gmra.mrb[0].mxu0 %v753
  %v977 = vpop.f32.mrb[0].mxu0
  %v978 = vadd.f32 %v751, %v977
  %v979 = vpop.f32.mrb[0].mxu0
  %980 = vdwg.mxu0
  %v982 = vrot.slane %v732, 3
  %v984 = vrot.slane %v634, 6
  %v986 = vsel %vm561, %v731, %v982
  %v987 = vsel %vm745, %v982, %v984
  %v989 = vsel %vm541, %v987, 0
  %991 = vmatprep.subr.mxu0 0.0
  %992 = vmatpush1.msra.mxu0 %v986
  %993 = vmatprep.subr.mxu0 0.0
  %994 = vmatpush1.msra.mxu0 %v989
  %995 = vmatprep.subr.mxu0 0.0
  %996 = vmatpush1.msra.mxu0 0.0
  %997 = vmatprep.subr.mxu0 0.0
  %998 = vmatpush1.msra.mxu0 0.0
  %999 = vmatprep.subr.mxu0 0.0
  %1000 = vmatpush1.msra.mxu0 0.0
  %1001 = vmatprep.subr.mxu0 0.0
  %1002 = vmatpush1.msra.mxu0 0.0
  %1003 = vmatprep.subr.mxu0 0.0
  %1004 = vmatpush1.msra.mxu0 0.0
  %1005 = vmatprep.subr.mxu0 0.0
  %1006 = vmatpush1.msra.mxu0 0.0
  %1007 = vmatprep.subr.mxu0 0.0
  %1008 = vmatpush1.msra.mxu0 0.0
  %1009 = vmatprep.subr.mxu0 0.0
  %1010 = vmatpush1.msra.mxu0 0.0
  %1011 = vmatprep.subr.mxu0 0.0
  %1012 = vmatpush1.msra.mxu0 0.0
  %1013 = vmatprep.subr.mxu0 0.0
  %1014 = vmatpush1.msra.mxu0 0.0
  %1015 = vmatprep.subr.mxu0 0.0
  %1016 = vmatpush1.msra.mxu0 0.0
  %1017 = vmatprep.subr.mxu0 0.0
  %1018 = vmatpush1.msra.mxu0 0.0
  %1019 = vmatprep.subr.mxu0 0.0
  %1020 = vmatpush1.msra.mxu0 0.0
  %1021 = vmatprep.subr.mxu0 0.0
  %1022 = vmatpush1.msra.mxu0 0.0
  %1023 = vmatprep.subr.mxu0 0.0
  %1024 = vmatpush1.msra.mxu0 0.0
  %1025 = vmatprep.subr.mxu0 0.0
  %1026 = vmatpush1.msra.mxu0 0.0
  %1027 = vmatprep.subr.mxu0 0.0
  %1028 = vmatpush1.msra.mxu0 0.0
  %1029 = vmatprep.subr.mxu0 0.0
  %1030 = vmatpush1.msra.mxu0 0.0
  %1031 = vmatprep.subr.mxu0 0.0
  %1032 = vmatpush1.msra.mxu0 0.0
  %1033 = vmatprep.subr.mxu0 0.0
  %1034 = vmatpush1.msra.mxu0 0.0
  %1035 = vmatprep.subr.mxu0 0.0
  %1036 = vmatpush1.msra.mxu0 0.0
  %1037 = vmatprep.subr.mxu0 0.0
  %1038 = vmatpush1.msra.mxu0 0.0
  %1039 = vmatprep.subr.mxu0 0.0
  %1040 = vmatpush1.msra.mxu0 0.0
  %1041 = vmatprep.subr.mxu0 0.0
  %1042 = vmatpush1.msra.mxu0 0.0
  %1043 = vmatprep.subr.mxu0 0.0
  %1044 = vmatpush1.msra.mxu0 0.0
  %1045 = vmatprep.subr.mxu0 0.0
  %1046 = vmatpush1.msra.mxu0 0.0
  %1047 = vmatprep.subr.mxu0 0.0
  %1048 = vmatpush1.msra.mxu0 0.0
  %1049 = vmatprep.subr.mxu0 0.0
  %1050 = vmatpush1.msra.mxu0 0.0
  %1051 = vmatprep.subr.mxu0 0.0
  %1052 = vmatpush1.msra.mxu0 0.0
  %1053 = vmatprep.subr.mxu0 0.0
  %1054 = vmatpush1.msra.mxu0 0.0
  %1055 = vmatprep.mubr.f32.mxu0 0.0
  %1056 = vmatmul.mubr.f32.gmra.mrb[0].mxu0 %v836
  %v1057 = vpop.f32.mrb[0].mxu0
  %v1058 = vadd.f32 %v751, %v1057
  %v1059 = vpop.f32.mrb[0].mxu0
  %1060 = vdwg.mxu0
  %vm1061 = vcmask 130048
  %v1063 = vsel %vm1061, %v908, 0
  %1065 = vmatprep.subr.mxu0 0.0
  %1066 = vmatpush1.msra.mxu0 %v34
  %1067 = vmatprep.subr.mxu0 0.0
  %1068 = vmatpush1.msra.mxu0 %v35
  %1069 = vmatprep.subr.mxu0 0.0
  %1070 = vmatpush1.msra.mxu0 0.0
  %1071 = vmatprep.subr.mxu0 0.0
  %1072 = vmatpush1.msra.mxu0 0.0
  %1073 = vmatprep.subr.mxu0 0.0
  %1074 = vmatpush1.msra.mxu0 0.0
  %1075 = vmatprep.subr.mxu0 0.0
  %1076 = vmatpush1.msra.mxu0 0.0
  %1077 = vmatprep.subr.mxu0 0.0
  %1078 = vmatpush1.msra.mxu0 0.0
  %1079 = vmatprep.subr.mxu0 0.0
  %1080 = vmatpush1.msra.mxu0 0.0
  %1081 = vmatprep.subr.mxu0 0.0
  %1082 = vmatpush1.msra.mxu0 0.0
  %1083 = vmatprep.subr.mxu0 0.0
  %1084 = vmatpush1.msra.mxu0 0.0
  %1085 = vmatprep.subr.mxu0 0.0
  %1086 = vmatpush1.msra.mxu0 0.0
  %1087 = vmatprep.subr.mxu0 0.0
  %1088 = vmatpush1.msra.mxu0 0.0
  %1089 = vmatprep.subr.mxu0 0.0
  %1090 = vmatpush1.msra.mxu0 0.0
  %1091 = vmatprep.subr.mxu0 0.0
  %1092 = vmatpush1.msra.mxu0 0.0
  %1093 = vmatprep.subr.mxu0 0.0
  %1094 = vmatpush1.msra.mxu0 0.0
  %1095 = vmatprep.subr.mxu0 0.0
  %1096 = vmatpush1.msra.mxu0 0.0
  %1097 = vmatprep.subr.mxu0 0.0
  %1098 = vmatpush1.msra.mxu0 0.0
  %1099 = vmatprep.subr.mxu0 0.0
  %1100 = vmatpush1.msra.mxu0 0.0
  %1101 = vmatprep.subr.mxu0 0.0
  %1102 = vmatpush1.msra.mxu0 0.0
  %1103 = vmatprep.subr.mxu0 0.0
  %1104 = vmatpush1.msra.mxu0 0.0
  %1105 = vmatprep.subr.mxu0 0.0
  %1106 = vmatpush1.msra.mxu0 0.0
  %1107 = vmatprep.subr.mxu0 0.0
  %1108 = vmatpush1.msra.mxu0 0.0
  %1109 = vmatprep.subr.mxu0 0.0
  %1110 = vmatpush1.msra.mxu0 0.0
  %1111 = vmatprep.subr.mxu0 0.0
  %1112 = vmatpush1.msra.mxu0 0.0
  %1113 = vmatprep.subr.mxu0 0.0
  %1114 = vmatpush1.msra.mxu0 0.0
  %1115 = vmatprep.subr.mxu0 0.0
  %1116 = vmatpush1.msra.mxu0 0.0
  %1117 = vmatprep.subr.mxu0 0.0
  %1118 = vmatpush1.msra.mxu0 0.0
  %1119 = vmatprep.subr.mxu0 0.0
  %1120 = vmatpush1.msra.mxu0 0.0
  %1121 = vmatprep.subr.mxu0 0.0
  %1122 = vmatpush1.msra.mxu0 0.0
  %1123 = vmatprep.subr.mxu0 0.0
  %1124 = vmatpush1.msra.mxu0 0.0
  %1125 = vmatprep.subr.mxu0 0.0
  %1126 = vmatpush1.msra.mxu0 0.0
  %1127 = vmatprep.subr.mxu0 0.0
  %1128 = vmatpush1.msra.mxu0 0.0
  %1129 = vmatprep.mubr.f32.mxu0 0.0
  %1130 = vmatmul.mubr.f32.gmra.mrb[0].mxu0 %v1063
  %v1131 = vpop.f32.mrb[0].mxu0
  %v1132 = vadd.f32 0.0, %v1131
  %v1133 = vpop.f32.mrb[0].mxu0
  %1134 = vdwg.mxu0
  %v1136 = vsel %vm1061, %v825, 0
  %1138 = vmatprep.subr.mxu0 0.0
  %1139 = vmatpush1.msra.mxu0 %v26
  %1140 = vmatprep.subr.mxu0 0.0
  %1141 = vmatpush1.msra.mxu0 %v27
  %1142 = vmatprep.subr.mxu0 0.0
  %1143 = vmatpush1.msra.mxu0 0.0
  %1144 = vmatprep.subr.mxu0 0.0
  %1145 = vmatpush1.msra.mxu0 0.0
  %1146 = vmatprep.subr.mxu0 0.0
  %1147 = vmatpush1.msra.mxu0 0.0
  %1148 = vmatprep.subr.mxu0 0.0
  %1149 = vmatpush1.msra.mxu0 0.0
  %1150 = vmatprep.subr.mxu0 0.0
  %1151 = vmatpush1.msra.mxu0 0.0
  %1152 = vmatprep.subr.mxu0 0.0
  %1153 = vmatpush1.msra.mxu0 0.0
  %1154 = vmatprep.subr.mxu0 0.0
  %1155 = vmatpush1.msra.mxu0 0.0
  %1156 = vmatprep.subr.mxu0 0.0
  %1157 = vmatpush1.msra.mxu0 0.0
  %1158 = vmatprep.subr.mxu0 0.0
  %1159 = vmatpush1.msra.mxu0 0.0
  %1160 = vmatprep.subr.mxu0 0.0
  %1161 = vmatpush1.msra.mxu0 0.0
  %1162 = vmatprep.subr.mxu0 0.0
  %1163 = vmatpush1.msra.mxu0 0.0
  %1164 = vmatprep.subr.mxu0 0.0
  %1165 = vmatpush1.msra.mxu0 0.0
  %1166 = vmatprep.subr.mxu0 0.0
  %1167 = vmatpush1.msra.mxu0 0.0
  %1168 = vmatprep.subr.mxu0 0.0
  %1169 = vmatpush1.msra.mxu0 0.0
  %1170 = vmatprep.subr.mxu0 0.0
  %1171 = vmatpush1.msra.mxu0 0.0
  %1172 = vmatprep.subr.mxu0 0.0
  %1173 = vmatpush1.msra.mxu0 0.0
  %1174 = vmatprep.subr.mxu0 0.0
  %1175 = vmatpush1.msra.mxu0 0.0
  %1176 = vmatprep.subr.mxu0 0.0
  %1177 = vmatpush1.msra.mxu0 0.0
  %1178 = vmatprep.subr.mxu0 0.0
  %1179 = vmatpush1.msra.mxu0 0.0
  %1180 = vmatprep.subr.mxu0 0.0
  %1181 = vmatpush1.msra.mxu0 0.0
  %1182 = vmatprep.subr.mxu0 0.0
  %1183 = vmatpush1.msra.mxu0 0.0
  %1184 = vmatprep.subr.mxu0 0.0
  %1185 = vmatpush1.msra.mxu0 0.0
  %1186 = vmatprep.subr.mxu0 0.0
  %1187 = vmatpush1.msra.mxu0 0.0
  %1188 = vmatprep.subr.mxu0 0.0
  %1189 = vmatpush1.msra.mxu0 0.0
  %1190 = vmatprep.subr.mxu0 0.0
  %1191 = vmatpush1.msra.mxu0 0.0
  %1192 = vmatprep.subr.mxu0 0.0
  %1193 = vmatpush1.msra.mxu0 0.0
  %1194 = vmatprep.subr.mxu0 0.0
  %1195 = vmatpush1.msra.mxu0 0.0
  %1196 = vmatprep.subr.mxu0 0.0
  %1197 = vmatpush1.msra.mxu0 0.0
  %1198 = vmatprep.subr.mxu0 0.0
  %1199 = vmatpush1.msra.mxu0 0.0
  %1200 = vmatprep.subr.mxu0 0.0
  %1201 = vmatpush1.msra.mxu0 0.0
  %1202 = vmatprep.mubr.f32.mxu0 0.0
  %1203 = vmatmul.mubr.f32.gmra.mrb[0].mxu0 %v1136
  %v1204 = vpop.f32.mrb[0].mxu0
  %v1205 = vadd.f32 %v1132, %v1204
  %v1206 = vpop.f32.mrb[0].mxu0
  %1207 = vdwg.mxu0
  %v1209 = vsel %vm1061, %v978, 0
  %1211 = vmatprep.subr.mxu0 0.0
  %1212 = vmatpush1.msra.mxu0 %v42
  %1213 = vmatprep.subr.mxu0 0.0
  %1214 = vmatpush1.msra.mxu0 %v43
  %1215 = vmatprep.subr.mxu0 0.0
  %1216 = vmatpush1.msra.mxu0 0.0
  %1217 = vmatprep.subr.mxu0 0.0
  %1218 = vmatpush1.msra.mxu0 0.0
  %1219 = vmatprep.subr.mxu0 0.0
  %1220 = vmatpush1.msra.mxu0 0.0
  %1221 = vmatprep.subr.mxu0 0.0
  %1222 = vmatpush1.msra.mxu0 0.0
  %1223 = vmatprep.subr.mxu0 0.0
  %1224 = vmatpush1.msra.mxu0 0.0
  %1225 = vmatprep.subr.mxu0 0.0
  %1226 = vmatpush1.msra.mxu0 0.0
  %1227 = vmatprep.subr.mxu0 0.0
  %1228 = vmatpush1.msra.mxu0 0.0
  %1229 = vmatprep.subr.mxu0 0.0
  %1230 = vmatpush1.msra.mxu0 0.0
  %1231 = vmatprep.subr.mxu0 0.0
  %1232 = vmatpush1.msra.mxu0 0.0
  %1233 = vmatprep.subr.mxu0 0.0
  %1234 = vmatpush1.msra.mxu0 0.0
  %1235 = vmatprep.subr.mxu0 0.0
  %1236 = vmatpush1.msra.mxu0 0.0
  %1237 = vmatprep.subr.mxu0 0.0
  %1238 = vmatpush1.msra.mxu0 0.0
  %1239 = vmatprep.subr.mxu0 0.0
  %1240 = vmatpush1.msra.mxu0 0.0
  %1241 = vmatprep.subr.mxu0 0.0
  %1242 = vmatpush1.msra.mxu0 0.0
  %1243 = vmatprep.subr.mxu0 0.0
  %1244 = vmatpush1.msra.mxu0 0.0
  %1245 = vmatprep.subr.mxu0 0.0
  %1246 = vmatpush1.msra.mxu0 0.0
  %1247 = vmatprep.subr.mxu0 0.0
  %1248 = vmatpush1.msra.mxu0 0.0
  %1249 = vmatprep.subr.mxu0 0.0
  %1250 = vmatpush1.msra.mxu0 0.0
  %1251 = vmatprep.subr.mxu0 0.0
  %1252 = vmatpush1.msra.mxu0 0.0
  %1253 = vmatprep.subr.mxu0 0.0
  %1254 = vmatpush1.msra.mxu0 0.0
  %1255 = vmatprep.subr.mxu0 0.0
  %1256 = vmatpush1.msra.mxu0 0.0
  %1257 = vmatprep.subr.mxu0 0.0
  %1258 = vmatpush1.msra.mxu0 0.0
  %1259 = vmatprep.subr.mxu0 0.0
  %1260 = vmatpush1.msra.mxu0 0.0
  %1261 = vmatprep.subr.mxu0 0.0
  %1262 = vmatpush1.msra.mxu0 0.0
  %1263 = vmatprep.subr.mxu0 0.0
  %1264 = vmatpush1.msra.mxu0 0.0
  %1265 = vmatprep.subr.mxu0 0.0
  %1266 = vmatpush1.msra.mxu0 0.0
  %1267 = vmatprep.subr.mxu0 0.0
  %1268 = vmatpush1.msra.mxu0 0.0
  %1269 = vmatprep.subr.mxu0 0.0
  %1270 = vmatpush1.msra.mxu0 0.0
  %1271 = vmatprep.subr.mxu0 0.0
  %1272 = vmatpush1.msra.mxu0 0.0
  %1273 = vmatprep.subr.mxu0 0.0
  %1274 = vmatpush1.msra.mxu0 0.0
  %1275 = vmatprep.mubr.f32.mxu0 0.0
  %1276 = vmatmul.mubr.f32.gmra.mrb[0].mxu0 %v1209
  %v1277 = vpop.f32.mrb[0].mxu0
  %v1278 = vadd.f32 0.0, %v1277
  %v1279 = vpop.f32.mrb[0].mxu0
  %1280 = vdwg.mxu0
  %v1281 = vadd.f32 %v1205, %v1278
  %v1283 = vsel %vm1061, %v1058, 0
  %1285 = vmatprep.subr.mxu0 0.0
  %1286 = vmatpush1.msra.mxu0 %v50
  %1287 = vmatprep.subr.mxu0 0.0
  %1288 = vmatpush1.msra.mxu0 %v51
  %1289 = vmatprep.subr.mxu0 0.0
  %1290 = vmatpush1.msra.mxu0 0.0
  %1291 = vmatprep.subr.mxu0 0.0
  %1292 = vmatpush1.msra.mxu0 0.0
  %1293 = vmatprep.subr.mxu0 0.0
  %1294 = vmatpush1.msra.mxu0 0.0
  %1295 = vmatprep.subr.mxu0 0.0
  %1296 = vmatpush1.msra.mxu0 0.0
  %1297 = vmatprep.subr.mxu0 0.0
  %1298 = vmatpush1.msra.mxu0 0.0
  %1299 = vmatprep.subr.mxu0 0.0
  %1300 = vmatpush1.msra.mxu0 0.0
  %1301 = vmatprep.subr.mxu0 0.0
  %1302 = vmatpush1.msra.mxu0 0.0
  %1303 = vmatprep.subr.mxu0 0.0
  %1304 = vmatpush1.msra.mxu0 0.0
  %1305 = vmatprep.subr.mxu0 0.0
  %1306 = vmatpush1.msra.mxu0 0.0
  %1307 = vmatprep.subr.mxu0 0.0
  %1308 = vmatpush1.msra.mxu0 0.0
  %1309 = vmatprep.subr.mxu0 0.0
  %1310 = vmatpush1.msra.mxu0 0.0
  %1311 = vmatprep.subr.mxu0 0.0
  %1312 = vmatpush1.msra.mxu0 0.0
  %1313 = vmatprep.subr.mxu0 0.0
  %1314 = vmatpush1.msra.mxu0 0.0
  %1315 = vmatprep.subr.mxu0 0.0
  %1316 = vmatpush1.msra.mxu0 0.0
  %1317 = vmatprep.subr.mxu0 0.0
  %1318 = vmatpush1.msra.mxu0 0.0
  %1319 = vmatprep.subr.mxu0 0.0
  %1320 = vmatpush1.msra.mxu0 0.0
  %1321 = vmatprep.subr.mxu0 0.0
  %1322 = vmatpush1.msra.mxu0 0.0
  %1323 = vmatprep.subr.mxu0 0.0
  %1324 = vmatpush1.msra.mxu0 0.0
  %1325 = vmatprep.subr.mxu0 0.0
  %1326 = vmatpush1.msra.mxu0 0.0
  %1327 = vmatprep.subr.mxu0 0.0
  %1328 = vmatpush1.msra.mxu0 0.0
  %1329 = vmatprep.subr.mxu0 0.0
  %1330 = vmatpush1.msra.mxu0 0.0
  %1331 = vmatprep.subr.mxu0 0.0
  %1332 = vmatpush1.msra.mxu0 0.0
  %1333 = vmatprep.subr.mxu0 0.0
  %1334 = vmatpush1.msra.mxu0 0.0
  %1335 = vmatprep.subr.mxu0 0.0
  %1336 = vmatpush1.msra.mxu0 0.0
  %1337 = vmatprep.subr.mxu0 0.0
  %1338 = vmatpush1.msra.mxu0 0.0
  %1339 = vmatprep.subr.mxu0 0.0
  %1340 = vmatpush1.msra.mxu0 0.0
  %1341 = vmatprep.subr.mxu0 0.0
  %1342 = vmatpush1.msra.mxu0 0.0
  %1343 = vmatprep.subr.mxu0 0.0
  %1344 = vmatpush1.msra.mxu0 0.0
  %1345 = vmatprep.subr.mxu0 0.0
  %1346 = vmatpush1.msra.mxu0 0.0
  %1347 = vmatprep.subr.mxu0 0.0
  %1348 = vmatpush1.msra.mxu0 0.0
  %1349 = vmatprep.mubr.f32.mxu0 0.0
  %1350 = vmatmul.mubr.f32.gmra.mrb[0].mxu0 %v1283
  %v1351 = vpop.f32.mrb[0].mxu0
  %v1352 = vadd.f32 0.0, %v1351
  %v1353 = vpop.f32.mrb[0].mxu0
  %1354 = vdwg.mxu0
  %v1355 = vadd.f32 %v1281, %v1352
  %s1356 = scalar_lea.vmem %s0, 4
  %v1357 = vld [vmem:[%s1356] sm:$0x7]
  %1359 = vrot.lane.b32.xlu0 %v1357, 2
  %v1360 = vpop.permute.xlu0 %1359
  %v1362 = vsel %vm57, 0.0, %v1360
  %1363 = vrot.lane.b32.xlu0 %v1357, 1
  %v1364 = vpop.permute.xlu0 %1363
  %v1366 = vsel %vm62, 0.0, %v1364
  %v1368 = vrot.slane %v1366, 5
  %v1370 = vrot.slane %v1357, 2
  %v1372 = vsel %vm69, %v1362, %v1368
  %v1373 = vsel %vm71, %v1372, %v1370
  %v1374 = vsel %vm81, %v1370, 0
  %1376 = vmatprep.subr.mxu0 0.0
  %1377 = vmatpush1.msra.mxu0 %v1373
  %1378 = vmatprep.subr.mxu0 0.0
  %1379 = vmatpush1.msra.mxu0 %v1374
  %1380 = vmatprep.subr.mxu0 0.0
  %1381 = vmatpush1.msra.mxu0 0.0
  %1382 = vmatprep.subr.mxu0 0.0
  %1383 = vmatpush1.msra.mxu0 0.0
  %1384 = vmatprep.subr.mxu0 0.0
  %1385 = vmatpush1.msra.mxu0 0.0
  %1386 = vmatprep.subr.mxu0 0.0
  %1387 = vmatpush1.msra.mxu0 0.0
  %1388 = vmatprep.subr.mxu0 0.0
  %1389 = vmatpush1.msra.mxu0 0.0
  %1390 = vmatprep.subr.mxu0 0.0
  %1391 = vmatpush1.msra.mxu0 0.0
  %1392 = vmatprep.subr.mxu0 0.0
  %1393 = vmatpush1.msra.mxu0 0.0
  %1394 = vmatprep.subr.mxu0 0.0
  %1395 = vmatpush1.msra.mxu0 0.0
  %1396 = vmatprep.subr.mxu0 0.0
  %1397 = vmatpush1.msra.mxu0 0.0
  %1398 = vmatprep.subr.mxu0 0.0
  %1399 = vmatpush1.msra.mxu0 0.0
  %1400 = vmatprep.subr.mxu0 0.0
  %1401 = vmatpush1.msra.mxu0 0.0
  %1402 = vmatprep.subr.mxu0 0.0
  %1403 = vmatpush1.msra.mxu0 0.0
  %1404 = vmatprep.subr.mxu0 0.0
  %1405 = vmatpush1.msra.mxu0 0.0
  %1406 = vmatprep.subr.mxu0 0.0
  %1407 = vmatpush1.msra.mxu0 0.0
  %1408 = vmatprep.subr.mxu0 0.0
  %1409 = vmatpush1.msra.mxu0 0.0
  %1410 = vmatprep.subr.mxu0 0.0
  %1411 = vmatpush1.msra.mxu0 0.0
  %1412 = vmatprep.subr.mxu0 0.0
  %1413 = vmatpush1.msra.mxu0 0.0
  %1414 = vmatprep.subr.mxu0 0.0
  %1415 = vmatpush1.msra.mxu0 0.0
  %1416 = vmatprep.subr.mxu0 0.0
  %1417 = vmatpush1.msra.mxu0 0.0
  %1418 = vmatprep.subr.mxu0 0.0
  %1419 = vmatpush1.msra.mxu0 0.0
  %1420 = vmatprep.subr.mxu0 0.0
  %1421 = vmatpush1.msra.mxu0 0.0
  %1422 = vmatprep.subr.mxu0 0.0
  %1423 = vmatpush1.msra.mxu0 0.0
  %1424 = vmatprep.subr.mxu0 0.0
  %1425 = vmatpush1.msra.mxu0 0.0
  %1426 = vmatprep.subr.mxu0 0.0
  %1427 = vmatpush1.msra.mxu0 0.0
  %1428 = vmatprep.subr.mxu0 0.0
  %1429 = vmatpush1.msra.mxu0 0.0
  %1430 = vmatprep.subr.mxu0 0.0
  %1431 = vmatpush1.msra.mxu0 0.0
  %1432 = vmatprep.subr.mxu0 0.0
  %1433 = vmatpush1.msra.mxu0 0.0
  %1434 = vmatprep.subr.mxu0 0.0
  %1435 = vmatpush1.msra.mxu0 0.0
  %1436 = vmatprep.subr.mxu0 0.0
  %1437 = vmatpush1.msra.mxu0 0.0
  %1438 = vmatprep.subr.mxu0 0.0
  %1439 = vmatpush1.msra.mxu0 0.0
  %1440 = vmatprep.mubr.f32.mxu0 0.0
  %1441 = vmatmul.mubr.f32.gmra.mrb[0].mxu0 %v79
  %v1442 = vpop.f32.mrb[0].mxu0
  %v1443 = vadd.f32 %v76, %v1442
  %v1444 = vpop.f32.mrb[0].mxu0
  %1445 = vdwg.mxu0
  %v1446 = vmax.f32 %v1443, 0.0
  %1448 = vrot.lane.b32.xlu0 %v1446, 2
  %v1449 = vpop.permute.xlu0 %1448
  %v1451 = vsel %vm57, 0.0, %v1449
  %1452 = vrot.lane.b32.xlu0 %v1446, 1
  %v1453 = vpop.permute.xlu0 %1452
  %v1455 = vsel %vm62, 0.0, %v1453
  %v1457 = vrot.slane %v1455, 4
  %v1459 = vsel %vm167, %v1451, %v1457
  %v1460 = vsel %vm167, %v1446, 0
  %1462 = vmatprep.subr.mxu0 0.0
  %1463 = vmatpush1.msra.mxu0 %v1459
  %1464 = vmatprep.subr.mxu0 0.0
  %1465 = vmatpush1.msra.mxu0 %v1460
  %1466 = vmatprep.subr.mxu0 0.0
  %1467 = vmatpush1.msra.mxu0 0.0
  %1468 = vmatprep.subr.mxu0 0.0
  %1469 = vmatpush1.msra.mxu0 0.0
  %1470 = vmatprep.subr.mxu0 0.0
  %1471 = vmatpush1.msra.mxu0 0.0
  %1472 = vmatprep.subr.mxu0 0.0
  %1473 = vmatpush1.msra.mxu0 0.0
  %1474 = vmatprep.subr.mxu0 0.0
  %1475 = vmatpush1.msra.mxu0 0.0
  %1476 = vmatprep.subr.mxu0 0.0
  %1477 = vmatpush1.msra.mxu0 0.0
  %1478 = vmatprep.subr.mxu0 0.0
  %1479 = vmatpush1.msra.mxu0 0.0
  %1480 = vmatprep.subr.mxu0 0.0
  %1481 = vmatpush1.msra.mxu0 0.0
  %1482 = vmatprep.subr.mxu0 0.0
  %1483 = vmatpush1.msra.mxu0 0.0
  %1484 = vmatprep.subr.mxu0 0.0
  %1485 = vmatpush1.msra.mxu0 0.0
  %1486 = vmatprep.subr.mxu0 0.0
  %1487 = vmatpush1.msra.mxu0 0.0
  %1488 = vmatprep.subr.mxu0 0.0
  %1489 = vmatpush1.msra.mxu0 0.0
  %1490 = vmatprep.subr.mxu0 0.0
  %1491 = vmatpush1.msra.mxu0 0.0
  %1492 = vmatprep.subr.mxu0 0.0
  %1493 = vmatpush1.msra.mxu0 0.0
  %1494 = vmatprep.subr.mxu0 0.0
  %1495 = vmatpush1.msra.mxu0 0.0
  %1496 = vmatprep.subr.mxu0 0.0
  %1497 = vmatpush1.msra.mxu0 0.0
  %1498 = vmatprep.subr.mxu0 0.0
  %1499 = vmatpush1.msra.mxu0 0.0
  %1500 = vmatprep.subr.mxu0 0.0
  %1501 = vmatpush1.msra.mxu0 0.0
  %1502 = vmatprep.subr.mxu0 0.0
  %1503 = vmatpush1.msra.mxu0 0.0
  %1504 = vmatprep.subr.mxu0 0.0
  %1505 = vmatpush1.msra.mxu0 0.0
  %1506 = vmatprep.subr.mxu0 0.0
  %1507 = vmatpush1.msra.mxu0 0.0
  %1508 = vmatprep.subr.mxu0 0.0
  %1509 = vmatpush1.msra.mxu0 0.0
  %1510 = vmatprep.subr.mxu0 0.0
  %1511 = vmatpush1.msra.mxu0 0.0
  %1512 = vmatprep.subr.mxu0 0.0
  %1513 = vmatpush1.msra.mxu0 0.0
  %1514 = vmatprep.subr.mxu0 0.0
  %1515 = vmatpush1.msra.mxu0 0.0
  %1516 = vmatprep.subr.mxu0 0.0
  %1517 = vmatpush1.msra.mxu0 0.0
  %1518 = vmatprep.subr.mxu0 0.0
  %1519 = vmatpush1.msra.mxu0 0.0
  %1520 = vmatprep.subr.mxu0 0.0
  %1521 = vmatpush1.msra.mxu0 0.0
  %1522 = vmatprep.subr.mxu0 0.0
  %1523 = vmatpush1.msra.mxu0 0.0
  %1524 = vmatprep.subr.mxu0 0.0
  %1525 = vmatpush1.msra.mxu0 0.0
  %1526 = vmatprep.mubr.f32.mxu0 0.0
  %1527 = vmatmul.mubr.f32.gmra.mrb[0].mxu0 %v176
  %v1528 = vpop.f32.mrb[0].mxu0
  %v1529 = vadd.f32 %v173, %v1528
  %v1530 = vpop.f32.mrb[0].mxu0
  %1531 = vdwg.mxu0
  %v1532 = vmax.f32 %v1529, 0.0
  %v1533 = vsel %vm69, %v1357, 0
  %1535 = vmatprep.subr.mxu0 0.0
  %1536 = vmatpush1.msra.mxu0 %v1533
  %1537 = vmatprep.subr.mxu0 0.0
  %1538 = vmatpush1.msra.mxu0 0.0
  %1539 = vmatprep.subr.mxu0 0.0
  %1540 = vmatpush1.msra.mxu0 0.0
  %1541 = vmatprep.subr.mxu0 0.0
  %1542 = vmatpush1.msra.mxu0 0.0
  %1543 = vmatprep.subr.mxu0 0.0
  %1544 = vmatpush1.msra.mxu0 0.0
  %1545 = vmatprep.subr.mxu0 0.0
  %1546 = vmatpush1.msra.mxu0 0.0
  %1547 = vmatprep.subr.mxu0 0.0
  %1548 = vmatpush1.msra.mxu0 0.0
  %1549 = vmatprep.subr.mxu0 0.0
  %1550 = vmatpush1.msra.mxu0 0.0
  %1551 = vmatprep.subr.mxu0 0.0
  %1552 = vmatpush1.msra.mxu0 0.0
  %1553 = vmatprep.subr.mxu0 0.0
  %1554 = vmatpush1.msra.mxu0 0.0
  %1555 = vmatprep.subr.mxu0 0.0
  %1556 = vmatpush1.msra.mxu0 0.0
  %1557 = vmatprep.subr.mxu0 0.0
  %1558 = vmatpush1.msra.mxu0 0.0
  %1559 = vmatprep.subr.mxu0 0.0
  %1560 = vmatpush1.msra.mxu0 0.0
  %1561 = vmatprep.subr.mxu0 0.0
  %1562 = vmatpush1.msra.mxu0 0.0
  %1563 = vmatprep.subr.mxu0 0.0
  %1564 = vmatpush1.msra.mxu0 0.0
  %1565 = vmatprep.subr.mxu0 0.0
  %1566 = vmatpush1.msra.mxu0 0.0
  %1567 = vmatprep.subr.mxu0 0.0
  %1568 = vmatpush1.msra.mxu0 0.0
  %1569 = vmatprep.subr.mxu0 0.0
  %1570 = vmatpush1.msra.mxu0 0.0
  %1571 = vmatprep.subr.mxu0 0.0
  %1572 = vmatpush1.msra.mxu0 0.0
  %1573 = vmatprep.subr.mxu0 0.0
  %1574 = vmatpush1.msra.mxu0 0.0
  %1575 = vmatprep.subr.mxu0 0.0
  %1576 = vmatpush1.msra.mxu0 0.0
  %1577 = vmatprep.subr.mxu0 0.0
  %1578 = vmatpush1.msra.mxu0 0.0
  %1579 = vmatprep.subr.mxu0 0.0
  %1580 = vmatpush1.msra.mxu0 0.0
  %1581 = vmatprep.subr.mxu0 0.0
  %1582 = vmatpush1.msra.mxu0 0.0
  %1583 = vmatprep.subr.mxu0 0.0
  %1584 = vmatpush1.msra.mxu0 0.0
  %1585 = vmatprep.subr.mxu0 0.0
  %1586 = vmatpush1.msra.mxu0 0.0
  %1587 = vmatprep.subr.mxu0 0.0
  %1588 = vmatpush1.msra.mxu0 0.0
  %1589 = vmatprep.subr.mxu0 0.0
  %1590 = vmatpush1.msra.mxu0 0.0
  %1591 = vmatprep.subr.mxu0 0.0
  %1592 = vmatpush1.msra.mxu0 0.0
  %1593 = vmatprep.subr.mxu0 0.0
  %1594 = vmatpush1.msra.mxu0 0.0
  %1595 = vmatprep.subr.mxu0 0.0
  %1596 = vmatpush1.msra.mxu0 0.0
  %1597 = vmatprep.subr.mxu0 0.0
  %1598 = vmatpush1.msra.mxu0 0.0
  %1599 = vmatprep.mubr.f32.mxu0 0.0
  %1600 = vmatmul.mubr.f32.gmra.mrb[0].mxu0 %v257
  %v1601 = vpop.f32.mrb[0].mxu0
  %v1602 = vadd.f32 %v254, %v1601
  %v1603 = vpop.f32.mrb[0].mxu0
  %1604 = vdwg.mxu0
  %v1605 = vadd.f32 %v1532, %v1602
  %v1606 = vmax.f32 %v1605, 0.0
  %1608 = vrot.lane.b32.xlu0 %v1606, 4
  %v1609 = vpop.permute.xlu0 %1608
  %v1611 = vsel %vm337, 0.0, %v1609
  %1612 = vrot.lane.b32.xlu0 %v1606, 2
  %v1613 = vpop.permute.xlu0 %1612
  %v1615 = vsel %vm57, 0.0, %v1613
  %v1617 = vrot.slane %v1615, 4
  %v1619 = vsel %vm167, %v1611, %v1617
  %v1620 = vsel %vm167, %v1606, 0
  %1622 = vmatprep.subr.mxu0 0.0
  %1623 = vmatpush1.msra.mxu0 %v1619
  %1624 = vmatprep.subr.mxu0 0.0
  %1625 = vmatpush1.msra.mxu0 %v1620
  %1626 = vmatprep.subr.mxu0 0.0
  %1627 = vmatpush1.msra.mxu0 0.0
  %1628 = vmatprep.subr.mxu0 0.0
  %1629 = vmatpush1.msra.mxu0 0.0
  %1630 = vmatprep.subr.mxu0 0.0
  %1631 = vmatpush1.msra.mxu0 0.0
  %1632 = vmatprep.subr.mxu0 0.0
  %1633 = vmatpush1.msra.mxu0 0.0
  %1634 = vmatprep.subr.mxu0 0.0
  %1635 = vmatpush1.msra.mxu0 0.0
  %1636 = vmatprep.subr.mxu0 0.0
  %1637 = vmatpush1.msra.mxu0 0.0
  %1638 = vmatprep.subr.mxu0 0.0
  %1639 = vmatpush1.msra.mxu0 0.0
  %1640 = vmatprep.subr.mxu0 0.0
  %1641 = vmatpush1.msra.mxu0 0.0
  %1642 = vmatprep.subr.mxu0 0.0
  %1643 = vmatpush1.msra.mxu0 0.0
  %1644 = vmatprep.subr.mxu0 0.0
  %1645 = vmatpush1.msra.mxu0 0.0
  %1646 = vmatprep.subr.mxu0 0.0
  %1647 = vmatpush1.msra.mxu0 0.0
  %1648 = vmatprep.subr.mxu0 0.0
  %1649 = vmatpush1.msra.mxu0 0.0
  %1650 = vmatprep.subr.mxu0 0.0
  %1651 = vmatpush1.msra.mxu0 0.0
  %1652 = vmatprep.subr.mxu0 0.0
  %1653 = vmatpush1.msra.mxu0 0.0
  %1654 = vmatprep.subr.mxu0 0.0
  %1655 = vmatpush1.msra.mxu0 0.0
  %1656 = vmatprep.subr.mxu0 0.0
  %1657 = vmatpush1.msra.mxu0 0.0
  %1658 = vmatprep.subr.mxu0 0.0
  %1659 = vmatpush1.msra.mxu0 0.0
  %1660 = vmatprep.subr.mxu0 0.0
  %1661 = vmatpush1.msra.mxu0 0.0
  %1662 = vmatprep.subr.mxu0 0.0
  %1663 = vmatpush1.msra.mxu0 0.0
  %1664 = vmatprep.subr.mxu0 0.0
  %1665 = vmatpush1.msra.mxu0 0.0
  %1666 = vmatprep.subr.mxu0 0.0
  %1667 = vmatpush1.msra.mxu0 0.0
  %1668 = vmatprep.subr.mxu0 0.0
  %1669 = vmatpush1.msra.mxu0 0.0
  %1670 = vmatprep.subr.mxu0 0.0
  %1671 = vmatpush1.msra.mxu0 0.0
  %1672 = vmatprep.subr.mxu0 0.0
  %1673 = vmatpush1.msra.mxu0 0.0
  %1674 = vmatprep.subr.mxu0 0.0
  %1675 = vmatpush1.msra.mxu0 0.0
  %1676 = vmatprep.subr.mxu0 0.0
  %1677 = vmatpush1.msra.mxu0 0.0
  %1678 = vmatprep.subr.mxu0 0.0
  %1679 = vmatpush1.msra.mxu0 0.0
  %1680 = vmatprep.subr.mxu0 0.0
  %1681 = vmatpush1.msra.mxu0 0.0
  %1682 = vmatprep.subr.mxu0 0.0
  %1683 = vmatpush1.msra.mxu0 0.0
  %1684 = vmatprep.subr.mxu0 0.0
  %1685 = vmatpush1.msra.mxu0 0.0
  %1686 = vmatprep.mubr.f32.mxu0 0.0
  %1687 = vmatmul.mubr.f32.gmra.mrb[0].mxu0 %v353
  %v1688 = vpop.f32.mrb[0].mxu0
  %v1689 = vadd.f32 %v351, %v1688
  %v1690 = vpop.f32.mrb[0].mxu0
  %1691 = vdwg.mxu0
  %v1692 = vmax.f32 %v1689, 0.0
  %1694 = vrot.lane.b32.xlu0 %v1692, 4
  %v1695 = vpop.permute.xlu0 %1694
  %v1697 = vsel %vm337, 0.0, %v1695
  %1698 = vrot.lane.b32.xlu0 %v1692, 2
  %v1699 = vpop.permute.xlu0 %1698
  %v1701 = vsel %vm57, 0.0, %v1699
  %v1703 = vrot.slane %v1701, 4
  %v1705 = vsel %vm167, %v1697, %v1703
  %v1706 = vsel %vm167, %v1692, 0
  %1708 = vmatprep.subr.mxu0 0.0
  %1709 = vmatpush1.msra.mxu0 %v1705
  %1710 = vmatprep.subr.mxu0 0.0
  %1711 = vmatpush1.msra.mxu0 %v1706
  %1712 = vmatprep.subr.mxu0 0.0
  %1713 = vmatpush1.msra.mxu0 0.0
  %1714 = vmatprep.subr.mxu0 0.0
  %1715 = vmatpush1.msra.mxu0 0.0
  %1716 = vmatprep.subr.mxu0 0.0
  %1717 = vmatpush1.msra.mxu0 0.0
  %1718 = vmatprep.subr.mxu0 0.0
  %1719 = vmatpush1.msra.mxu0 0.0
  %1720 = vmatprep.subr.mxu0 0.0
  %1721 = vmatpush1.msra.mxu0 0.0
  %1722 = vmatprep.subr.mxu0 0.0
  %1723 = vmatpush1.msra.mxu0 0.0
  %1724 = vmatprep.subr.mxu0 0.0
  %1725 = vmatpush1.msra.mxu0 0.0
  %1726 = vmatprep.subr.mxu0 0.0
  %1727 = vmatpush1.msra.mxu0 0.0
  %1728 = vmatprep.subr.mxu0 0.0
  %1729 = vmatpush1.msra.mxu0 0.0
  %1730 = vmatprep.subr.mxu0 0.0
  %1731 = vmatpush1.msra.mxu0 0.0
  %1732 = vmatprep.subr.mxu0 0.0
  %1733 = vmatpush1.msra.mxu0 0.0
  %1734 = vmatprep.subr.mxu0 0.0
  %1735 = vmatpush1.msra.mxu0 0.0
  %1736 = vmatprep.subr.mxu0 0.0
  %1737 = vmatpush1.msra.mxu0 0.0
  %1738 = vmatprep.subr.mxu0 0.0
  %1739 = vmatpush1.msra.mxu0 0.0
  %1740 = vmatprep.subr.mxu0 0.0
  %1741 = vmatpush1.msra.mxu0 0.0
  %1742 = vmatprep.subr.mxu0 0.0
  %1743 = vmatpush1.msra.mxu0 0.0
  %1744 = vmatprep.subr.mxu0 0.0
  %1745 = vmatpush1.msra.mxu0 0.0
  %1746 = vmatprep.subr.mxu0 0.0
  %1747 = vmatpush1.msra.mxu0 0.0
  %1748 = vmatprep.subr.mxu0 0.0
  %1749 = vmatpush1.msra.mxu0 0.0
  %1750 = vmatprep.subr.mxu0 0.0
  %1751 = vmatpush1.msra.mxu0 0.0
  %1752 = vmatprep.subr.mxu0 0.0
  %1753 = vmatpush1.msra.mxu0 0.0
  %1754 = vmatprep.subr.mxu0 0.0
  %1755 = vmatpush1.msra.mxu0 0.0
  %1756 = vmatprep.subr.mxu0 0.0
  %1757 = vmatpush1.msra.mxu0 0.0
  %1758 = vmatprep.subr.mxu0 0.0
  %1759 = vmatpush1.msra.mxu0 0.0
  %1760 = vmatprep.subr.mxu0 0.0
  %1761 = vmatpush1.msra.mxu0 0.0
  %1762 = vmatprep.subr.mxu0 0.0
  %1763 = vmatpush1.msra.mxu0 0.0
  %1764 = vmatprep.subr.mxu0 0.0
  %1765 = vmatpush1.msra.mxu0 0.0
  %1766 = vmatprep.subr.mxu0 0.0
  %1767 = vmatpush1.msra.mxu0 0.0
  %1768 = vmatprep.subr.mxu0 0.0
  %1769 = vmatpush1.msra.mxu0 0.0
  %1770 = vmatprep.subr.mxu0 0.0
  %1771 = vmatpush1.msra.mxu0 0.0
  %1772 = vmatprep.mubr.f32.mxu0 0.0
  %1773 = vmatmul.mubr.f32.gmra.mrb[0].mxu0 %v446
  %v1774 = vpop.f32.mrb[0].mxu0
  %v1775 = vadd.f32 %v444, %v1774
  %v1776 = vpop.f32.mrb[0].mxu0
  %1777 = vdwg.mxu0
  %v1778 = vmax.f32 %v1775, 0.0
  %v1779 = vadd.f32 %v1778, %v1606
  %v1780 = vmax.f32 %v1779, 0.0
  %v1781 = vrot.slane %v1357, 4
  %v1783 = vsel %vm167, %v1780, %v1781
  %1785 = vrot.lane.b32.xlu0 %v1783, 127
  %v1786 = vpop.permute.xlu0 %1785
  %v1788 = vsel %vm530, %v1786, 0.0
  %1789 = vrot.lane.b32.xlu0 %v1783, 1
  %v1790 = vpop.permute.xlu0 %1789
  %v1792 = vsel %vm62, 0.0, %v1790
  %v1793 = vrot.slane %v1783, 1
  %v1796 = vrot.slane %v1792, 2
  %v1798 = vsel %vm541, %v1788, %v1793
  %v1799 = vsel %vm71, %v1793, %v1796
  %v1800 = vsel %vm561, %v1796, 0
  %1802 = vmatprep.subr.mxu0 0.0
  %1803 = vmatpush1.msra.mxu0 %v1798
  %1804 = vmatprep.subr.mxu0 0.0
  %1805 = vmatpush1.msra.mxu0 %v1799
  %1806 = vmatprep.subr.mxu0 0.0
  %1807 = vmatpush1.msra.mxu0 %v1800
  %1808 = vmatprep.subr.mxu0 0.0
  %1809 = vmatpush1.msra.mxu0 0.0
  %1810 = vmatprep.subr.mxu0 0.0
  %1811 = vmatpush1.msra.mxu0 0.0
  %1812 = vmatprep.subr.mxu0 0.0
  %1813 = vmatpush1.msra.mxu0 0.0
  %1814 = vmatprep.subr.mxu0 0.0
  %1815 = vmatpush1.msra.mxu0 0.0
  %1816 = vmatprep.subr.mxu0 0.0
  %1817 = vmatpush1.msra.mxu0 0.0
  %1818 = vmatprep.subr.mxu0 0.0
  %1819 = vmatpush1.msra.mxu0 0.0
  %1820 = vmatprep.subr.mxu0 0.0
  %1821 = vmatpush1.msra.mxu0 0.0
  %1822 = vmatprep.subr.mxu0 0.0
  %1823 = vmatpush1.msra.mxu0 0.0
  %1824 = vmatprep.subr.mxu0 0.0
  %1825 = vmatpush1.msra.mxu0 0.0
  %1826 = vmatprep.subr.mxu0 0.0
  %1827 = vmatpush1.msra.mxu0 0.0
  %1828 = vmatprep.subr.mxu0 0.0
  %1829 = vmatpush1.msra.mxu0 0.0
  %1830 = vmatprep.subr.mxu0 0.0
  %1831 = vmatpush1.msra.mxu0 0.0
  %1832 = vmatprep.subr.mxu0 0.0
  %1833 = vmatpush1.msra.mxu0 0.0
  %1834 = vmatprep.subr.mxu0 0.0
  %1835 = vmatpush1.msra.mxu0 0.0
  %1836 = vmatprep.subr.mxu0 0.0
  %1837 = vmatpush1.msra.mxu0 0.0
  %1838 = vmatprep.subr.mxu0 0.0
  %1839 = vmatpush1.msra.mxu0 0.0
  %1840 = vmatprep.subr.mxu0 0.0
  %1841 = vmatpush1.msra.mxu0 0.0
  %1842 = vmatprep.subr.mxu0 0.0
  %1843 = vmatpush1.msra.mxu0 0.0
  %1844 = vmatprep.subr.mxu0 0.0
  %1845 = vmatpush1.msra.mxu0 0.0
  %1846 = vmatprep.subr.mxu0 0.0
  %1847 = vmatpush1.msra.mxu0 0.0
  %1848 = vmatprep.subr.mxu0 0.0
  %1849 = vmatpush1.msra.mxu0 0.0
  %1850 = vmatprep.subr.mxu0 0.0
  %1851 = vmatpush1.msra.mxu0 0.0
  %1852 = vmatprep.subr.mxu0 0.0
  %1853 = vmatpush1.msra.mxu0 0.0
  %1854 = vmatprep.subr.mxu0 0.0
  %1855 = vmatpush1.msra.mxu0 0.0
  %1856 = vmatprep.subr.mxu0 0.0
  %1857 = vmatpush1.msra.mxu0 0.0
  %1858 = vmatprep.subr.mxu0 0.0
  %1859 = vmatpush1.msra.mxu0 0.0
  %1860 = vmatprep.subr.mxu0 0.0
  %1861 = vmatpush1.msra.mxu0 0.0
  %1862 = vmatprep.subr.mxu0 0.0
  %1863 = vmatpush1.msra.mxu0 0.0
  %1864 = vmatprep.subr.mxu0 0.0
  %1865 = vmatpush1.msra.mxu0 0.0
  %1866 = vmatprep.mubr.f32.mxu0 0.0
  %1867 = vmatmul.mubr.f32.gmra.mrb[0].mxu0 %v559
  %v1868 = vpop.f32.mrb[0].mxu0
  %v1869 = vadd.f32 %v556, %v1868
  %v1870 = vpop.f32.mrb[0].mxu0
  %1871 = vdwg.mxu0
  %v1872 = vmax.f32 %v1869, 0.0
  %1873 = vrot.lane.b32.xlu0 %v1793, 1
  %v1874 = vpop.permute.xlu0 %1873
  %v1876 = vsel %vm541, %v1783, %v1874
  %1878 = vrot.lane.b32.xlu0 %v1876, 127
  %v1879 = vpop.permute.xlu0 %1878
  %1880 = vrot.lane.b32.xlu0 %v1874, 127
  %v1881 = vpop.permute.xlu0 %1880
  %v1883 = vsel %vm71, %v1881, 0
  %1885 = vmatprep.subr.mxu0 0.0
  %1886 = vmatpush1.msra.mxu0 %v1879
  %1887 = vmatprep.subr.mxu0 0.0
  %1888 = vmatpush1.msra.mxu0 %v1883
  %1889 = vmatprep.subr.mxu0 0.0
  %1890 = vmatpush1.msra.mxu0 0.0
  %1891 = vmatprep.subr.mxu0 0.0
  %1892 = vmatpush1.msra.mxu0 0.0
  %1893 = vmatprep.subr.mxu0 0.0
  %1894 = vmatpush1.msra.mxu0 0.0
  %1895 = vmatprep.subr.mxu0 0.0
  %1896 = vmatpush1.msra.mxu0 0.0
  %1897 = vmatprep.subr.mxu0 0.0
  %1898 = vmatpush1.msra.mxu0 0.0
  %1899 = vmatprep.subr.mxu0 0.0
  %1900 = vmatpush1.msra.mxu0 0.0
  %1901 = vmatprep.subr.mxu0 0.0
  %1902 = vmatpush1.msra.mxu0 0.0
  %1903 = vmatprep.subr.mxu0 0.0
  %1904 = vmatpush1.msra.mxu0 0.0
  %1905 = vmatprep.subr.mxu0 0.0
  %1906 = vmatpush1.msra.mxu0 0.0
  %1907 = vmatprep.subr.mxu0 0.0
  %1908 = vmatpush1.msra.mxu0 0.0
  %1909 = vmatprep.subr.mxu0 0.0
  %1910 = vmatpush1.msra.mxu0 0.0
  %1911 = vmatprep.subr.mxu0 0.0
  %1912 = vmatpush1.msra.mxu0 0.0
  %1913 = vmatprep.subr.mxu0 0.0
  %1914 = vmatpush1.msra.mxu0 0.0
  %1915 = vmatprep.subr.mxu0 0.0
  %1916 = vmatpush1.msra.mxu0 0.0
  %1917 = vmatprep.subr.mxu0 0.0
  %1918 = vmatpush1.msra.mxu0 0.0
  %1919 = vmatprep.subr.mxu0 0.0
  %1920 = vmatpush1.msra.mxu0 0.0
  %1921 = vmatprep.subr.mxu0 0.0
  %1922 = vmatpush1.msra.mxu0 0.0
  %1923 = vmatprep.subr.mxu0 0.0
  %1924 = vmatpush1.msra.mxu0 0.0
  %1925 = vmatprep.subr.mxu0 0.0
  %1926 = vmatpush1.msra.mxu0 0.0
  %1927 = vmatprep.subr.mxu0 0.0
  %1928 = vmatpush1.msra.mxu0 0.0
  %1929 = vmatprep.subr.mxu0 0.0
  %1930 = vmatpush1.msra.mxu0 0.0
  %1931 = vmatprep.subr.mxu0 0.0
  %1932 = vmatpush1.msra.mxu0 0.0
  %1933 = vmatprep.subr.mxu0 0.0
  %1934 = vmatpush1.msra.mxu0 0.0
  %1935 = vmatprep.subr.mxu0 0.0
  %1936 = vmatpush1.msra.mxu0 0.0
  %1937 = vmatprep.subr.mxu0 0.0
  %1938 = vmatpush1.msra.mxu0 0.0
  %1939 = vmatprep.subr.mxu0 0.0
  %1940 = vmatpush1.msra.mxu0 0.0
  %1941 = vmatprep.subr.mxu0 0.0
  %1942 = vmatpush1.msra.mxu0 0.0
  %1943 = vmatprep.subr.mxu0 0.0
  %1944 = vmatpush1.msra.mxu0 0.0
  %1945 = vmatprep.subr.mxu0 0.0
  %1946 = vmatpush1.msra.mxu0 0.0
  %1947 = vmatprep.subr.mxu0 0.0
  %1948 = vmatpush1.msra.mxu0 0.0
  %1949 = vmatprep.mubr.f32.mxu0 0.0
  %1950 = vmatmul.mubr.f32.gmra.mrb[0].mxu0 %v648
  %v1951 = vpop.f32.mrb[0].mxu0
  %v1952 = vadd.f32 %v556, %v1951
  %v1953 = vpop.f32.mrb[0].mxu0
  %1954 = vdwg.mxu0
  %v1955 = vmax.f32 %v1952, 0.0
  %1957 = vrot.lane.b32.xlu0 %v1872, 1
  %v1958 = vpop.permute.xlu0 %1957
  %v1960 = vsel %vm62, 0.0, %v1958
  %1961 = vrot.lane.b32.xlu0 %v1872, 127
  %v1962 = vpop.permute.xlu0 %1961
  %v1964 = vsel %vm530, %v1962, 0.0
  %v1965 = vsel %vm530, %v1955, 0.0
  %1967 = vrot.lane.b32.xlu0 %v1955, 1
  %v1968 = vpop.permute.xlu0 %1967
  %v1970 = vsel %vm62, 0.0, %v1968
  %v1972 = vrot.slane %v1970, 3
  %v1975 = vrot.slane %v1960, 6
  %v1977 = vsel %vm561, %v1872, %v1972
  %v1978 = vsel %vm745, %v1972, %v1975
  %v1980 = vsel %vm541, %v1978, 0
  %1982 = vmatprep.subr.mxu0 0.0
  %1983 = vmatpush1.msra.mxu0 %v1977
  %1984 = vmatprep.subr.mxu0 0.0
  %1985 = vmatpush1.msra.mxu0 %v1980
  %1986 = vmatprep.subr.mxu0 0.0
  %1987 = vmatpush1.msra.mxu0 0.0
  %1988 = vmatprep.subr.mxu0 0.0
  %1989 = vmatpush1.msra.mxu0 0.0
  %1990 = vmatprep.subr.mxu0 0.0
  %1991 = vmatpush1.msra.mxu0 0.0
  %1992 = vmatprep.subr.mxu0 0.0
  %1993 = vmatpush1.msra.mxu0 0.0
  %1994 = vmatprep.subr.mxu0 0.0
  %1995 = vmatpush1.msra.mxu0 0.0
  %1996 = vmatprep.subr.mxu0 0.0
  %1997 = vmatpush1.msra.mxu0 0.0
  %1998 = vmatprep.subr.mxu0 0.0
  %1999 = vmatpush1.msra.mxu0 0.0
  %2000 = vmatprep.subr.mxu0 0.0
  %2001 = vmatpush1.msra.mxu0 0.0
  %2002 = vmatprep.subr.mxu0 0.0
  %2003 = vmatpush1.msra.mxu0 0.0
  %2004 = vmatprep.subr.mxu0 0.0
  %2005 = vmatpush1.msra.mxu0 0.0
  %2006 = vmatprep.subr.mxu0 0.0
  %2007 = vmatpush1.msra.mxu0 0.0
  %2008 = vmatprep.subr.mxu0 0.0
  %2009 = vmatpush1.msra.mxu0 0.0
  %2010 = vmatprep.subr.mxu0 0.0
  %2011 = vmatpush1.msra.mxu0 0.0
  %2012 = vmatprep.subr.mxu0 0.0
  %2013 = vmatpush1.msra.mxu0 0.0
  %2014 = vmatprep.subr.mxu0 0.0
  %2015 = vmatpush1.msra.mxu0 0.0
  %2016 = vmatprep.subr.mxu0 0.0
  %2017 = vmatpush1.msra.mxu0 0.0
  %2018 = vmatprep.subr.mxu0 0.0
  %2019 = vmatpush1.msra.mxu0 0.0
  %2020 = vmatprep.subr.mxu0 0.0
  %2021 = vmatpush1.msra.mxu0 0.0
  %2022 = vmatprep.subr.mxu0 0.0
  %2023 = vmatpush1.msra.mxu0 0.0
  %2024 = vmatprep.subr.mxu0 0.0
  %2025 = vmatpush1.msra.mxu0 0.0
  %2026 = vmatprep.subr.mxu0 0.0
  %2027 = vmatpush1.msra.mxu0 0.0
  %2028 = vmatprep.subr.mxu0 0.0
  %2029 = vmatpush1.msra.mxu0 0.0
  %2030 = vmatprep.subr.mxu0 0.0
  %2031 = vmatpush1.msra.mxu0 0.0
  %2032 = vmatprep.subr.mxu0 0.0
  %2033 = vmatpush1.msra.mxu0 0.0
  %2034 = vmatprep.subr.mxu0 0.0
  %2035 = vmatpush1.msra.mxu0 0.0
  %2036 = vmatprep.subr.mxu0 0.0
  %2037 = vmatpush1.msra.mxu0 0.0
  %2038 = vmatprep.subr.mxu0 0.0
  %2039 = vmatpush1.msra.mxu0 0.0
  %2040 = vmatprep.subr.mxu0 0.0
  %2041 = vmatpush1.msra.mxu0 0.0
  %2042 = vmatprep.subr.mxu0 0.0
  %2043 = vmatpush1.msra.mxu0 0.0
  %2044 = vmatprep.subr.mxu0 0.0
  %2045 = vmatpush1.msra.mxu0 0.0
  %2046 = vmatprep.mubr.f32.mxu0 0.0
  %2047 = vmatmul.mubr.f32.gmra.mrb[0].mxu0 %v753
  %v2048 = vpop.f32.mrb[0].mxu0
  %v2049 = vadd.f32 %v751, %v2048
  %v2050 = vpop.f32.mrb[0].mxu0
  %2051 = vdwg.mxu0
  %v2052 = vrot.slane %v1872, 3
  %v2054 = vrot.slane %v1970, 6
  %v2056 = vsel %vm561, %v1965, %v2052
  %v2057 = vsel %vm745, %v2052, %v2054
  %v2059 = vsel %vm541, %v2057, 0
  %2061 = vmatprep.subr.mxu0 0.0
  %2062 = vmatpush1.msra.mxu0 %v2056
  %2063 = vmatprep.subr.mxu0 0.0
  %2064 = vmatpush1.msra.mxu0 %v2059
  %2065 = vmatprep.subr.mxu0 0.0
  %2066 = vmatpush1.msra.mxu0 0.0
  %2067 = vmatprep.subr.mxu0 0.0
  %2068 = vmatpush1.msra.mxu0 0.0
  %2069 = vmatprep.subr.mxu0 0.0
  %2070 = vmatpush1.msra.mxu0 0.0
  %2071 = vmatprep.subr.mxu0 0.0
  %2072 = vmatpush1.msra.mxu0 0.0
  %2073 = vmatprep.subr.mxu0 0.0
  %2074 = vmatpush1.msra.mxu0 0.0
  %2075 = vmatprep.subr.mxu0 0.0
  %2076 = vmatpush1.msra.mxu0 0.0
  %2077 = vmatprep.subr.mxu0 0.0
  %2078 = vmatpush1.msra.mxu0 0.0
  %2079 = vmatprep.subr.mxu0 0.0
  %2080 = vmatpush1.msra.mxu0 0.0
  %2081 = vmatprep.subr.mxu0 0.0
  %2082 = vmatpush1.msra.mxu0 0.0
  %2083 = vmatprep.subr.mxu0 0.0
  %2084 = vmatpush1.msra.mxu0 0.0
  %2085 = vmatprep.subr.mxu0 0.0
  %2086 = vmatpush1.msra.mxu0 0.0
  %2087 = vmatprep.subr.mxu0 0.0
  %2088 = vmatpush1.msra.mxu0 0.0
  %2089 = vmatprep.subr.mxu0 0.0
  %2090 = vmatpush1.msra.mxu0 0.0
  %2091 = vmatprep.subr.mxu0 0.0
  %2092 = vmatpush1.msra.mxu0 0.0
  %2093 = vmatprep.subr.mxu0 0.0
  %2094 = vmatpush1.msra.mxu0 0.0
  %2095 = vmatprep.subr.mxu0 0.0
  %2096 = vmatpush1.msra.mxu0 0.0
  %2097 = vmatprep.subr.mxu0 0.0
  %2098 = vmatpush1.msra.mxu0 0.0
  %2099 = vmatprep.subr.mxu0 0.0
  %2100 = vmatpush1.msra.mxu0 0.0
  %2101 = vmatprep.subr.mxu0 0.0
  %2102 = vmatpush1.msra.mxu0 0.0
  %2103 = vmatprep.subr.mxu0 0.0
  %2104 = vmatpush1.msra.mxu0 0.0
  %2105 = vmatprep.subr.mxu0 0.0
  %2106 = vmatpush1.msra.mxu0 0.0
  %2107 = vmatprep.subr.mxu0 0.0
  %2108 = vmatpush1.msra.mxu0 0.0
  %2109 = vmatprep.subr.mxu0 0.0
  %2110 = vmatpush1.msra.mxu0 0.0
  %2111 = vmatprep.subr.mxu0 0.0
  %2112 = vmatpush1.msra.mxu0 0.0
  %2113 = vmatprep.subr.mxu0 0.0
  %2114 = vmatpush1.msra.mxu0 0.0
  %2115 = vmatprep.subr.mxu0 0.0
  %2116 = vmatpush1.msra.mxu0 0.0
  %2117 = vmatprep.subr.mxu0 0.0
  %2118 = vmatpush1.msra.mxu0 0.0
  %2119 = vmatprep.subr.mxu0 0.0
  %2120 = vmatpush1.msra.mxu0 0.0
  %2121 = vmatprep.subr.mxu0 0.0
  %2122 = vmatpush1.msra.mxu0 0.0
  %2123 = vmatprep.subr.mxu0 0.0
  %2124 = vmatpush1.msra.mxu0 0.0
  %2125 = vmatprep.mubr.f32.mxu0 0.0
  %2126 = vmatmul.mubr.f32.gmra.mrb[0].mxu0 %v836
  %v2127 = vpop.f32.mrb[0].mxu0
  %v2128 = vadd.f32 %v751, %v2127
  %v2129 = vpop.f32.mrb[0].mxu0
  %2130 = vdwg.mxu0
  %2131 = vmatprep.subr.mxu0 0.0
  %2132 = vmatpush1.msra.mxu0 %v2056
  %2133 = vmatprep.subr.mxu0 0.0
  %2134 = vmatpush1.msra.mxu0 %v2059
  %2135 = vmatprep.subr.mxu0 0.0
  %2136 = vmatpush1.msra.mxu0 0.0
  %2137 = vmatprep.subr.mxu0 0.0
  %2138 = vmatpush1.msra.mxu0 0.0
  %2139 = vmatprep.subr.mxu0 0.0
  %2140 = vmatpush1.msra.mxu0 0.0
  %2141 = vmatprep.subr.mxu0 0.0
  %2142 = vmatpush1.msra.mxu0 0.0
  %2143 = vmatprep.subr.mxu0 0.0
  %2144 = vmatpush1.msra.mxu0 0.0
  %2145 = vmatprep.subr.mxu0 0.0
  %2146 = vmatpush1.msra.mxu0 0.0
  %2147 = vmatprep.subr.mxu0 0.0
  %2148 = vmatpush1.msra.mxu0 0.0
  %2149 = vmatprep.subr.mxu0 0.0
  %2150 = vmatpush1.msra.mxu0 0.0
  %2151 = vmatprep.subr.mxu0 0.0
  %2152 = vmatpush1.msra.mxu0 0.0
  %2153 = vmatprep.subr.mxu0 0.0
  %2154 = vmatpush1.msra.mxu0 0.0
  %2155 = vmatprep.subr.mxu0 0.0
  %2156 = vmatpush1.msra.mxu0 0.0
  %2157 = vmatprep.subr.mxu0 0.0
  %2158 = vmatpush1.msra.mxu0 0.0
  %2159 = vmatprep.subr.mxu0 0.0
  %2160 = vmatpush1.msra.mxu0 0.0
  %2161 = vmatprep.subr.mxu0 0.0
  %2162 = vmatpush1.msra.mxu0 0.0
  %2163 = vmatprep.subr.mxu0 0.0
  %2164 = vmatpush1.msra.mxu0 0.0
  %2165 = vmatprep.subr.mxu0 0.0
  %2166 = vmatpush1.msra.mxu0 0.0
  %2167 = vmatprep.subr.mxu0 0.0
  %2168 = vmatpush1.msra.mxu0 0.0
  %2169 = vmatprep.subr.mxu0 0.0
  %2170 = vmatpush1.msra.mxu0 0.0
  %2171 = vmatprep.subr.mxu0 0.0
  %2172 = vmatpush1.msra.mxu0 0.0
  %2173 = vmatprep.subr.mxu0 0.0
  %2174 = vmatpush1.msra.mxu0 0.0
  %2175 = vmatprep.subr.mxu0 0.0
  %2176 = vmatpush1.msra.mxu0 0.0
  %2177 = vmatprep.subr.mxu0 0.0
  %2178 = vmatpush1.msra.mxu0 0.0
  %2179 = vmatprep.subr.mxu0 0.0
  %2180 = vmatpush1.msra.mxu0 0.0
  %2181 = vmatprep.subr.mxu0 0.0
  %2182 = vmatpush1.msra.mxu0 0.0
  %2183 = vmatprep.subr.mxu0 0.0
  %2184 = vmatpush1.msra.mxu0 0.0
  %2185 = vmatprep.subr.mxu0 0.0
  %2186 = vmatpush1.msra.mxu0 0.0
  %2187 = vmatprep.subr.mxu0 0.0
  %2188 = vmatpush1.msra.mxu0 0.0
  %2189 = vmatprep.subr.mxu0 0.0
  %2190 = vmatpush1.msra.mxu0 0.0
  %2191 = vmatprep.subr.mxu0 0.0
  %2192 = vmatpush1.msra.mxu0 0.0
  %2193 = vmatprep.subr.mxu0 0.0
  %2194 = vmatpush1.msra.mxu0 0.0
  %2195 = vmatprep.mubr.f32.mxu0 0.0
  %2196 = vmatmul.mubr.f32.gmra.mrb[0].mxu0 %v753
  %v2197 = vpop.f32.mrb[0].mxu0
  %v2198 = vadd.f32 %v751, %v2197
  %v2199 = vpop.f32.mrb[0].mxu0
  %2200 = vdwg.mxu0
  %v2202 = vrot.slane %v1965, 3
  %v2204 = vrot.slane %v1872, 6
  %v2206 = vsel %vm561, %v1964, %v2202
  %v2207 = vsel %vm745, %v2202, %v2204
  %v2209 = vsel %vm541, %v2207, 0
  %2211 = vmatprep.subr.mxu0 0.0
  %2212 = vmatpush1.msra.mxu0 %v2206
  %2213 = vmatprep.subr.mxu0 0.0
  %2214 = vmatpush1.msra.mxu0 %v2209
  %2215 = vmatprep.subr.mxu0 0.0
  %2216 = vmatpush1.msra.mxu0 0.0
  %2217 = vmatprep.subr.mxu0 0.0
  %2218 = vmatpush1.msra.mxu0 0.0
  %2219 = vmatprep.subr.mxu0 0.0
  %2220 = vmatpush1.msra.mxu0 0.0
  %2221 = vmatprep.subr.mxu0 0.0
  %2222 = vmatpush1.msra.mxu0 0.0
  %2223 = vmatprep.subr.mxu0 0.0
  %2224 = vmatpush1.msra.mxu0 0.0
  %2225 = vmatprep.subr.mxu0 0.0
  %2226 = vmatpush1.msra.mxu0 0.0
  %2227 = vmatprep.subr.mxu0 0.0
  %2228 = vmatpush1.msra.mxu0 0.0
  %2229 = vmatprep.subr.mxu0 0.0
  %2230 = vmatpush1.msra.mxu0 0.0
  %2231 = vmatprep.subr.mxu0 0.0
  %2232 = vmatpush1.msra.mxu0 0.0
  %2233 = vmatprep.subr.mxu0 0.0
  %2234 = vmatpush1.msra.mxu0 0.0
  %2235 = vmatprep.subr.mxu0 0.0
  %2236 = vmatpush1.msra.mxu0 0.0
  %2237 = vmatprep.subr.mxu0 0.0
  %2238 = vmatpush1.msra.mxu0 0.0
  %2239 = vmatprep.subr.mxu0 0.0
  %2240 = vmatpush1.msra.mxu0 0.0
  %2241 = vmatprep.subr.mxu0 0.0
  %2242 = vmatpush1.msra.mxu0 0.0
  %2243 = vmatprep.subr.mxu0 0.0
  %2244 = vmatpush1.msra.mxu0 0.0
  %2245 = vmatprep.subr.mxu0 0.0
  %2246 = vmatpush1.msra.mxu0 0.0
  %2247 = vmatprep.subr.mxu0 0.0
  %2248 = vmatpush1.msra.mxu0 0.0
  %2249 = vmatprep.subr.mxu0 0.0
  %2250 = vmatpush1.msra.mxu0 0.0
  %2251 = vmatprep.subr.mxu0 0.0
  %2252 = vmatpush1.msra.mxu0 0.0
  %2253 = vmatprep.subr.mxu0 0.0
  %2254 = vmatpush1.msra.mxu0 0.0
  %2255 = vmatprep.subr.mxu0 0.0
  %2256 = vmatpush1.msra.mxu0 0.0
  %2257 = vmatprep.subr.mxu0 0.0
  %2258 = vmatpush1.msra.mxu0 0.0
  %2259 = vmatprep.subr.mxu0 0.0
  %2260 = vmatpush1.msra.mxu0 0.0
  %2261 = vmatprep.subr.mxu0 0.0
  %2262 = vmatpush1.msra.mxu0 0.0
  %2263 = vmatprep.subr.mxu0 0.0
  %2264 = vmatpush1.msra.mxu0 0.0
  %2265 = vmatprep.subr.mxu0 0.0
  %2266 = vmatpush1.msra.mxu0 0.0
  %2267 = vmatprep.subr.mxu0 0.0
  %2268 = vmatpush1.msra.mxu0 0.0
  %2269 = vmatprep.subr.mxu0 0.0
  %2270 = vmatpush1.msra.mxu0 0.0
  %2271 = vmatprep.subr.mxu0 0.0
  %2272 = vmatpush1.msra.mxu0 0.0
  %2273 = vmatprep.subr.mxu0 0.0
  %2274 = vmatpush1.msra.mxu0 0.0
  %2275 = vmatprep.mubr.f32.mxu0 0.0
  %2276 = vmatmul.mubr.f32.gmra.mrb[0].mxu0 %v836
  %v2277 = vpop.f32.mrb[0].mxu0
  %v2278 = vadd.f32 %v751, %v2277
  %v2279 = vpop.f32.mrb[0].mxu0
  %2280 = vdwg.mxu0
  %v2282 = vsel %vm1061, %v2128, 0
  %2284 = vmatprep.subr.mxu0 0.0
  %2285 = vmatpush1.msra.mxu0 %v34
  %2286 = vmatprep.subr.mxu0 0.0
  %2287 = vmatpush1.msra.mxu0 %v35
  %2288 = vmatprep.subr.mxu0 0.0
  %2289 = vmatpush1.msra.mxu0 0.0
  %2290 = vmatprep.subr.mxu0 0.0
  %2291 = vmatpush1.msra.mxu0 0.0
  %2292 = vmatprep.subr.mxu0 0.0
  %2293 = vmatpush1.msra.mxu0 0.0
  %2294 = vmatprep.subr.mxu0 0.0
  %2295 = vmatpush1.msra.mxu0 0.0
  %2296 = vmatprep.subr.mxu0 0.0
  %2297 = vmatpush1.msra.mxu0 0.0
  %2298 = vmatprep.subr.mxu0 0.0
  %2299 = vmatpush1.msra.mxu0 0.0
  %2300 = vmatprep.subr.mxu0 0.0
  %2301 = vmatpush1.msra.mxu0 0.0
  %2302 = vmatprep.subr.mxu0 0.0
  %2303 = vmatpush1.msra.mxu0 0.0
  %2304 = vmatprep.subr.mxu0 0.0
  %2305 = vmatpush1.msra.mxu0 0.0
  %2306 = vmatprep.subr.mxu0 0.0
  %2307 = vmatpush1.msra.mxu0 0.0
  %2308 = vmatprep.subr.mxu0 0.0
  %2309 = vmatpush1.msra.mxu0 0.0
  %2310 = vmatprep.subr.mxu0 0.0
  %2311 = vmatpush1.msra.mxu0 0.0
  %2312 = vmatprep.subr.mxu0 0.0
  %2313 = vmatpush1.msra.mxu0 0.0
  %2314 = vmatprep.subr.mxu0 0.0
  %2315 = vmatpush1.msra.mxu0 0.0
  %2316 = vmatprep.subr.mxu0 0.0
  %2317 = vmatpush1.msra.mxu0 0.0
  %2318 = vmatprep.subr.mxu0 0.0
  %2319 = vmatpush1.msra.mxu0 0.0
  %2320 = vmatprep.subr.mxu0 0.0
  %2321 = vmatpush1.msra.mxu0 0.0
  %2322 = vmatprep.subr.mxu0 0.0
  %2323 = vmatpush1.msra.mxu0 0.0
  %2324 = vmatprep.subr.mxu0 0.0
  %2325 = vmatpush1.msra.mxu0 0.0
  %2326 = vmatprep.subr.mxu0 0.0
  %2327 = vmatpush1.msra.mxu0 0.0
  %2328 = vmatprep.subr.mxu0 0.0
  %2329 = vmatpush1.msra.mxu0 0.0
  %2330 = vmatprep.subr.mxu0 0.0
  %2331 = vmatpush1.msra.mxu0 0.0
  %2332 = vmatprep.subr.mxu0 0.0
  %2333 = vmatpush1.msra.mxu0 0.0
  %2334 = vmatprep.subr.mxu0 0.0
  %2335 = vmatpush1.msra.mxu0 0.0
  %2336 = vmatprep.subr.mxu0 0.0
  %2337 = vmatpush1.msra.mxu0 0.0
  %2338 = vmatprep.subr.mxu0 0.0
  %2339 = vmatpush1.msra.mxu0 0.0
  %2340 = vmatprep.subr.mxu0 0.0
  %2341 = vmatpush1.msra.mxu0 0.0
  %2342 = vmatprep.subr.mxu0 0.0
  %2343 = vmatpush1.msra.mxu0 0.0
  %2344 = vmatprep.subr.mxu0 0.0
  %2345 = vmatpush1.msra.mxu0 0.0
  %2346 = vmatprep.subr.mxu0 0.0
  %2347 = vmatpush1.msra.mxu0 0.0
  %2348 = vmatprep.mubr.f32.mxu0 0.0
  %2349 = vmatmul.mubr.f32.gmra.mrb[0].mxu0 %v2282
  %v2350 = vpop.f32.mrb[0].mxu0
  %v2351 = vadd.f32 0.0, %v2350
  %v2352 = vpop.f32.mrb[0].mxu0
  %2353 = vdwg.mxu0
  %v2355 = vsel %vm1061, %v2049, 0
  %2357 = vmatprep.subr.mxu0 0.0
  %2358 = vmatpush1.msra.mxu0 %v26
  %2359 = vmatprep.subr.mxu0 0.0
  %2360 = vmatpush1.msra.mxu0 %v27
  %2361 = vmatprep.subr.mxu0 0.0
  %2362 = vmatpush1.msra.mxu0 0.0
  %2363 = vmatprep.subr.mxu0 0.0
  %2364 = vmatpush1.msra.mxu0 0.0
  %2365 = vmatprep.subr.mxu0 0.0
  %2366 = vmatpush1.msra.mxu0 0.0
  %2367 = vmatprep.subr.mxu0 0.0
  %2368 = vmatpush1.msra.mxu0 0.0
  %2369 = vmatprep.subr.mxu0 0.0
  %2370 = vmatpush1.msra.mxu0 0.0
  %2371 = vmatprep.subr.mxu0 0.0
  %2372 = vmatpush1.msra.mxu0 0.0
  %2373 = vmatprep.subr.mxu0 0.0
  %2374 = vmatpush1.msra.mxu0 0.0
  %2375 = vmatprep.subr.mxu0 0.0
  %2376 = vmatpush1.msra.mxu0 0.0
  %2377 = vmatprep.subr.mxu0 0.0
  %2378 = vmatpush1.msra.mxu0 0.0
  %2379 = vmatprep.subr.mxu0 0.0
  %2380 = vmatpush1.msra.mxu0 0.0
  %2381 = vmatprep.subr.mxu0 0.0
  %2382 = vmatpush1.msra.mxu0 0.0
  %2383 = vmatprep.subr.mxu0 0.0
  %2384 = vmatpush1.msra.mxu0 0.0
  %2385 = vmatprep.subr.mxu0 0.0
  %2386 = vmatpush1.msra.mxu0 0.0
  %2387 = vmatprep.subr.mxu0 0.0
  %2388 = vmatpush1.msra.mxu0 0.0
  %2389 = vmatprep.subr.mxu0 0.0
  %2390 = vmatpush1.msra.mxu0 0.0
  %2391 = vmatprep.subr.mxu0 0.0
  %2392 = vmatpush1.msra.mxu0 0.0
  %2393 = vmatprep.subr.mxu0 0.0
  %2394 = vmatpush1.msra.mxu0 0.0
  %2395 = vmatprep.subr.mxu0 0.0
  %2396 = vmatpush1.msra.mxu0 0.0
  %2397 = vmatprep.subr.mxu0 0.0
  %2398 = vmatpush1.msra.mxu0 0.0
  %2399 = vmatprep.subr.mxu0 0.0
  %2400 = vmatpush1.msra.mxu0 0.0
  %2401 = vmatprep.subr.mxu0 0.0
  %2402 = vmatpush1.msra.mxu0 0.0
  %2403 = vmatprep.subr.mxu0 0.0
  %2404 = vmatpush1.msra.mxu0 0.0
  %2405 = vmatprep.subr.mxu0 0.0
  %2406 = vmatpush1.msra.mxu0 0.0
  %2407 = vmatprep.subr.mxu0 0.0
  %2408 = vmatpush1.msra.mxu0 0.0
  %2409 = vmatprep.subr.mxu0 0.0
  %2410 = vmatpush1.msra.mxu0 0.0
  %2411 = vmatprep.subr.mxu0 0.0
  %2412 = vmatpush1.msra.mxu0 0.0
  %2413 = vmatprep.subr.mxu0 0.0
  %2414 = vmatpush1.msra.mxu0 0.0
  %2415 = vmatprep.subr.mxu0 0.0
  %2416 = vmatpush1.msra.mxu0 0.0
  %2417 = vmatprep.subr.mxu0 0.0
  %2418 = vmatpush1.msra.mxu0 0.0
  %2419 = vmatprep.subr.mxu0 0.0
  %2420 = vmatpush1.msra.mxu0 0.0
  %2421 = vmatprep.mubr.f32.mxu0 0.0
  %2422 = vmatmul.mubr.f32.gmra.mrb[0].mxu0 %v2355
  %v2423 = vpop.f32.mrb[0].mxu0
  %v2424 = vadd.f32 %v2351, %v2423
  %v2425 = vpop.f32.mrb[0].mxu0
  %2426 = vdwg.mxu0
  %v2428 = vsel %vm1061, %v2198, 0
  %2430 = vmatprep.subr.mxu0 0.0
  %2431 = vmatpush1.msra.mxu0 %v42
  %2432 = vmatprep.subr.mxu0 0.0
  %2433 = vmatpush1.msra.mxu0 %v43
  %2434 = vmatprep.subr.mxu0 0.0
  %2435 = vmatpush1.msra.mxu0 0.0
  %2436 = vmatprep.subr.mxu0 0.0
  %2437 = vmatpush1.msra.mxu0 0.0
  %2438 = vmatprep.subr.mxu0 0.0
  %2439 = vmatpush1.msra.mxu0 0.0
  %2440 = vmatprep.subr.mxu0 0.0
  %2441 = vmatpush1.msra.mxu0 0.0
  %2442 = vmatprep.subr.mxu0 0.0
  %2443 = vmatpush1.msra.mxu0 0.0
  %2444 = vmatprep.subr.mxu0 0.0
  %2445 = vmatpush1.msra.mxu0 0.0
  %2446 = vmatprep.subr.mxu0 0.0
  %2447 = vmatpush1.msra.mxu0 0.0
  %2448 = vmatprep.subr.mxu0 0.0
  %2449 = vmatpush1.msra.mxu0 0.0
  %2450 = vmatprep.subr.mxu0 0.0
  %2451 = vmatpush1.msra.mxu0 0.0
  %2452 = vmatprep.subr.mxu0 0.0
  %2453 = vmatpush1.msra.mxu0 0.0
  %2454 = vmatprep.subr.mxu0 0.0
  %2455 = vmatpush1.msra.mxu0 0.0
  %2456 = vmatprep.subr.mxu0 0.0
  %2457 = vmatpush1.msra.mxu0 0.0
  %2458 = vmatprep.subr.mxu0 0.0
  %2459 = vmatpush1.msra.mxu0 0.0
  %2460 = vmatprep.subr.mxu0 0.0
  %2461 = vmatpush1.msra.mxu0 0.0
  %2462 = vmatprep.subr.mxu0 0.0
  %2463 = vmatpush1.msra.mxu0 0.0
  %2464 = vmatprep.subr.mxu0 0.0
  %2465 = vmatpush1.msra.mxu0 0.0
  %2466 = vmatprep.subr.mxu0 0.0
  %2467 = vmatpush1.msra.mxu0 0.0
  %2468 = vmatprep.subr.mxu0 0.0
  %2469 = vmatpush1.msra.mxu0 0.0
  %2470 = vmatprep.subr.mxu0 0.0
  %2471 = vmatpush1.msra.mxu0 0.0
  %2472 = vmatprep.subr.mxu0 0.0
  %2473 = vmatpush1.msra.mxu0 0.0
  %2474 = vmatprep.subr.mxu0 0.0
  %2475 = vmatpush1.msra.mxu0 0.0
  %2476 = vmatprep.subr.mxu0 0.0
  %2477 = vmatpush1.msra.mxu0 0.0
  %2478 = vmatprep.subr.mxu0 0.0
  %2479 = vmatpush1.msra.mxu0 0.0
  %2480 = vmatprep.subr.mxu0 0.0
  %2481 = vmatpush1.msra.mxu0 0.0
  %2482 = vmatprep.subr.mxu0 0.0
  %2483 = vmatpush1.msra.mxu0 0.0
  %2484 = vmatprep.subr.mxu0 0.0
  %2485 = vmatpush1.msra.mxu0 0.0
  %2486 = vmatprep.subr.mxu0 0.0
  %2487 = vmatpush1.msra.mxu0 0.0
  %2488 = vmatprep.subr.mxu0 0.0
  %2489 = vmatpush1.msra.mxu0 0.0
  %2490 = vmatprep.subr.mxu0 0.0
  %2491 = vmatpush1.msra.mxu0 0.0
  %2492 = vmatprep.subr.mxu0 0.0
  %2493 = vmatpush1.msra.mxu0 0.0
  %2494 = vmatprep.mubr.f32.mxu0 0.0
  %2495 = vmatmul.mubr.f32.gmra.mrb[0].mxu0 %v2428
  %v2496 = vpop.f32.mrb[0].mxu0
  %v2497 = vadd.f32 0.0, %v2496
  %v2498 = vpop.f32.mrb[0].mxu0
  %2499 = vdwg.mxu0
  %v2500 = vadd.f32 %v2424, %v2497
  %v2502 = vsel %vm1061, %v2278, 0
  %2504 = vmatprep.subr.mxu0 0.0
  %2505 = vmatpush1.msra.mxu0 %v50
  %2506 = vmatprep.subr.mxu0 0.0
  %2507 = vmatpush1.msra.mxu0 %v51
  %2508 = vmatprep.subr.mxu0 0.0
  %2509 = vmatpush1.msra.mxu0 0.0
  %2510 = vmatprep.subr.mxu0 0.0
  %2511 = vmatpush1.msra.mxu0 0.0
  %2512 = vmatprep.subr.mxu0 0.0
  %2513 = vmatpush1.msra.mxu0 0.0
  %2514 = vmatprep.subr.mxu0 0.0
  %2515 = vmatpush1.msra.mxu0 0.0
  %2516 = vmatprep.subr.mxu0 0.0
  %2517 = vmatpush1.msra.mxu0 0.0
  %2518 = vmatprep.subr.mxu0 0.0
  %2519 = vmatpush1.msra.mxu0 0.0
  %2520 = vmatprep.subr.mxu0 0.0
  %2521 = vmatpush1.msra.mxu0 0.0
  %2522 = vmatprep.subr.mxu0 0.0
  %2523 = vmatpush1.msra.mxu0 0.0
  %2524 = vmatprep.subr.mxu0 0.0
  %2525 = vmatpush1.msra.mxu0 0.0
  %2526 = vmatprep.subr.mxu0 0.0
  %2527 = vmatpush1.msra.mxu0 0.0
  %2528 = vmatprep.subr.mxu0 0.0
  %2529 = vmatpush1.msra.mxu0 0.0
  %2530 = vmatprep.subr.mxu0 0.0
  %2531 = vmatpush1.msra.mxu0 0.0
  %2532 = vmatprep.subr.mxu0 0.0
  %2533 = vmatpush1.msra.mxu0 0.0
  %2534 = vmatprep.subr.mxu0 0.0
  %2535 = vmatpush1.msra.mxu0 0.0
  %2536 = vmatprep.subr.mxu0 0.0
  %2537 = vmatpush1.msra.mxu0 0.0
  %2538 = vmatprep.subr.mxu0 0.0
  %2539 = vmatpush1.msra.mxu0 0.0
  %2540 = vmatprep.subr.mxu0 0.0
  %2541 = vmatpush1.msra.mxu0 0.0
  %2542 = vmatprep.subr.mxu0 0.0
  %2543 = vmatpush1.msra.mxu0 0.0
  %2544 = vmatprep.subr.mxu0 0.0
  %2545 = vmatpush1.msra.mxu0 0.0
  %2546 = vmatprep.subr.mxu0 0.0
  %2547 = vmatpush1.msra.mxu0 0.0
  %2548 = vmatprep.subr.mxu0 0.0
  %2549 = vmatpush1.msra.mxu0 0.0
  %2550 = vmatprep.subr.mxu0 0.0
  %2551 = vmatpush1.msra.mxu0 0.0
  %2552 = vmatprep.subr.mxu0 0.0
  %2553 = vmatpush1.msra.mxu0 0.0
  %2554 = vmatprep.subr.mxu0 0.0
  %2555 = vmatpush1.msra.mxu0 0.0
  %2556 = vmatprep.subr.mxu0 0.0
  %2557 = vmatpush1.msra.mxu0 0.0
  %2558 = vmatprep.subr.mxu0 0.0
  %2559 = vmatpush1.msra.mxu0 0.0
  %2560 = vmatprep.subr.mxu0 0.0
  %2561 = vmatpush1.msra.mxu0 0.0
  %2562 = vmatprep.subr.mxu0 0.0
  %2563 = vmatpush1.msra.mxu0 0.0
  %2564 = vmatprep.subr.mxu0 0.0
  %2565 = vmatpush1.msra.mxu0 0.0
  %2566 = vmatprep.subr.mxu0 0.0
  %2567 = vmatpush1.msra.mxu0 0.0
  %2568 = vmatprep.mubr.f32.mxu0 0.0
  %2569 = vmatmul.mubr.f32.gmra.mrb[0].mxu0 %v2502
  %v2570 = vpop.f32.mrb[0].mxu0
  %v2571 = vadd.f32 0.0, %v2570
  %v2572 = vpop.f32.mrb[0].mxu0
  %2573 = vdwg.mxu0
  %v2574 = vadd.f32 %v2500, %v2571
  %2576 = vrot.lane.b32.xlu0 %v2574, 64
  %v2577 = vpop.permute.xlu0 %2576
  %vm2579 = vcmask 523264
  %v2580 = vsel %vm2579, %v1355, %v2577
  %2581 = vst [vmem:[%s2] sm:$0x1] %v2580
  // Predicated region
  $region10: #{tcn_forward.1} parent=0 // pred_check
    _
  $region11: #{tcn_forward.1} parent=0 // pred_check_branch
    %2583 = sbr.rel (0) target = $region13
  $region12: #{tcn_forward.1} parent=0 // pred_region
    _
  $region13: #{tcn_forward.1} parent=0 // pred_fallthru
    _
  // Predicated region
  $region14: #{tcn_forward.1} parent=0 // pred_check
    _
  $region15: #{tcn_forward.1} parent=0 // pred_check_branch
    %2585 = sbr.rel (0) target = $region17
  $region16: #{tcn_forward.1} parent=0 // pred_region
    _
  $region17: #{tcn_forward.1} parent=0 // pred_fallthru
    _

</llo_original>
